<compile_context>
chip_gen: v6e
topology: v6e:2x2x1
jax: 0.10.0
libtpu: 0.0.40
codegen_flags: <defaults>
</compile_context>

<pallas_src>
import functools

import numpy as np
import jax
import jax.numpy as jnp
from jax import lax
from jax.experimental import pallas as pl
from jax.experimental.pallas import tpu as pltpu


# ---------------------------------------------------------------------------
# Offline fold (numpy, runs ONCE at init -- not in the per-forward path).
# ---------------------------------------------------------------------------
def _conv_affine_np(w, b, c_in, h_in, w_in):
    """One (kH,1) stride-2 VALID conv as an affine map on NCHW-flat vectors."""
    w = np.asarray(w, np.float64)
    b = np.asarray(b, np.float64)
    c_out, _, kh, kw = w.shape
    h_out = (h_in - kh) // 2 + 1
    w_out = (w_in - kw) // 2 + 1
    m = np.zeros((c_in * h_in * w_in, c_out * h_out * w_out), np.float64)
    for o in range(c_out):
        for i in range(c_in):
            for dh in range(kh):
                for ho in range(h_out):
                    for wo in range(w_out):
                        r = (i * h_in + ho * 2 + dh) * w_in + wo * 2
                        col = (o * h_out + ho) * w_out + wo
                        m[r, col] = w[o, i, dh, 0]
    bias = np.repeat(b, h_out * w_out)
    return m, bias, c_out, h_out, w_out


def build_mnet_params(params, in_channel, h_in, w_in):
    """Fold the affine conv stack (and fc1 when the pooled extent is 1) into
    kernel-ready weights.  Pure numpy; call once at init / weight load."""
    conv_params = params[:3]
    fc1_w, fc2_w = params[3], params[4]

    c, h, w = in_channel, h_in, w_in
    wc, bc = None, None
    for cw, cb in conv_params:                      # compose Toeplitz matrices
        m, bias, c, h, w = _conv_affine_np(cw, cb, c, h, w)
        if wc is None:
            wc, bc = m, bias
        else:
            wc = wc @ m
            bc = bc @ m + bias
    c3, s3 = c, h * w
    n = in_channel * h_in * w_in
    # The PyTorch view(-1, c*11) only composes with expand_as(x) when c*11 == c3.
    assert in_channel * 11 == c3, "M_Net forward requires in_channel == channel == 2"

    # Columns ordered (position, channel) so the s3>1 pool path can slice
    # contiguous channel blocks per position (identity when s3 == 1).
    wc = wc.reshape(n, c3, h, w).transpose(0, 2, 3, 1).reshape(n, s3 * c3)
    bc = bc.reshape(c3, h, w).transpose(1, 2, 0).reshape(s3 * c3)

    f1 = np.asarray(fc1_w, np.float64).T            # (c3, hidden)
    f2 = np.asarray(fc2_w, np.float32).T            # (hidden, C)

    if s3 == 1:
        # No pooling: fold fc1 too -> the whole pre-ReLU path is one matmul.
        wc = wc @ f1                                 # (n, hidden)
        bc = bc @ f1                                 # (hidden,)
        f1 = None

    wt = np.ascontiguousarray(wc.T, dtype=np.float32)      # (cols, n): lane-dense
    bc = bc.reshape(1, -1).astype(np.float32)
    return dict(
        wt=jnp.asarray(wt), bc=jnp.asarray(bc),
        f1=None if f1 is None else jnp.asarray(f1, dtype=jnp.float32),
        f2=jnp.asarray(f2),
        s3=s3, c3=c3, channels=in_channel, spatial=h_in * w_in)


# ---------------------------------------------------------------------------
# Kernels
# ---------------------------------------------------------------------------
def _scale_and_store(xf, scale, o_ref, *, spatial, channels):
    # One full-width multiply + unmasked store: broadcast the per-channel
    # sigmoid gate over the lane-dense flat layout via a lane-index where chain.
    lane = lax.broadcasted_iota(jnp.int32, xf.shape, 1)
    sf = scale[:, 0:1]
    for ci in range(1, channels):
        sf = jnp.where(lane >= ci * spatial, scale[:, ci:ci + 1], sf)
    o_ref[...] = xf * sf


def _mnet_kernel_folded(xf_ref, wt_ref, bc_ref, f2_ref, o_ref, *, spatial, channels):
    # conv stack + fc1 folded offline into one affine map; weight stored
    # transposed so the lane dim stays 1152-wide (no 22->128 lane padding).
    hp = lax.Precision.HIGHEST      # tiny post-fold MXU work -> HIGHEST is free
    xf = xf_ref[...]                                           # (TB, C*H*W)
    h = lax.dot_general(xf, wt_ref[...], (((1,), (1,)), ((), ())),
                        preferred_element_type=jnp.float32, precision=hp)
    h = jnp.maximum(h + bc_ref[...], 0.0)                      # ReLU
    scale = jax.nn.sigmoid(
        jnp.dot(h, f2_ref[...], preferred_element_type=jnp.float32, precision=hp))
    _scale_and_store(xf, scale, o_ref, spatial=spatial, channels=channels)


def _mnet_kernel_pooled(xf_ref, wt_ref, bc_ref, f1_ref, f2_ref, o_ref, *,
                        s3, c3, spatial, channels):
    # General path (pooled spatial extent > 1): conv stack folded, explicit
    # max-pool over positions, then fc.  Dead at the demo geometry (s3 == 1).
    hp = lax.Precision.HIGHEST
    xf = xf_ref[...]
    y = lax.dot_general(xf, wt_ref[...], (((1,), (1,)), ((), ())),
                        preferred_element_type=jnp.float32, precision=hp) + bc_ref[...]
    pooled = y[:, 0:c3]
    # TODO(synk): pad c3 to a 128-friendly column stride in the fold so these
    # slices are lane-aligned if the s3 > 1 path is ever exercised at scale.
    for s in range(1, s3):
        pooled = jnp.maximum(pooled, y[:, s * c3:(s + 1) * c3])
    h = jnp.maximum(
        jnp.dot(pooled, f1_ref[...], preferred_element_type=jnp.float32, precision=hp), 0.0)
    scale = jax.nn.sigmoid(
        jnp.dot(h, f2_ref[...], preferred_element_type=jnp.float32, precision=hp))
    _scale_and_store(xf, scale, o_ref, spatial=spatial, channels=channels)


# ---------------------------------------------------------------------------
# Forward wrapper
# ---------------------------------------------------------------------------
def m_net_forward(x, folded, *, tb=512):
    b, c, H, W = x.shape
    spatial = H * W
    assert c == folded['channels'] and spatial == folded['spatial']
    cs = c * spatial
    xf = x.reshape(b, cs)                      # NCHW flatten: zero-cost, lane-dense

    # Batch grid: TB rows per step (full batch if small).  TB=512 keeps
    # double-buffered in+out blocks ~9.4 MB -- safe on v7x's 64 MiB VMEM too.
    TB = b if b <= tb else tb
    grid = (pl.cdiv(b, TB),)
    row_spec = pl.BlockSpec((TB, cs), lambda i: (i, 0))
    resident = lambda a: pl.BlockSpec(a.shape, lambda i: (0, 0))   # stays in VMEM

    if folded['f1'] is None:
        kern = functools.partial(_mnet_kernel_folded, spatial=spatial, channels=c)
        operands = (xf, folded['wt'], folded['bc'], folded['f2'])
    else:
        kern = functools.partial(_mnet_kernel_pooled, s3=folded['s3'],
                                 c3=folded['c3'], spatial=spatial, channels=c)
        operands = (xf, folded['wt'], folded['bc'], folded['f1'], folded['f2'])

    out_flat = pl.pallas_call(
        kern,
        out_shape=jax.ShapeDtypeStruct((b, cs), jnp.float32),   # lane-dense output
        grid=grid,
        in_specs=[row_spec] + [resident(a) for a in operands[1:]],
        out_specs=row_spec,
        compiler_params=pltpu.CompilerParams(dimension_semantics=("parallel",)),
        # input_output_aliases={0: 0},   # enable once callers donate x's buffer
    )(*operands)
    return out_flat.reshape(b, c, H, W)


# ---------------------------------------------------------------------------
# Pure-JAX reference mirroring the PyTorch forward (NCHW)
# ---------------------------------------------------------------------------
def _conv_chain(y, conv_params):
    for w, b in conv_params:
        y = lax.conv_general_dilated(
            y, w, window_strides=(2, 2), padding='VALID',
            dimension_numbers=('NCHW', 'OIHW', 'NCHW'),
            precision=lax.Precision.HIGHEST)
        y = y + b[None, :, None, None]
    return y


def reference(x, params):
    conv_params = tuple(params[:3])
    fc1_w, fc2_w = params[3], params[4]
    y = _conv_chain(x, conv_params)
    pooled = jnp.max(y, axis=(2, 3))                       # AdaptiveMaxPool2d(1)
    b, c = x.shape[:2]
    pooled = pooled.reshape(-1, c * 11)                    # view(-1, c*11)
    h = jnp.maximum(pooled @ fc1_w.T, 0.0)
    s = jax.nn.sigmoid(h @ fc2_w.T)
    return x * s[:, :, None, None]


if __name__ == "__main__":
    # Module only type-checks when in_channel == channel == 2 (so c*11 == 22).
    in_channel = 2
    channel = 2
    reduction = 2
    hidden = channel * 11 // reduction
    B, H, W = 2, 72, 8   # H >= 71 so all three (kH,1) stride-2 convs are valid

    key = jax.random.PRNGKey(0)
    ks = jax.random.split(key, 9)
    w1 = jax.random.normal(ks[0], (4, in_channel, 3, 1), jnp.float32) * 0.2
    b1 = jax.random.normal(ks[1], (4,), jnp.float32) * 0.1
    w2 = jax.random.normal(ks[2], (8, 4, 7, 1), jnp.float32) * 0.2
    b2 = jax.random.normal(ks[3], (8,), jnp.float32) * 0.1
    w3 = jax.random.normal(ks[4], (22, 8, 15, 1), jnp.float32) * 0.2
    b3 = jax.random.normal(ks[5], (22,), jnp.float32) * 0.1
    fc1_w = jax.random.normal(ks[6], (hidden, channel * 11), jnp.float32) * 0.2
    fc2_w = jax.random.normal(ks[7], (in_channel, hidden), jnp.float32) * 0.2
    x = jax.random.normal(ks[8], (B, in_channel, H, W), jnp.float32)

    params = ((w1, b1), (w2, b2), (w3, b3), fc1_w, fc2_w)

    folded = build_mnet_params(params, in_channel, H, W)   # once, at init
    out = m_net_forward(x, folded)
    jax.block_until_ready(out)

    ref = reference(x, params)
    assert out.shape == x.shape
    np.testing.assert_allclose(np.asarray(out), np.asarray(ref), rtol=2e-3, atol=2e-3)
    print("KERNEL_OK")
</pallas_src>

<mosaic_0001>
module attributes {stable_mosaic.version = 11 : i64} {
  func.func @_mnet_kernel_folded(%arg0: i32, %arg1: memref<2x1152xf32, #tpu.memory_space<vmem>>, %arg2: memref<11x1152xf32, #tpu.memory_space<vmem>>, %arg3: memref<1x11xf32, #tpu.memory_space<vmem>>, %arg4: memref<11x2xf32, #tpu.memory_space<vmem>>, %arg5: memref<2x1152xf32, #tpu.memory_space<vmem>>) attributes {dimension_semantics = [#tpu.dimension_semantics<parallel>], iteration_bounds = array<i64: 1>, scalar_prefetch = 0 : i64, scratch_operands = 0 : i64, tpu.core_type = #tpu.core_type<tc>, window_params = [{transform_indices = @transform_0, window_bounds = array<i64: 2, 1152>}, {pipeline_mode = #tpu.pipeline_mode<synchronous>, transform_indices = @transform_1, window_bounds = array<i64: 11, 1152>}, {pipeline_mode = #tpu.pipeline_mode<synchronous>, transform_indices = @transform_2, window_bounds = array<i64: 1, 11>}, {pipeline_mode = #tpu.pipeline_mode<synchronous>, transform_indices = @transform_3, window_bounds = array<i64: 11, 2>}, {transform_indices = @transform_4, window_bounds = array<i64: 2, 1152>}]} {
    %c0 = arith.constant 0 : index
    %c0_0 = arith.constant 0 : index
    %0 = vector.load %arg1[%c0, %c0_0] : memref<2x1152xf32, #tpu.memory_space<vmem>>, vector<2x1152xf32>
    %c0_1 = arith.constant 0 : index
    %c0_2 = arith.constant 0 : index
    %1 = vector.load %arg2[%c0_1, %c0_2] : memref<11x1152xf32, #tpu.memory_space<vmem>>, vector<11x1152xf32>
    %cst = arith.constant dense<0.000000e+00> : vector<2x11xf32>
    %2 = tpu.matmul %0, %1, %cst {dimension_numbers = #tpu.dot_dimension_numbers<[1], [1], [0], [0], [0, 0, 1, 0], [], []>, precision = #tpu.contract_precision<fp32>} : vector<2x1152xf32>, vector<11x1152xf32>, vector<2x11xf32> -> vector<2x11xf32>
    %c0_3 = arith.constant 0 : index
    %c0_4 = arith.constant 0 : index
    %3 = vector.load %arg3[%c0_3, %c0_4] : memref<1x11xf32, #tpu.memory_space<vmem>>, vector<1x11xf32>
    %4 = vector.broadcast %3 : vector<1x11xf32> to vector<2x11xf32>
    %5 = arith.addf %2, %4 : vector<2x11xf32>
    %cst_5 = arith.constant 0.000000e+00 : f32
    %6 = vector.broadcast %cst_5 : f32 to vector<2x11xf32>
    %7 = arith.maximumf %5, %6 : vector<2x11xf32>
    %c0_6 = arith.constant 0 : index
    %c0_7 = arith.constant 0 : index
    %8 = vector.load %arg4[%c0_6, %c0_7] : memref<11x2xf32, #tpu.memory_space<vmem>>, vector<11x2xf32>
    %cst_8 = arith.constant dense<0.000000e+00> : vector<2x2xf32>
    %9 = tpu.matmul %7, %8, %cst_8 {dimension_numbers = #tpu.dot_dimension_numbers<[1], [0], [0], [1], [0, 0, 1, 1], [], []>, precision = #tpu.contract_precision<fp32>} : vector<2x11xf32>, vector<11x2xf32>, vector<2x2xf32> -> vector<2x2xf32>
    %10 = arith.negf %9 : vector<2x2xf32>
    %11 = math.exp %10 : vector<2x2xf32>
    %cst_9 = arith.constant 1.000000e+00 : f32
    %12 = vector.broadcast %cst_9 : f32 to vector<2x2xf32>
    %13 = arith.addf %12, %11 : vector<2x2xf32>
    %14 = arith.divf %12, %13 : vector<2x2xf32>
    %15 = tpu.iota {dimensions = array<i32: 1>} : vector<2x1152xi32>
    %16 = vector.extract_strided_slice %14 {offsets = [0, 0], sizes = [2, 1], strides = [1, 1]} : vector<2x2xf32> to vector<2x1xf32>
    %c576_i32 = arith.constant 576 : i32
    %17 = vector.broadcast %c576_i32 : i32 to vector<2x1152xi32>
    %18 = arith.cmpi sge, %15, %17 : vector<2x1152xi32>
    %19 = vector.extract_strided_slice %14 {offsets = [0, 1], sizes = [2, 1], strides = [1, 1]} : vector<2x2xf32> to vector<2x1xf32>
    %20 = vector.shape_cast %19 : vector<2x1xf32> to vector<2x1xf32>
    %21 = vector.broadcast %20 : vector<2x1xf32> to vector<2x1152xf32>
    %22 = vector.shape_cast %16 : vector<2x1xf32> to vector<2x1xf32>
    %23 = vector.broadcast %22 : vector<2x1xf32> to vector<2x1152xf32>
    %24 = arith.select %18, %21, %23 : vector<2x1152xi1>, vector<2x1152xf32>
    %25 = arith.mulf %0, %24 : vector<2x1152xf32>
    %c0_10 = arith.constant 0 : index
    %c0_11 = arith.constant 0 : index
    %26 = vector.load %arg5[%c0_10, %c0_11] : memref<2x1152xf32, #tpu.memory_space<vmem>>, vector<2x1152xf32>
    tpu.vector_store %arg5[%c0_10, %c0_11], %25 {strides = array<i32>} : memref<2x1152xf32, #tpu.memory_space<vmem>>, vector<2x1152xf32>,
    return
  }
  func.func @transform_0(%arg0: i32) -> (i32, i32) {
    %c0_i32 = arith.constant 0 : i32
    %c0_i32_0 = arith.constant 0 : i32
    return %arg0, %c0_i32 : i32, i32
  }
  func.func @transform_1(%arg0: i32) -> (i32, i32) {
    %c0_i32 = arith.constant 0 : i32
    %c0_i32_0 = arith.constant 0 : i32
    %c0_i32_1 = arith.constant 0 : i32
    return %c0_i32, %c0_i32_0 : i32, i32
  }
  func.func @transform_2(%arg0: i32) -> (i32, i32) {
    %c0_i32 = arith.constant 0 : i32
    %c0_i32_0 = arith.constant 0 : i32
    %c0_i32_1 = arith.constant 0 : i32
    return %c0_i32, %c0_i32_0 : i32, i32
  }
  func.func @transform_3(%arg0: i32) -> (i32, i32) {
    %c0_i32 = arith.constant 0 : i32
    %c0_i32_0 = arith.constant 0 : i32
    %c0_i32_1 = arith.constant 0 : i32
    return %c0_i32, %c0_i32_0 : i32, i32
  }
  func.func @transform_4(%arg0: i32) -> (i32, i32) {
    %c0_i32 = arith.constant 0 : i32
    %c0_i32_0 = arith.constant 0 : i32
    return %arg0, %c0_i32 : i32, i32
  }
}

</mosaic_0001>

<llo_original>
// kernel: tpu_custom_call.1
$region0: #{tpu_custom_call.1}
  #allocation0 [shape = 'u32[]', space=smem, size = 0x4, offset = 0x4, fixed_abs, tag = 'smem constant byte address 0x4 - core index']
  #allocation1 [shape = 'u32[144,128]{1,0:T(1,128)}', space=vmem, size = 0x12000, scoped, tag = 'internal scratch']
  %s0 = inlined_call_operand.vmem [shape: f32[2,1152], index: 0, kind: input, shape index: {}]
  %s1 = inlined_call_operand.hbm [shape: f32[11,1152], index: 1, kind: input, shape index: {}]
  %s2 = inlined_call_operand.vmem [shape: f32[1,11], index: 2, kind: input, shape index: {}]
  %s3 = inlined_call_operand.vmem [shape: f32[11,2], index: 3, kind: input, shape index: {}]
  %s4 = inlined_call_operand.hbm [shape: f32[2,1152], index: 4, kind: output, shape index: {}]
  %s5 = sld [smem:[#allocation0]]
  $region30: #{tpu_custom_call.1} parent=0
    _
  %s7 = ssub.s32 1, %s5
  %s8 = scalar_select 0, %s7, %s5
  $region1: #{tpu_custom_call.1} parent=0
    #allocation2 [shape = 'u8[73728]{0}', space=vmem, size = 0x12000, scoped, tag = 'input window, operand 1, single buffered']
    #allocation3 [shape = 's32[1]{0}', space=sflag, size = 0x4, scoped, tag = 'scoped memory for tpu_custom_call.1']
    #allocation4 [shape = 's32[1]{0}', space=sflag, size = 0x4, scoped, tag = 'scoped memory for tpu_custom_call.1']
    #allocation5 [shape = 'u8[9216]{0}', space=vmem, size = 0x2400, scoped, tag = 'output window, operand 0, single buffered']
    %9 = vsyncpa [#allocation3], 0
    %10 = vsyncpa [#allocation4], 0
    // Predicated region
    $region2: #{tpu_custom_call.1} parent=1 // pred_check
      _
    $region3: #{tpu_custom_call.1} parent=1 // pred_check_branch
      %12 = sbr.rel (0) target = $region5
    $region4: #{tpu_custom_call.1} parent=1 // pred_region
      _
    $region5: #{tpu_custom_call.1} parent=1 // pred_fallthru
      _
    // Predicated region
    $region6: #{tpu_custom_call.1} parent=1 // pred_check
      _
    $region7: #{tpu_custom_call.1} parent=1 // pred_check_branch
      %14 = sbr.rel (0) target = $region9
    $region8: #{tpu_custom_call.1} parent=1 // pred_region
      %s16 = ssub.s32 2304, 2304
      %17 = vsyncadd [#allocation3], %s16
      %s18 = sshll.u32 [#allocation2], 4
      %s19 = int_to_ptr.vmem [resolvable:$true] %s18
      %24 = dma.hbm_to_vmem [thread:$0]  %s1, 2304, %s19, [#allocation3], 1152, 1152, 72
    $region9: #{tpu_custom_call.1} parent=1 // pred_fallthru
      _
    // Predicated region
    $region10: #{tpu_custom_call.1} parent=1 // pred_check
      _
    $region11: #{tpu_custom_call.1} parent=1 // pred_check_branch
      %26 = sbr.rel (0) target = $region13
    $region12: #{tpu_custom_call.1} parent=1 // pred_region
      _
    $region13: #{tpu_custom_call.1} parent=1 // pred_fallthru
      _
    // Predicated region
    $region14: #{tpu_custom_call.1} parent=1 // pred_check
      _
    $region15: #{tpu_custom_call.1} parent=1 // pred_check_branch
      %28 = sbr.rel (0) target = $region17
    $region16: #{tpu_custom_call.1} parent=1 // pred_region
      _
    $region17: #{tpu_custom_call.1} parent=1 // pred_fallthru
      _
    // Predicated region
    $region18: #{tpu_custom_call.1} parent=1 // pred_check
      _
    $region19: #{tpu_custom_call.1} parent=1 // pred_check_branch
      %30 = sbr.rel (0) target = $region21
    $region20: #{tpu_custom_call.1} parent=1 // pred_region
      %31 = dma.done [#allocation3], 2304
    $region21: #{tpu_custom_call.1} parent=1 // pred_fallthru
      _
    %v32 = vld [vmem:[%s0] sm:$0xff]
    %v33 = vld [vmem:[%s0 + $0x8] sm:$0xff]
    %v34 = vld [vmem:[%s0 + $0x10] sm:$0x3]
    %v35 = vld [vmem:[#allocation2] sm:$0xff]
    %v36 = vld [vmem:[#allocation2 + $0x8] sm:$0xff]
    %v37 = vld [vmem:[#allocation2 + $0x10] sm:$0xff]
    %v38 = vld [vmem:[#allocation2 + $0x18] sm:$0xff]
    %v39 = vld [vmem:[#allocation2 + $0x20] sm:$0xff]
    %v40 = vld [vmem:[#allocation2 + $0x28] sm:$0xff]
    %v41 = vld [vmem:[#allocation2 + $0x30] sm:$0xff]
    %v42 = vld [vmem:[#allocation2 + $0x38] sm:$0xff]
    %v43 = vld [vmem:[#allocation2 + $0x40] sm:$0xff]
    %v44 = vld [vmem:[#allocation2 + $0x48] sm:$0x7]
    %v45 = vld [vmem:[#allocation2 + $0x50] sm:$0x7]
    %v46 = vld [vmem:[#allocation2 + $0x58] sm:$0x7]
    %v47 = vld [vmem:[#allocation2 + $0x60] sm:$0x7]
    %v48 = vld [vmem:[#allocation2 + $0x68] sm:$0x7]
    %v49 = vld [vmem:[#allocation2 + $0x70] sm:$0x7]
    %v50 = vld [vmem:[#allocation2 + $0x78] sm:$0x7]
    %v51 = vld [vmem:[#allocation2 + $0x80] sm:$0x7]
    %v52 = vld [vmem:[#allocation2 + $0x88] sm:$0x7]
    %v53 = vld [vmem:[%s2] sm:$0x1]
    %v55 = vlaneseq
    %v56 = vshrl.u32 %v55, 7
    %v57 = vsub.s32 0, %v56
    %v58 = vrot.slane %v53, %v57
    %v63 = vcombine.high %v32, %v32
    %v65 = vunpack.c.l.s4 1983009808
    %v66 = vunpack.c.0.s8 %v65
    %v67 = vlaneseq
    %v68 = vshrl.u32 %v67, 7
    %v69 = vsub.s32 %v66, %v68
    %v70 = vrot.slane %v32, %v69
    %v72 = vunpack.c.l.s4 1983009808
    %v73 = vunpack.c.0.s8 %v72
    %v74 = vlaneseq
    %v75 = vshrl.u32 %v74, 7
    %v76 = vsub.s32 %v73, %v75
    %v77 = vrot.slane %v63, %v76
    %v78 = vcombine.high %v70, %v70
    %v79 = vcombine.high %v77, %v77
    %v80 = vcombine.high %v33, %v33
    %v82 = vunpack.c.l.s4 1983009808
    %v83 = vunpack.c.0.s8 %v82
    %v84 = vlaneseq
    %v85 = vshrl.u32 %v84, 7
    %v86 = vsub.s32 %v83, %v85
    %v87 = vrot.slane %v33, %v86
    %v89 = vunpack.c.l.s4 1983009808
    %v90 = vunpack.c.0.s8 %v89
    %v91 = vlaneseq
    %v92 = vshrl.u32 %v91, 7
    %v93 = vsub.s32 %v90, %v92
    %v94 = vrot.slane %v80, %v93
    %v95 = vcombine.high %v87, %v87
    %v96 = vcombine.high %v94, %v94
    %v98 = vunpack.c.l.s4 1983009808
    %v99 = vunpack.c.0.s8 %v98
    %v100 = vlaneseq
    %v101 = vshrl.u32 %v100, 7
    %v102 = vsub.s32 %v99, %v101
    %v103 = vrot.slane %v34, %v102
    %113 = vmatprep.subr.mxu0 0.0
    %114 = vmatpush1.xpose.msra.mxu0 0.0
    %115 = vmatprep.subr.mxu0 0.0
    %116 = vmatpush1.xpose.msra.mxu0 0.0
    %117 = vmatprep.subr.mxu0 0.0
    %118 = vmatpush1.xpose.msra.mxu0 0.0
    %119 = vmatprep.subr.mxu0 0.0
    %120 = vmatpush1.xpose.msra.mxu0 0.0
    %121 = vmatprep.subr.mxu0 0.0
    %122 = vmatpush1.xpose.msra.mxu0 0.0
    %123 = vmatprep.subr.mxu0 0.0
    %124 = vmatpush1.xpose.msra.mxu0 0.0
    %125 = vmatprep.subr.mxu0 0.0
    %126 = vmatpush1.xpose.msra.mxu0 0.0
    %127 = vmatprep.subr.mxu0 0.0
    %128 = vmatpush1.xpose.msra.mxu0 0.0
    %129 = vmatprep.subr.mxu0 0.0
    %130 = vmatpush1.xpose.msra.mxu0 0.0
    %131 = vmatprep.subr.mxu0 0.0
    %132 = vmatpush1.xpose.msra.mxu0 0.0
    %133 = vmatprep.subr.mxu0 0.0
    %134 = vmatpush1.xpose.msra.mxu0 0.0
    %135 = vmatprep.subr.mxu0 0.0
    %136 = vmatpush1.xpose.msra.mxu0 0.0
    %137 = vmatprep.subr.mxu0 0.0
    %138 = vmatpush1.xpose.msra.mxu0 0.0
    %139 = vmatprep.subr.mxu0 0.0
    %140 = vmatpush1.xpose.msra.mxu0 0.0
    %v141 = vand.u32 %v45, 4294901760
    %142 = vmatprep.subr.mxu0 %v141
    %v143 = vand.u32 %v44, 4294901760
    %144 = vmatpush1.xpose.msra.mxu0 %v143
    %v145 = vand.u32 %v36, 4294901760
    %146 = vmatprep.subr.mxu0 %v145
    %v147 = vand.u32 %v35, 4294901760
    %148 = vmatpush1.xpose.msra.mxu0 %v147
    %149 = vmatprep.subr.mxu0 0.0
    %150 = vmatpush2.xpose.msra.mxu0 0.0
    %151 = vmatprep.subr.mxu0 0.0
    %152 = vmatpush2.xpose.msra.mxu0 0.0
    %153 = vmatprep.subr.mxu0 0.0
    %154 = vmatpush2.xpose.msra.mxu0 0.0
    %155 = vmatprep.subr.mxu0 0.0
    %156 = vmatpush2.xpose.msra.mxu0 0.0
    %157 = vmatprep.subr.mxu0 0.0
    %158 = vmatpush2.xpose.msra.mxu0 0.0
    %159 = vmatprep.subr.mxu0 0.0
    %160 = vmatpush2.xpose.msra.mxu0 0.0
    %161 = vmatprep.subr.mxu0 0.0
    %162 = vmatpush2.xpose.msra.mxu0 0.0
    %163 = vmatprep.subr.mxu0 0.0
    %164 = vmatpush2.xpose.msra.mxu0 0.0
    %165 = vmatprep.subr.mxu0 0.0
    %166 = vmatpush2.xpose.msra.mxu0 0.0
    %167 = vmatprep.subr.mxu0 0.0
    %168 = vmatpush2.xpose.msra.mxu0 0.0
    %169 = vmatprep.subr.mxu0 0.0
    %170 = vmatpush2.xpose.msra.mxu0 0.0
    %171 = vmatprep.subr.mxu0 0.0
    %172 = vmatpush2.xpose.msra.mxu0 0.0
    %173 = vmatprep.subr.mxu0 0.0
    %174 = vmatpush2.xpose.msra.mxu0 0.0
    %175 = vmatprep.subr.mxu0 0.0
    %176 = vmatpush2.xpose.msra.mxu0 0.0
    %177 = vmatprep.subr.mxu0 0.0
    %178 = vmatpush2.xpose.msra.mxu0 0.0
    %179 = vmatprep.subr.mxu0 0.0
    %180 = vmatpush2.xpose.msra.mxu0 0.0
    %v181 = vand.u32 %v78, 4294901760
    %v182 = vsub.f32 %v78, %v181
    %v183 = vand.u32 %v182, 4294901760
    %v184 = vsub.f32 %v182, %v183
    %v185 = vand.u32 %v184, 4294901760
    %186 = vmatprep.mubr.f32.mxu0 %v185
    %v187 = vand.u32 %v70, 4294901760
    %v188 = vsub.f32 %v70, %v187
    %v189 = vand.u32 %v188, 4294901760
    %v190 = vsub.f32 %v188, %v189
    %v191 = vand.u32 %v190, 4294901760
    %192 = vmatmul.mubr.f32.gmra.mxu0 %v191
    %v193 = vpop.f32.mrf.mxu0
    %v194 = vadd.f32 %v58, %v193
    %v195 = vpop.f32.mrf.mxu0
    %196 = vdwg.mxu0
    %197 = vmatprep.subr.mxu0 0.0
    %198 = vmatpush1.xpose.msra.mxu0 0.0
    %199 = vmatprep.subr.mxu0 0.0
    %200 = vmatpush1.xpose.msra.mxu0 0.0
    %201 = vmatprep.subr.mxu0 0.0
    %202 = vmatpush1.xpose.msra.mxu0 0.0
    %203 = vmatprep.subr.mxu0 0.0
    %204 = vmatpush1.xpose.msra.mxu0 0.0
    %205 = vmatprep.subr.mxu0 0.0
    %206 = vmatpush1.xpose.msra.mxu0 0.0
    %207 = vmatprep.subr.mxu0 0.0
    %208 = vmatpush1.xpose.msra.mxu0 0.0
    %209 = vmatprep.subr.mxu0 0.0
    %210 = vmatpush1.xpose.msra.mxu0 0.0
    %211 = vmatprep.subr.mxu0 0.0
    %212 = vmatpush1.xpose.msra.mxu0 0.0
    %213 = vmatprep.subr.mxu0 0.0
    %214 = vmatpush1.xpose.msra.mxu0 0.0
    %215 = vmatprep.subr.mxu0 0.0
    %216 = vmatpush1.xpose.msra.mxu0 0.0
    %217 = vmatprep.subr.mxu0 0.0
    %218 = vmatpush1.xpose.msra.mxu0 0.0
    %219 = vmatprep.subr.mxu0 0.0
    %220 = vmatpush1.xpose.msra.mxu0 0.0
    %221 = vmatprep.subr.mxu0 0.0
    %222 = vmatpush1.xpose.msra.mxu0 0.0
    %223 = vmatprep.subr.mxu0 0.0
    %224 = vmatpush1.xpose.msra.mxu0 0.0
    %v225 = vand.u32 %v45, 4294901760
    %v226 = vsub.f32 %v45, %v225
    %v227 = vand.u32 %v226, 4294901760
    %v228 = vsub.f32 %v226, %v227
    %v229 = vand.u32 %v228, 4294901760
    %230 = vmatprep.subr.mxu0 %v229
    %v231 = vand.u32 %v44, 4294901760
    %v232 = vsub.f32 %v44, %v231
    %v233 = vand.u32 %v232, 4294901760
    %v234 = vsub.f32 %v232, %v233
    %v235 = vand.u32 %v234, 4294901760
    %236 = vmatpush1.xpose.msra.mxu0 %v235
    %v237 = vand.u32 %v36, 4294901760
    %v238 = vsub.f32 %v36, %v237
    %v239 = vand.u32 %v238, 4294901760
    %v240 = vsub.f32 %v238, %v239
    %v241 = vand.u32 %v240, 4294901760
    %242 = vmatprep.subr.mxu0 %v241
    %v243 = vand.u32 %v35, 4294901760
    %v244 = vsub.f32 %v35, %v243
    %v245 = vand.u32 %v244, 4294901760
    %v246 = vsub.f32 %v244, %v245
    %v247 = vand.u32 %v246, 4294901760
    %248 = vmatpush1.xpose.msra.mxu0 %v247
    %249 = vmatprep.subr.mxu0 0.0
    %250 = vmatpush2.xpose.msra.mxu0 0.0
    %251 = vmatprep.subr.mxu0 0.0
    %252 = vmatpush2.xpose.msra.mxu0 0.0
    %253 = vmatprep.subr.mxu0 0.0
    %254 = vmatpush2.xpose.msra.mxu0 0.0
    %255 = vmatprep.subr.mxu0 0.0
    %256 = vmatpush2.xpose.msra.mxu0 0.0
    %257 = vmatprep.subr.mxu0 0.0
    %258 = vmatpush2.xpose.msra.mxu0 0.0
    %259 = vmatprep.subr.mxu0 0.0
    %260 = vmatpush2.xpose.msra.mxu0 0.0
    %261 = vmatprep.subr.mxu0 0.0
    %262 = vmatpush2.xpose.msra.mxu0 0.0
    %263 = vmatprep.subr.mxu0 0.0
    %264 = vmatpush2.xpose.msra.mxu0 0.0
    %265 = vmatprep.subr.mxu0 0.0
    %266 = vmatpush2.xpose.msra.mxu0 0.0
    %267 = vmatprep.subr.mxu0 0.0
    %268 = vmatpush2.xpose.msra.mxu0 0.0
    %269 = vmatprep.subr.mxu0 0.0
    %270 = vmatpush2.xpose.msra.mxu0 0.0
    %271 = vmatprep.subr.mxu0 0.0
    %272 = vmatpush2.xpose.msra.mxu0 0.0
    %273 = vmatprep.subr.mxu0 0.0
    %274 = vmatpush2.xpose.msra.mxu0 0.0
    %275 = vmatprep.subr.mxu0 0.0
    %276 = vmatpush2.xpose.msra.mxu0 0.0
    %277 = vmatprep.subr.mxu0 0.0
    %278 = vmatpush2.xpose.msra.mxu0 0.0
    %279 = vmatprep.subr.mxu0 0.0
    %280 = vmatpush2.xpose.msra.mxu0 0.0
    %v281 = vand.u32 %v78, 4294901760
    %282 = vmatprep.mubr.f32.mxu0 %v281
    %v283 = vand.u32 %v70, 4294901760
    %284 = vmatmul.mubr.f32.gmra.mxu0 %v283
    %v285 = vpop.f32.mrf.mxu0
    %v286 = vadd.f32 %v194, %v285
    %v287 = vpop.f32.mrf.mxu0
    %288 = vdwg.mxu0
    %289 = vmatprep.subr.mxu0 0.0
    %290 = vmatpush1.xpose.msra.mxu0 0.0
    %291 = vmatprep.subr.mxu0 0.0
    %292 = vmatpush1.xpose.msra.mxu0 0.0
    %293 = vmatprep.subr.mxu0 0.0
    %294 = vmatpush1.xpose.msra.mxu0 0.0
    %295 = vmatprep.subr.mxu0 0.0
    %296 = vmatpush1.xpose.msra.mxu0 0.0
    %297 = vmatprep.subr.mxu0 0.0
    %298 = vmatpush1.xpose.msra.mxu0 0.0
    %299 = vmatprep.subr.mxu0 0.0
    %300 = vmatpush1.xpose.msra.mxu0 0.0
    %301 = vmatprep.subr.mxu0 0.0
    %302 = vmatpush1.xpose.msra.mxu0 0.0
    %303 = vmatprep.subr.mxu0 0.0
    %304 = vmatpush1.xpose.msra.mxu0 0.0
    %305 = vmatprep.subr.mxu0 0.0
    %306 = vmatpush1.xpose.msra.mxu0 0.0
    %307 = vmatprep.subr.mxu0 0.0
    %308 = vmatpush1.xpose.msra.mxu0 0.0
    %309 = vmatprep.subr.mxu0 0.0
    %310 = vmatpush1.xpose.msra.mxu0 0.0
    %311 = vmatprep.subr.mxu0 0.0
    %312 = vmatpush1.xpose.msra.mxu0 0.0
    %313 = vmatprep.subr.mxu0 0.0
    %314 = vmatpush1.xpose.msra.mxu0 0.0
    %315 = vmatprep.subr.mxu0 0.0
    %316 = vmatpush1.xpose.msra.mxu0 0.0
    %v317 = vand.u32 %v45, 4294901760
    %v318 = vsub.f32 %v45, %v317
    %319 = vmatprep.subr.mxu0 %v318
    %v320 = vand.u32 %v44, 4294901760
    %v321 = vsub.f32 %v44, %v320
    %322 = vmatpush1.xpose.msra.mxu0 %v321
    %v323 = vand.u32 %v36, 4294901760
    %v324 = vsub.f32 %v36, %v323
    %325 = vmatprep.subr.mxu0 %v324
    %v326 = vand.u32 %v35, 4294901760
    %v327 = vsub.f32 %v35, %v326
    %328 = vmatpush1.xpose.msra.mxu0 %v327
    %329 = vmatprep.subr.mxu0 0.0
    %330 = vmatpush2.xpose.msra.mxu0 0.0
    %331 = vmatprep.subr.mxu0 0.0
    %332 = vmatpush2.xpose.msra.mxu0 0.0
    %333 = vmatprep.subr.mxu0 0.0
    %334 = vmatpush2.xpose.msra.mxu0 0.0
    %335 = vmatprep.subr.mxu0 0.0
    %336 = vmatpush2.xpose.msra.mxu0 0.0
    %337 = vmatprep.subr.mxu0 0.0
    %338 = vmatpush2.xpose.msra.mxu0 0.0
    %339 = vmatprep.subr.mxu0 0.0
    %340 = vmatpush2.xpose.msra.mxu0 0.0
    %341 = vmatprep.subr.mxu0 0.0
    %342 = vmatpush2.xpose.msra.mxu0 0.0
    %343 = vmatprep.subr.mxu0 0.0
    %344 = vmatpush2.xpose.msra.mxu0 0.0
    %345 = vmatprep.subr.mxu0 0.0
    %346 = vmatpush2.xpose.msra.mxu0 0.0
    %347 = vmatprep.subr.mxu0 0.0
    %348 = vmatpush2.xpose.msra.mxu0 0.0
    %349 = vmatprep.subr.mxu0 0.0
    %350 = vmatpush2.xpose.msra.mxu0 0.0
    %351 = vmatprep.subr.mxu0 0.0
    %352 = vmatpush2.xpose.msra.mxu0 0.0
    %353 = vmatprep.subr.mxu0 0.0
    %354 = vmatpush2.xpose.msra.mxu0 0.0
    %355 = vmatprep.subr.mxu0 0.0
    %356 = vmatpush2.xpose.msra.mxu0 0.0
    %357 = vmatprep.subr.mxu0 0.0
    %358 = vmatpush2.xpose.msra.mxu0 0.0
    %359 = vmatprep.subr.mxu0 0.0
    %360 = vmatpush2.xpose.msra.mxu0 0.0
    %v361 = vand.u32 %v78, 4294901760
    %v362 = vsub.f32 %v78, %v361
    %363 = vmatprep.mubr.f32.mxu0 %v362
    %v364 = vand.u32 %v70, 4294901760
    %v365 = vsub.f32 %v70, %v364
    %366 = vmatmul.mubr.f32.gmra.mxu0 %v365
    %v367 = vpop.f32.mrf.mxu0
    %v368 = vadd.f32 %v286, %v367
    %v369 = vpop.f32.mrf.mxu0
    %370 = vdwg.mxu0
    %371 = vmatprep.subr.mxu0 0.0
    %372 = vmatpush1.xpose.msra.mxu0 0.0
    %373 = vmatprep.subr.mxu0 0.0
    %374 = vmatpush1.xpose.msra.mxu0 0.0
    %375 = vmatprep.subr.mxu0 0.0
    %376 = vmatpush1.xpose.msra.mxu0 0.0
    %377 = vmatprep.subr.mxu0 0.0
    %378 = vmatpush1.xpose.msra.mxu0 0.0
    %379 = vmatprep.subr.mxu0 0.0
    %380 = vmatpush1.xpose.msra.mxu0 0.0
    %381 = vmatprep.subr.mxu0 0.0
    %382 = vmatpush1.xpose.msra.mxu0 0.0
    %383 = vmatprep.subr.mxu0 0.0
    %384 = vmatpush1.xpose.msra.mxu0 0.0
    %385 = vmatprep.subr.mxu0 0.0
    %386 = vmatpush1.xpose.msra.mxu0 0.0
    %387 = vmatprep.subr.mxu0 0.0
    %388 = vmatpush1.xpose.msra.mxu0 0.0
    %389 = vmatprep.subr.mxu0 0.0
    %390 = vmatpush1.xpose.msra.mxu0 0.0
    %391 = vmatprep.subr.mxu0 0.0
    %392 = vmatpush1.xpose.msra.mxu0 0.0
    %393 = vmatprep.subr.mxu0 0.0
    %394 = vmatpush1.xpose.msra.mxu0 0.0
    %395 = vmatprep.subr.mxu0 0.0
    %396 = vmatpush1.xpose.msra.mxu0 0.0
    %397 = vmatprep.subr.mxu0 0.0
    %398 = vmatpush1.xpose.msra.mxu0 0.0
    %v399 = vand.u32 %v45, 4294901760
    %400 = vmatprep.subr.mxu0 %v399
    %v401 = vand.u32 %v44, 4294901760
    %402 = vmatpush1.xpose.msra.mxu0 %v401
    %v403 = vand.u32 %v36, 4294901760
    %404 = vmatprep.subr.mxu0 %v403
    %v405 = vand.u32 %v35, 4294901760
    %406 = vmatpush1.xpose.msra.mxu0 %v405
    %407 = vmatprep.subr.mxu0 0.0
    %408 = vmatpush2.xpose.msra.mxu0 0.0
    %409 = vmatprep.subr.mxu0 0.0
    %410 = vmatpush2.xpose.msra.mxu0 0.0
    %411 = vmatprep.subr.mxu0 0.0
    %412 = vmatpush2.xpose.msra.mxu0 0.0
    %413 = vmatprep.subr.mxu0 0.0
    %414 = vmatpush2.xpose.msra.mxu0 0.0
    %415 = vmatprep.subr.mxu0 0.0
    %416 = vmatpush2.xpose.msra.mxu0 0.0
    %417 = vmatprep.subr.mxu0 0.0
    %418 = vmatpush2.xpose.msra.mxu0 0.0
    %419 = vmatprep.subr.mxu0 0.0
    %420 = vmatpush2.xpose.msra.mxu0 0.0
    %421 = vmatprep.subr.mxu0 0.0
    %422 = vmatpush2.xpose.msra.mxu0 0.0
    %423 = vmatprep.subr.mxu0 0.0
    %424 = vmatpush2.xpose.msra.mxu0 0.0
    %425 = vmatprep.subr.mxu0 0.0
    %426 = vmatpush2.xpose.msra.mxu0 0.0
    %427 = vmatprep.subr.mxu0 0.0
    %428 = vmatpush2.xpose.msra.mxu0 0.0
    %429 = vmatprep.subr.mxu0 0.0
    %430 = vmatpush2.xpose.msra.mxu0 0.0
    %431 = vmatprep.subr.mxu0 0.0
    %432 = vmatpush2.xpose.msra.mxu0 0.0
    %433 = vmatprep.subr.mxu0 0.0
    %434 = vmatpush2.xpose.msra.mxu0 0.0
    %435 = vmatprep.subr.mxu0 0.0
    %436 = vmatpush2.xpose.msra.mxu0 0.0
    %437 = vmatprep.subr.mxu0 0.0
    %438 = vmatpush2.xpose.msra.mxu0 0.0
    %v439 = vand.u32 %v78, 4294901760
    %v440 = vsub.f32 %v78, %v439
    %v441 = vand.u32 %v440, 4294901760
    %442 = vmatprep.mubr.f32.mxu0 %v441
    %v443 = vand.u32 %v70, 4294901760
    %v444 = vsub.f32 %v70, %v443
    %v445 = vand.u32 %v444, 4294901760
    %446 = vmatmul.mubr.f32.gmra.mxu0 %v445
    %v447 = vpop.f32.mrf.mxu0
    %v448 = vadd.f32 %v368, %v447
    %v449 = vpop.f32.mrf.mxu0
    %450 = vdwg.mxu0
    %451 = vmatprep.subr.mxu0 0.0
    %452 = vmatpush1.xpose.msra.mxu0 0.0
    %453 = vmatprep.subr.mxu0 0.0
    %454 = vmatpush1.xpose.msra.mxu0 0.0
    %455 = vmatprep.subr.mxu0 0.0
    %456 = vmatpush1.xpose.msra.mxu0 0.0
    %457 = vmatprep.subr.mxu0 0.0
    %458 = vmatpush1.xpose.msra.mxu0 0.0
    %459 = vmatprep.subr.mxu0 0.0
    %460 = vmatpush1.xpose.msra.mxu0 0.0
    %461 = vmatprep.subr.mxu0 0.0
    %462 = vmatpush1.xpose.msra.mxu0 0.0
    %463 = vmatprep.subr.mxu0 0.0
    %464 = vmatpush1.xpose.msra.mxu0 0.0
    %465 = vmatprep.subr.mxu0 0.0
    %466 = vmatpush1.xpose.msra.mxu0 0.0
    %467 = vmatprep.subr.mxu0 0.0
    %468 = vmatpush1.xpose.msra.mxu0 0.0
    %469 = vmatprep.subr.mxu0 0.0
    %470 = vmatpush1.xpose.msra.mxu0 0.0
    %471 = vmatprep.subr.mxu0 0.0
    %472 = vmatpush1.xpose.msra.mxu0 0.0
    %473 = vmatprep.subr.mxu0 0.0
    %474 = vmatpush1.xpose.msra.mxu0 0.0
    %475 = vmatprep.subr.mxu0 0.0
    %476 = vmatpush1.xpose.msra.mxu0 0.0
    %477 = vmatprep.subr.mxu0 0.0
    %478 = vmatpush1.xpose.msra.mxu0 0.0
    %v479 = vand.u32 %v45, 4294901760
    %v480 = vsub.f32 %v45, %v479
    %v481 = vand.u32 %v480, 4294901760
    %482 = vmatprep.subr.mxu0 %v481
    %v483 = vand.u32 %v44, 4294901760
    %v484 = vsub.f32 %v44, %v483
    %v485 = vand.u32 %v484, 4294901760
    %486 = vmatpush1.xpose.msra.mxu0 %v485
    %v487 = vand.u32 %v36, 4294901760
    %v488 = vsub.f32 %v36, %v487
    %v489 = vand.u32 %v488, 4294901760
    %490 = vmatprep.subr.mxu0 %v489
    %v491 = vand.u32 %v35, 4294901760
    %v492 = vsub.f32 %v35, %v491
    %v493 = vand.u32 %v492, 4294901760
    %494 = vmatpush1.xpose.msra.mxu0 %v493
    %495 = vmatprep.subr.mxu0 0.0
    %496 = vmatpush2.xpose.msra.mxu0 0.0
    %497 = vmatprep.subr.mxu0 0.0
    %498 = vmatpush2.xpose.msra.mxu0 0.0
    %499 = vmatprep.subr.mxu0 0.0
    %500 = vmatpush2.xpose.msra.mxu0 0.0
    %501 = vmatprep.subr.mxu0 0.0
    %502 = vmatpush2.xpose.msra.mxu0 0.0
    %503 = vmatprep.subr.mxu0 0.0
    %504 = vmatpush2.xpose.msra.mxu0 0.0
    %505 = vmatprep.subr.mxu0 0.0
    %506 = vmatpush2.xpose.msra.mxu0 0.0
    %507 = vmatprep.subr.mxu0 0.0
    %508 = vmatpush2.xpose.msra.mxu0 0.0
    %509 = vmatprep.subr.mxu0 0.0
    %510 = vmatpush2.xpose.msra.mxu0 0.0
    %511 = vmatprep.subr.mxu0 0.0
    %512 = vmatpush2.xpose.msra.mxu0 0.0
    %513 = vmatprep.subr.mxu0 0.0
    %514 = vmatpush2.xpose.msra.mxu0 0.0
    %515 = vmatprep.subr.mxu0 0.0
    %516 = vmatpush2.xpose.msra.mxu0 0.0
    %517 = vmatprep.subr.mxu0 0.0
    %518 = vmatpush2.xpose.msra.mxu0 0.0
    %519 = vmatprep.subr.mxu0 0.0
    %520 = vmatpush2.xpose.msra.mxu0 0.0
    %521 = vmatprep.subr.mxu0 0.0
    %522 = vmatpush2.xpose.msra.mxu0 0.0
    %523 = vmatprep.subr.mxu0 0.0
    %524 = vmatpush2.xpose.msra.mxu0 0.0
    %525 = vmatprep.subr.mxu0 0.0
    %526 = vmatpush2.xpose.msra.mxu0 0.0
    %v527 = vand.u32 %v78, 4294901760
    %528 = vmatprep.mubr.f32.mxu0 %v527
    %v529 = vand.u32 %v70, 4294901760
    %530 = vmatmul.mubr.f32.gmra.mxu0 %v529
    %v531 = vpop.f32.mrf.mxu0
    %v532 = vadd.f32 %v448, %v531
    %v533 = vpop.f32.mrf.mxu0
    %534 = vdwg.mxu0
    %535 = vmatprep.subr.mxu0 0.0
    %536 = vmatpush1.xpose.msra.mxu0 0.0
    %537 = vmatprep.subr.mxu0 0.0
    %538 = vmatpush1.xpose.msra.mxu0 0.0
    %539 = vmatprep.subr.mxu0 0.0
    %540 = vmatpush1.xpose.msra.mxu0 0.0
    %541 = vmatprep.subr.mxu0 0.0
    %542 = vmatpush1.xpose.msra.mxu0 0.0
    %543 = vmatprep.subr.mxu0 0.0
    %544 = vmatpush1.xpose.msra.mxu0 0.0
    %545 = vmatprep.subr.mxu0 0.0
    %546 = vmatpush1.xpose.msra.mxu0 0.0
    %547 = vmatprep.subr.mxu0 0.0
    %548 = vmatpush1.xpose.msra.mxu0 0.0
    %549 = vmatprep.subr.mxu0 0.0
    %550 = vmatpush1.xpose.msra.mxu0 0.0
    %551 = vmatprep.subr.mxu0 0.0
    %552 = vmatpush1.xpose.msra.mxu0 0.0
    %553 = vmatprep.subr.mxu0 0.0
    %554 = vmatpush1.xpose.msra.mxu0 0.0
    %555 = vmatprep.subr.mxu0 0.0
    %556 = vmatpush1.xpose.msra.mxu0 0.0
    %557 = vmatprep.subr.mxu0 0.0
    %558 = vmatpush1.xpose.msra.mxu0 0.0
    %559 = vmatprep.subr.mxu0 0.0
    %560 = vmatpush1.xpose.msra.mxu0 0.0
    %561 = vmatprep.subr.mxu0 0.0
    %562 = vmatpush1.xpose.msra.mxu0 0.0
    %v563 = vand.u32 %v45, 4294901760
    %564 = vmatprep.subr.mxu0 %v563
    %v565 = vand.u32 %v44, 4294901760
    %566 = vmatpush1.xpose.msra.mxu0 %v565
    %v567 = vand.u32 %v36, 4294901760
    %568 = vmatprep.subr.mxu0 %v567
    %v569 = vand.u32 %v35, 4294901760
    %570 = vmatpush1.xpose.msra.mxu0 %v569
    %571 = vmatprep.subr.mxu0 0.0
    %572 = vmatpush2.xpose.msra.mxu0 0.0
    %573 = vmatprep.subr.mxu0 0.0
    %574 = vmatpush2.xpose.msra.mxu0 0.0
    %575 = vmatprep.subr.mxu0 0.0
    %576 = vmatpush2.xpose.msra.mxu0 0.0
    %577 = vmatprep.subr.mxu0 0.0
    %578 = vmatpush2.xpose.msra.mxu0 0.0
    %579 = vmatprep.subr.mxu0 0.0
    %580 = vmatpush2.xpose.msra.mxu0 0.0
    %581 = vmatprep.subr.mxu0 0.0
    %582 = vmatpush2.xpose.msra.mxu0 0.0
    %583 = vmatprep.subr.mxu0 0.0
    %584 = vmatpush2.xpose.msra.mxu0 0.0
    %585 = vmatprep.subr.mxu0 0.0
    %586 = vmatpush2.xpose.msra.mxu0 0.0
    %587 = vmatprep.subr.mxu0 0.0
    %588 = vmatpush2.xpose.msra.mxu0 0.0
    %589 = vmatprep.subr.mxu0 0.0
    %590 = vmatpush2.xpose.msra.mxu0 0.0
    %591 = vmatprep.subr.mxu0 0.0
    %592 = vmatpush2.xpose.msra.mxu0 0.0
    %593 = vmatprep.subr.mxu0 0.0
    %594 = vmatpush2.xpose.msra.mxu0 0.0
    %595 = vmatprep.subr.mxu0 0.0
    %596 = vmatpush2.xpose.msra.mxu0 0.0
    %597 = vmatprep.subr.mxu0 0.0
    %598 = vmatpush2.xpose.msra.mxu0 0.0
    %599 = vmatprep.subr.mxu0 0.0
    %600 = vmatpush2.xpose.msra.mxu0 0.0
    %601 = vmatprep.subr.mxu0 0.0
    %602 = vmatpush2.xpose.msra.mxu0 0.0
    %v603 = vand.u32 %v78, 4294901760
    %604 = vmatprep.mubr.f32.mxu0 %v603
    %v605 = vand.u32 %v70, 4294901760
    %606 = vmatmul.mubr.f32.gmra.mxu0 %v605
    %v607 = vpop.f32.mrf.mxu0
    %v608 = vadd.f32 %v532, %v607
    %v609 = vpop.f32.mrf.mxu0
    %610 = vdwg.mxu0
    %611 = vmatprep.subr.mxu0 0.0
    %612 = vmatpush1.xpose.msra.mxu0 0.0
    %613 = vmatprep.subr.mxu0 0.0
    %614 = vmatpush1.xpose.msra.mxu0 0.0
    %615 = vmatprep.subr.mxu0 0.0
    %616 = vmatpush1.xpose.msra.mxu0 0.0
    %617 = vmatprep.subr.mxu0 0.0
    %618 = vmatpush1.xpose.msra.mxu0 0.0
    %619 = vmatprep.subr.mxu0 0.0
    %620 = vmatpush1.xpose.msra.mxu0 0.0
    %621 = vmatprep.subr.mxu0 0.0
    %622 = vmatpush1.xpose.msra.mxu0 0.0
    %623 = vmatprep.subr.mxu0 0.0
    %624 = vmatpush1.xpose.msra.mxu0 0.0
    %625 = vmatprep.subr.mxu0 0.0
    %626 = vmatpush1.xpose.msra.mxu0 0.0
    %627 = vmatprep.subr.mxu0 0.0
    %628 = vmatpush1.xpose.msra.mxu0 0.0
    %629 = vmatprep.subr.mxu0 0.0
    %630 = vmatpush1.xpose.msra.mxu0 0.0
    %631 = vmatprep.subr.mxu0 0.0
    %632 = vmatpush1.xpose.msra.mxu0 0.0
    %633 = vmatprep.subr.mxu0 0.0
    %634 = vmatpush1.xpose.msra.mxu0 0.0
    %635 = vmatprep.subr.mxu0 0.0
    %636 = vmatpush1.xpose.msra.mxu0 0.0
    %637 = vmatprep.subr.mxu0 0.0
    %638 = vmatpush1.xpose.msra.mxu0 0.0
    %v639 = vand.u32 %v47, 4294901760
    %640 = vmatprep.subr.mxu0 %v639
    %v641 = vand.u32 %v46, 4294901760
    %642 = vmatpush1.xpose.msra.mxu0 %v641
    %v643 = vand.u32 %v38, 4294901760
    %644 = vmatprep.subr.mxu0 %v643
    %v645 = vand.u32 %v37, 4294901760
    %646 = vmatpush1.xpose.msra.mxu0 %v645
    %647 = vmatprep.subr.mxu0 0.0
    %648 = vmatpush2.xpose.msra.mxu0 0.0
    %649 = vmatprep.subr.mxu0 0.0
    %650 = vmatpush2.xpose.msra.mxu0 0.0
    %651 = vmatprep.subr.mxu0 0.0
    %652 = vmatpush2.xpose.msra.mxu0 0.0
    %653 = vmatprep.subr.mxu0 0.0
    %654 = vmatpush2.xpose.msra.mxu0 0.0
    %655 = vmatprep.subr.mxu0 0.0
    %656 = vmatpush2.xpose.msra.mxu0 0.0
    %657 = vmatprep.subr.mxu0 0.0
    %658 = vmatpush2.xpose.msra.mxu0 0.0
    %659 = vmatprep.subr.mxu0 0.0
    %660 = vmatpush2.xpose.msra.mxu0 0.0
    %661 = vmatprep.subr.mxu0 0.0
    %662 = vmatpush2.xpose.msra.mxu0 0.0
    %663 = vmatprep.subr.mxu0 0.0
    %664 = vmatpush2.xpose.msra.mxu0 0.0
    %665 = vmatprep.subr.mxu0 0.0
    %666 = vmatpush2.xpose.msra.mxu0 0.0
    %667 = vmatprep.subr.mxu0 0.0
    %668 = vmatpush2.xpose.msra.mxu0 0.0
    %669 = vmatprep.subr.mxu0 0.0
    %670 = vmatpush2.xpose.msra.mxu0 0.0
    %671 = vmatprep.subr.mxu0 0.0
    %672 = vmatpush2.xpose.msra.mxu0 0.0
    %673 = vmatprep.subr.mxu0 0.0
    %674 = vmatpush2.xpose.msra.mxu0 0.0
    %675 = vmatprep.subr.mxu0 0.0
    %676 = vmatpush2.xpose.msra.mxu0 0.0
    %677 = vmatprep.subr.mxu0 0.0
    %678 = vmatpush2.xpose.msra.mxu0 0.0
    %v679 = vand.u32 %v79, 4294901760
    %v680 = vsub.f32 %v79, %v679
    %v681 = vand.u32 %v680, 4294901760
    %v682 = vsub.f32 %v680, %v681
    %v683 = vand.u32 %v682, 4294901760
    %684 = vmatprep.mubr.f32.mxu0 %v683
    %v685 = vand.u32 %v77, 4294901760
    %v686 = vsub.f32 %v77, %v685
    %v687 = vand.u32 %v686, 4294901760
    %v688 = vsub.f32 %v686, %v687
    %v689 = vand.u32 %v688, 4294901760
    %690 = vmatmul.mubr.f32.gmra.mxu0 %v689
    %v691 = vpop.f32.mrf.mxu0
    %v692 = vadd.f32 %v608, %v691
    %v693 = vpop.f32.mrf.mxu0
    %694 = vdwg.mxu0
    %695 = vmatprep.subr.mxu0 0.0
    %696 = vmatpush1.xpose.msra.mxu0 0.0
    %697 = vmatprep.subr.mxu0 0.0
    %698 = vmatpush1.xpose.msra.mxu0 0.0
    %699 = vmatprep.subr.mxu0 0.0
    %700 = vmatpush1.xpose.msra.mxu0 0.0
    %701 = vmatprep.subr.mxu0 0.0
    %702 = vmatpush1.xpose.msra.mxu0 0.0
    %703 = vmatprep.subr.mxu0 0.0
    %704 = vmatpush1.xpose.msra.mxu0 0.0
    %705 = vmatprep.subr.mxu0 0.0
    %706 = vmatpush1.xpose.msra.mxu0 0.0
    %707 = vmatprep.subr.mxu0 0.0
    %708 = vmatpush1.xpose.msra.mxu0 0.0
    %709 = vmatprep.subr.mxu0 0.0
    %710 = vmatpush1.xpose.msra.mxu0 0.0
    %711 = vmatprep.subr.mxu0 0.0
    %712 = vmatpush1.xpose.msra.mxu0 0.0
    %713 = vmatprep.subr.mxu0 0.0
    %714 = vmatpush1.xpose.msra.mxu0 0.0
    %715 = vmatprep.subr.mxu0 0.0
    %716 = vmatpush1.xpose.msra.mxu0 0.0
    %717 = vmatprep.subr.mxu0 0.0
    %718 = vmatpush1.xpose.msra.mxu0 0.0
    %719 = vmatprep.subr.mxu0 0.0
    %720 = vmatpush1.xpose.msra.mxu0 0.0
    %721 = vmatprep.subr.mxu0 0.0
    %722 = vmatpush1.xpose.msra.mxu0 0.0
    %v723 = vand.u32 %v47, 4294901760
    %v724 = vsub.f32 %v47, %v723
    %v725 = vand.u32 %v724, 4294901760
    %v726 = vsub.f32 %v724, %v725
    %v727 = vand.u32 %v726, 4294901760
    %728 = vmatprep.subr.mxu0 %v727
    %v729 = vand.u32 %v46, 4294901760
    %v730 = vsub.f32 %v46, %v729
    %v731 = vand.u32 %v730, 4294901760
    %v732 = vsub.f32 %v730, %v731
    %v733 = vand.u32 %v732, 4294901760
    %734 = vmatpush1.xpose.msra.mxu0 %v733
    %v735 = vand.u32 %v38, 4294901760
    %v736 = vsub.f32 %v38, %v735
    %v737 = vand.u32 %v736, 4294901760
    %v738 = vsub.f32 %v736, %v737
    %v739 = vand.u32 %v738, 4294901760
    %740 = vmatprep.subr.mxu0 %v739
    %v741 = vand.u32 %v37, 4294901760
    %v742 = vsub.f32 %v37, %v741
    %v743 = vand.u32 %v742, 4294901760
    %v744 = vsub.f32 %v742, %v743
    %v745 = vand.u32 %v744, 4294901760
    %746 = vmatpush1.xpose.msra.mxu0 %v745
    %747 = vmatprep.subr.mxu0 0.0
    %748 = vmatpush2.xpose.msra.mxu0 0.0
    %749 = vmatprep.subr.mxu0 0.0
    %750 = vmatpush2.xpose.msra.mxu0 0.0
    %751 = vmatprep.subr.mxu0 0.0
    %752 = vmatpush2.xpose.msra.mxu0 0.0
    %753 = vmatprep.subr.mxu0 0.0
    %754 = vmatpush2.xpose.msra.mxu0 0.0
    %755 = vmatprep.subr.mxu0 0.0
    %756 = vmatpush2.xpose.msra.mxu0 0.0
    %757 = vmatprep.subr.mxu0 0.0
    %758 = vmatpush2.xpose.msra.mxu0 0.0
    %759 = vmatprep.subr.mxu0 0.0
    %760 = vmatpush2.xpose.msra.mxu0 0.0
    %761 = vmatprep.subr.mxu0 0.0
    %762 = vmatpush2.xpose.msra.mxu0 0.0
    %763 = vmatprep.subr.mxu0 0.0
    %764 = vmatpush2.xpose.msra.mxu0 0.0
    %765 = vmatprep.subr.mxu0 0.0
    %766 = vmatpush2.xpose.msra.mxu0 0.0
    %767 = vmatprep.subr.mxu0 0.0
    %768 = vmatpush2.xpose.msra.mxu0 0.0
    %769 = vmatprep.subr.mxu0 0.0
    %770 = vmatpush2.xpose.msra.mxu0 0.0
    %771 = vmatprep.subr.mxu0 0.0
    %772 = vmatpush2.xpose.msra.mxu0 0.0
    %773 = vmatprep.subr.mxu0 0.0
    %774 = vmatpush2.xpose.msra.mxu0 0.0
    %775 = vmatprep.subr.mxu0 0.0
    %776 = vmatpush2.xpose.msra.mxu0 0.0
    %777 = vmatprep.subr.mxu0 0.0
    %778 = vmatpush2.xpose.msra.mxu0 0.0
    %v779 = vand.u32 %v79, 4294901760
    %780 = vmatprep.mubr.f32.mxu0 %v779
    %v781 = vand.u32 %v77, 4294901760
    %782 = vmatmul.mubr.f32.gmra.mxu0 %v781
    %v783 = vpop.f32.mrf.mxu0
    %v784 = vadd.f32 %v692, %v783
    %v785 = vpop.f32.mrf.mxu0
    %786 = vdwg.mxu0
    %787 = vmatprep.subr.mxu0 0.0
    %788 = vmatpush1.xpose.msra.mxu0 0.0
    %789 = vmatprep.subr.mxu0 0.0
    %790 = vmatpush1.xpose.msra.mxu0 0.0
    %791 = vmatprep.subr.mxu0 0.0
    %792 = vmatpush1.xpose.msra.mxu0 0.0
    %793 = vmatprep.subr.mxu0 0.0
    %794 = vmatpush1.xpose.msra.mxu0 0.0
    %795 = vmatprep.subr.mxu0 0.0
    %796 = vmatpush1.xpose.msra.mxu0 0.0
    %797 = vmatprep.subr.mxu0 0.0
    %798 = vmatpush1.xpose.msra.mxu0 0.0
    %799 = vmatprep.subr.mxu0 0.0
    %800 = vmatpush1.xpose.msra.mxu0 0.0
    %801 = vmatprep.subr.mxu0 0.0
    %802 = vmatpush1.xpose.msra.mxu0 0.0
    %803 = vmatprep.subr.mxu0 0.0
    %804 = vmatpush1.xpose.msra.mxu0 0.0
    %805 = vmatprep.subr.mxu0 0.0
    %806 = vmatpush1.xpose.msra.mxu0 0.0
    %807 = vmatprep.subr.mxu0 0.0
    %808 = vmatpush1.xpose.msra.mxu0 0.0
    %809 = vmatprep.subr.mxu0 0.0
    %810 = vmatpush1.xpose.msra.mxu0 0.0
    %811 = vmatprep.subr.mxu0 0.0
    %812 = vmatpush1.xpose.msra.mxu0 0.0
    %813 = vmatprep.subr.mxu0 0.0
    %814 = vmatpush1.xpose.msra.mxu0 0.0
    %v815 = vand.u32 %v47, 4294901760
    %v816 = vsub.f32 %v47, %v815
    %817 = vmatprep.subr.mxu0 %v816
    %v818 = vand.u32 %v46, 4294901760
    %v819 = vsub.f32 %v46, %v818
    %820 = vmatpush1.xpose.msra.mxu0 %v819
    %v821 = vand.u32 %v38, 4294901760
    %v822 = vsub.f32 %v38, %v821
    %823 = vmatprep.subr.mxu0 %v822
    %v824 = vand.u32 %v37, 4294901760
    %v825 = vsub.f32 %v37, %v824
    %826 = vmatpush1.xpose.msra.mxu0 %v825
    %827 = vmatprep.subr.mxu0 0.0
    %828 = vmatpush2.xpose.msra.mxu0 0.0
    %829 = vmatprep.subr.mxu0 0.0
    %830 = vmatpush2.xpose.msra.mxu0 0.0
    %831 = vmatprep.subr.mxu0 0.0
    %832 = vmatpush2.xpose.msra.mxu0 0.0
    %833 = vmatprep.subr.mxu0 0.0
    %834 = vmatpush2.xpose.msra.mxu0 0.0
    %835 = vmatprep.subr.mxu0 0.0
    %836 = vmatpush2.xpose.msra.mxu0 0.0
    %837 = vmatprep.subr.mxu0 0.0
    %838 = vmatpush2.xpose.msra.mxu0 0.0
    %839 = vmatprep.subr.mxu0 0.0
    %840 = vmatpush2.xpose.msra.mxu0 0.0
    %841 = vmatprep.subr.mxu0 0.0
    %842 = vmatpush2.xpose.msra.mxu0 0.0
    %843 = vmatprep.subr.mxu0 0.0
    %844 = vmatpush2.xpose.msra.mxu0 0.0
    %845 = vmatprep.subr.mxu0 0.0
    %846 = vmatpush2.xpose.msra.mxu0 0.0
    %847 = vmatprep.subr.mxu0 0.0
    %848 = vmatpush2.xpose.msra.mxu0 0.0
    %849 = vmatprep.subr.mxu0 0.0
    %850 = vmatpush2.xpose.msra.mxu0 0.0
    %851 = vmatprep.subr.mxu0 0.0
    %852 = vmatpush2.xpose.msra.mxu0 0.0
    %853 = vmatprep.subr.mxu0 0.0
    %854 = vmatpush2.xpose.msra.mxu0 0.0
    %855 = vmatprep.subr.mxu0 0.0
    %856 = vmatpush2.xpose.msra.mxu0 0.0
    %857 = vmatprep.subr.mxu0 0.0
    %858 = vmatpush2.xpose.msra.mxu0 0.0
    %v859 = vand.u32 %v79, 4294901760
    %v860 = vsub.f32 %v79, %v859
    %861 = vmatprep.mubr.f32.mxu0 %v860
    %v862 = vand.u32 %v77, 4294901760
    %v863 = vsub.f32 %v77, %v862
    %864 = vmatmul.mubr.f32.gmra.mxu0 %v863
    %v865 = vpop.f32.mrf.mxu0
    %v866 = vadd.f32 %v784, %v865
    %v867 = vpop.f32.mrf.mxu0
    %868 = vdwg.mxu0
    %869 = vmatprep.subr.mxu0 0.0
    %870 = vmatpush1.xpose.msra.mxu0 0.0
    %871 = vmatprep.subr.mxu0 0.0
    %872 = vmatpush1.xpose.msra.mxu0 0.0
    %873 = vmatprep.subr.mxu0 0.0
    %874 = vmatpush1.xpose.msra.mxu0 0.0
    %875 = vmatprep.subr.mxu0 0.0
    %876 = vmatpush1.xpose.msra.mxu0 0.0
    %877 = vmatprep.subr.mxu0 0.0
    %878 = vmatpush1.xpose.msra.mxu0 0.0
    %879 = vmatprep.subr.mxu0 0.0
    %880 = vmatpush1.xpose.msra.mxu0 0.0
    %881 = vmatprep.subr.mxu0 0.0
    %882 = vmatpush1.xpose.msra.mxu0 0.0
    %883 = vmatprep.subr.mxu0 0.0
    %884 = vmatpush1.xpose.msra.mxu0 0.0
    %885 = vmatprep.subr.mxu0 0.0
    %886 = vmatpush1.xpose.msra.mxu0 0.0
    %887 = vmatprep.subr.mxu0 0.0
    %888 = vmatpush1.xpose.msra.mxu0 0.0
    %889 = vmatprep.subr.mxu0 0.0
    %890 = vmatpush1.xpose.msra.mxu0 0.0
    %891 = vmatprep.subr.mxu0 0.0
    %892 = vmatpush1.xpose.msra.mxu0 0.0
    %893 = vmatprep.subr.mxu0 0.0
    %894 = vmatpush1.xpose.msra.mxu0 0.0
    %895 = vmatprep.subr.mxu0 0.0
    %896 = vmatpush1.xpose.msra.mxu0 0.0
    %v897 = vand.u32 %v47, 4294901760
    %898 = vmatprep.subr.mxu0 %v897
    %v899 = vand.u32 %v46, 4294901760
    %900 = vmatpush1.xpose.msra.mxu0 %v899
    %v901 = vand.u32 %v38, 4294901760
    %902 = vmatprep.subr.mxu0 %v901
    %v903 = vand.u32 %v37, 4294901760
    %904 = vmatpush1.xpose.msra.mxu0 %v903
    %905 = vmatprep.subr.mxu0 0.0
    %906 = vmatpush2.xpose.msra.mxu0 0.0
    %907 = vmatprep.subr.mxu0 0.0
    %908 = vmatpush2.xpose.msra.mxu0 0.0
    %909 = vmatprep.subr.mxu0 0.0
    %910 = vmatpush2.xpose.msra.mxu0 0.0
    %911 = vmatprep.subr.mxu0 0.0
    %912 = vmatpush2.xpose.msra.mxu0 0.0
    %913 = vmatprep.subr.mxu0 0.0
    %914 = vmatpush2.xpose.msra.mxu0 0.0
    %915 = vmatprep.subr.mxu0 0.0
    %916 = vmatpush2.xpose.msra.mxu0 0.0
    %917 = vmatprep.subr.mxu0 0.0
    %918 = vmatpush2.xpose.msra.mxu0 0.0
    %919 = vmatprep.subr.mxu0 0.0
    %920 = vmatpush2.xpose.msra.mxu0 0.0
    %921 = vmatprep.subr.mxu0 0.0
    %922 = vmatpush2.xpose.msra.mxu0 0.0
    %923 = vmatprep.subr.mxu0 0.0
    %924 = vmatpush2.xpose.msra.mxu0 0.0
    %925 = vmatprep.subr.mxu0 0.0
    %926 = vmatpush2.xpose.msra.mxu0 0.0
    %927 = vmatprep.subr.mxu0 0.0
    %928 = vmatpush2.xpose.msra.mxu0 0.0
    %929 = vmatprep.subr.mxu0 0.0
    %930 = vmatpush2.xpose.msra.mxu0 0.0
    %931 = vmatprep.subr.mxu0 0.0
    %932 = vmatpush2.xpose.msra.mxu0 0.0
    %933 = vmatprep.subr.mxu0 0.0
    %934 = vmatpush2.xpose.msra.mxu0 0.0
    %935 = vmatprep.subr.mxu0 0.0
    %936 = vmatpush2.xpose.msra.mxu0 0.0
    %v937 = vand.u32 %v79, 4294901760
    %v938 = vsub.f32 %v79, %v937
    %v939 = vand.u32 %v938, 4294901760
    %940 = vmatprep.mubr.f32.mxu0 %v939
    %v941 = vand.u32 %v77, 4294901760
    %v942 = vsub.f32 %v77, %v941
    %v943 = vand.u32 %v942, 4294901760
    %944 = vmatmul.mubr.f32.gmra.mxu0 %v943
    %v945 = vpop.f32.mrf.mxu0
    %v946 = vadd.f32 %v866, %v945
    %v947 = vpop.f32.mrf.mxu0
    %948 = vdwg.mxu0
    %949 = vmatprep.subr.mxu0 0.0
    %950 = vmatpush1.xpose.msra.mxu0 0.0
    %951 = vmatprep.subr.mxu0 0.0
    %952 = vmatpush1.xpose.msra.mxu0 0.0
    %953 = vmatprep.subr.mxu0 0.0
    %954 = vmatpush1.xpose.msra.mxu0 0.0
    %955 = vmatprep.subr.mxu0 0.0
    %956 = vmatpush1.xpose.msra.mxu0 0.0
    %957 = vmatprep.subr.mxu0 0.0
    %958 = vmatpush1.xpose.msra.mxu0 0.0
    %959 = vmatprep.subr.mxu0 0.0
    %960 = vmatpush1.xpose.msra.mxu0 0.0
    %961 = vmatprep.subr.mxu0 0.0
    %962 = vmatpush1.xpose.msra.mxu0 0.0
    %963 = vmatprep.subr.mxu0 0.0
    %964 = vmatpush1.xpose.msra.mxu0 0.0
    %965 = vmatprep.subr.mxu0 0.0
    %966 = vmatpush1.xpose.msra.mxu0 0.0
    %967 = vmatprep.subr.mxu0 0.0
    %968 = vmatpush1.xpose.msra.mxu0 0.0
    %969 = vmatprep.subr.mxu0 0.0
    %970 = vmatpush1.xpose.msra.mxu0 0.0
    %971 = vmatprep.subr.mxu0 0.0
    %972 = vmatpush1.xpose.msra.mxu0 0.0
    %973 = vmatprep.subr.mxu0 0.0
    %974 = vmatpush1.xpose.msra.mxu0 0.0
    %975 = vmatprep.subr.mxu0 0.0
    %976 = vmatpush1.xpose.msra.mxu0 0.0
    %v977 = vand.u32 %v47, 4294901760
    %v978 = vsub.f32 %v47, %v977
    %v979 = vand.u32 %v978, 4294901760
    %980 = vmatprep.subr.mxu0 %v979
    %v981 = vand.u32 %v46, 4294901760
    %v982 = vsub.f32 %v46, %v981
    %v983 = vand.u32 %v982, 4294901760
    %984 = vmatpush1.xpose.msra.mxu0 %v983
    %v985 = vand.u32 %v38, 4294901760
    %v986 = vsub.f32 %v38, %v985
    %v987 = vand.u32 %v986, 4294901760
    %988 = vmatprep.subr.mxu0 %v987
    %v989 = vand.u32 %v37, 4294901760
    %v990 = vsub.f32 %v37, %v989
    %v991 = vand.u32 %v990, 4294901760
    %992 = vmatpush1.xpose.msra.mxu0 %v991
    %993 = vmatprep.subr.mxu0 0.0
    %994 = vmatpush2.xpose.msra.mxu0 0.0
    %995 = vmatprep.subr.mxu0 0.0
    %996 = vmatpush2.xpose.msra.mxu0 0.0
    %997 = vmatprep.subr.mxu0 0.0
    %998 = vmatpush2.xpose.msra.mxu0 0.0
    %999 = vmatprep.subr.mxu0 0.0
    %1000 = vmatpush2.xpose.msra.mxu0 0.0
    %1001 = vmatprep.subr.mxu0 0.0
    %1002 = vmatpush2.xpose.msra.mxu0 0.0
    %1003 = vmatprep.subr.mxu0 0.0
    %1004 = vmatpush2.xpose.msra.mxu0 0.0
    %1005 = vmatprep.subr.mxu0 0.0
    %1006 = vmatpush2.xpose.msra.mxu0 0.0
    %1007 = vmatprep.subr.mxu0 0.0
    %1008 = vmatpush2.xpose.msra.mxu0 0.0
    %1009 = vmatprep.subr.mxu0 0.0
    %1010 = vmatpush2.xpose.msra.mxu0 0.0
    %1011 = vmatprep.subr.mxu0 0.0
    %1012 = vmatpush2.xpose.msra.mxu0 0.0
    %1013 = vmatprep.subr.mxu0 0.0
    %1014 = vmatpush2.xpose.msra.mxu0 0.0
    %1015 = vmatprep.subr.mxu0 0.0
    %1016 = vmatpush2.xpose.msra.mxu0 0.0
    %1017 = vmatprep.subr.mxu0 0.0
    %1018 = vmatpush2.xpose.msra.mxu0 0.0
    %1019 = vmatprep.subr.mxu0 0.0
    %1020 = vmatpush2.xpose.msra.mxu0 0.0
    %1021 = vmatprep.subr.mxu0 0.0
    %1022 = vmatpush2.xpose.msra.mxu0 0.0
    %1023 = vmatprep.subr.mxu0 0.0
    %1024 = vmatpush2.xpose.msra.mxu0 0.0
    %v1025 = vand.u32 %v79, 4294901760
    %1026 = vmatprep.mubr.f32.mxu0 %v1025
    %v1027 = vand.u32 %v77, 4294901760
    %1028 = vmatmul.mubr.f32.gmra.mxu0 %v1027
    %v1029 = vpop.f32.mrf.mxu0
    %v1030 = vadd.f32 %v946, %v1029
    %v1031 = vpop.f32.mrf.mxu0
    %1032 = vdwg.mxu0
    %1033 = vmatprep.subr.mxu0 0.0
    %1034 = vmatpush1.xpose.msra.mxu0 0.0
    %1035 = vmatprep.subr.mxu0 0.0
    %1036 = vmatpush1.xpose.msra.mxu0 0.0
    %1037 = vmatprep.subr.mxu0 0.0
    %1038 = vmatpush1.xpose.msra.mxu0 0.0
    %1039 = vmatprep.subr.mxu0 0.0
    %1040 = vmatpush1.xpose.msra.mxu0 0.0
    %1041 = vmatprep.subr.mxu0 0.0
    %1042 = vmatpush1.xpose.msra.mxu0 0.0
    %1043 = vmatprep.subr.mxu0 0.0
    %1044 = vmatpush1.xpose.msra.mxu0 0.0
    %1045 = vmatprep.subr.mxu0 0.0
    %1046 = vmatpush1.xpose.msra.mxu0 0.0
    %1047 = vmatprep.subr.mxu0 0.0
    %1048 = vmatpush1.xpose.msra.mxu0 0.0
    %1049 = vmatprep.subr.mxu0 0.0
    %1050 = vmatpush1.xpose.msra.mxu0 0.0
    %1051 = vmatprep.subr.mxu0 0.0
    %1052 = vmatpush1.xpose.msra.mxu0 0.0
    %1053 = vmatprep.subr.mxu0 0.0
    %1054 = vmatpush1.xpose.msra.mxu0 0.0
    %1055 = vmatprep.subr.mxu0 0.0
    %1056 = vmatpush1.xpose.msra.mxu0 0.0
    %1057 = vmatprep.subr.mxu0 0.0
    %1058 = vmatpush1.xpose.msra.mxu0 0.0
    %1059 = vmatprep.subr.mxu0 0.0
    %1060 = vmatpush1.xpose.msra.mxu0 0.0
    %v1061 = vand.u32 %v47, 4294901760
    %1062 = vmatprep.subr.mxu0 %v1061
    %v1063 = vand.u32 %v46, 4294901760
    %1064 = vmatpush1.xpose.msra.mxu0 %v1063
    %v1065 = vand.u32 %v38, 4294901760
    %1066 = vmatprep.subr.mxu0 %v1065
    %v1067 = vand.u32 %v37, 4294901760
    %1068 = vmatpush1.xpose.msra.mxu0 %v1067
    %1069 = vmatprep.subr.mxu0 0.0
    %1070 = vmatpush2.xpose.msra.mxu0 0.0
    %1071 = vmatprep.subr.mxu0 0.0
    %1072 = vmatpush2.xpose.msra.mxu0 0.0
    %1073 = vmatprep.subr.mxu0 0.0
    %1074 = vmatpush2.xpose.msra.mxu0 0.0
    %1075 = vmatprep.subr.mxu0 0.0
    %1076 = vmatpush2.xpose.msra.mxu0 0.0
    %1077 = vmatprep.subr.mxu0 0.0
    %1078 = vmatpush2.xpose.msra.mxu0 0.0
    %1079 = vmatprep.subr.mxu0 0.0
    %1080 = vmatpush2.xpose.msra.mxu0 0.0
    %1081 = vmatprep.subr.mxu0 0.0
    %1082 = vmatpush2.xpose.msra.mxu0 0.0
    %1083 = vmatprep.subr.mxu0 0.0
    %1084 = vmatpush2.xpose.msra.mxu0 0.0
    %1085 = vmatprep.subr.mxu0 0.0
    %1086 = vmatpush2.xpose.msra.mxu0 0.0
    %1087 = vmatprep.subr.mxu0 0.0
    %1088 = vmatpush2.xpose.msra.mxu0 0.0
    %1089 = vmatprep.subr.mxu0 0.0
    %1090 = vmatpush2.xpose.msra.mxu0 0.0
    %1091 = vmatprep.subr.mxu0 0.0
    %1092 = vmatpush2.xpose.msra.mxu0 0.0
    %1093 = vmatprep.subr.mxu0 0.0
    %1094 = vmatpush2.xpose.msra.mxu0 0.0
    %1095 = vmatprep.subr.mxu0 0.0
    %1096 = vmatpush2.xpose.msra.mxu0 0.0
    %1097 = vmatprep.subr.mxu0 0.0
    %1098 = vmatpush2.xpose.msra.mxu0 0.0
    %1099 = vmatprep.subr.mxu0 0.0
    %1100 = vmatpush2.xpose.msra.mxu0 0.0
    %v1101 = vand.u32 %v79, 4294901760
    %1102 = vmatprep.mubr.f32.mxu0 %v1101
    %v1103 = vand.u32 %v77, 4294901760
    %1104 = vmatmul.mubr.f32.gmra.mxu0 %v1103
    %v1105 = vpop.f32.mrf.mxu0
    %v1106 = vadd.f32 %v1030, %v1105
    %v1107 = vpop.f32.mrf.mxu0
    %1108 = vdwg.mxu0
    %1109 = vmatprep.subr.mxu0 0.0
    %1110 = vmatpush1.xpose.msra.mxu0 0.0
    %1111 = vmatprep.subr.mxu0 0.0
    %1112 = vmatpush1.xpose.msra.mxu0 0.0
    %1113 = vmatprep.subr.mxu0 0.0
    %1114 = vmatpush1.xpose.msra.mxu0 0.0
    %1115 = vmatprep.subr.mxu0 0.0
    %1116 = vmatpush1.xpose.msra.mxu0 0.0
    %1117 = vmatprep.subr.mxu0 0.0
    %1118 = vmatpush1.xpose.msra.mxu0 0.0
    %1119 = vmatprep.subr.mxu0 0.0
    %1120 = vmatpush1.xpose.msra.mxu0 0.0
    %1121 = vmatprep.subr.mxu0 0.0
    %1122 = vmatpush1.xpose.msra.mxu0 0.0
    %1123 = vmatprep.subr.mxu0 0.0
    %1124 = vmatpush1.xpose.msra.mxu0 0.0
    %1125 = vmatprep.subr.mxu0 0.0
    %1126 = vmatpush1.xpose.msra.mxu0 0.0
    %1127 = vmatprep.subr.mxu0 0.0
    %1128 = vmatpush1.xpose.msra.mxu0 0.0
    %1129 = vmatprep.subr.mxu0 0.0
    %1130 = vmatpush1.xpose.msra.mxu0 0.0
    %1131 = vmatprep.subr.mxu0 0.0
    %1132 = vmatpush1.xpose.msra.mxu0 0.0
    %1133 = vmatprep.subr.mxu0 0.0
    %1134 = vmatpush1.xpose.msra.mxu0 0.0
    %1135 = vmatprep.subr.mxu0 0.0
    %1136 = vmatpush1.xpose.msra.mxu0 0.0
    %v1137 = vand.u32 %v49, 4294901760
    %1138 = vmatprep.subr.mxu0 %v1137
    %v1139 = vand.u32 %v48, 4294901760
    %1140 = vmatpush1.xpose.msra.mxu0 %v1139
    %v1141 = vand.u32 %v40, 4294901760
    %1142 = vmatprep.subr.mxu0 %v1141
    %v1143 = vand.u32 %v39, 4294901760
    %1144 = vmatpush1.xpose.msra.mxu0 %v1143
    %1145 = vmatprep.subr.mxu0 0.0
    %1146 = vmatpush2.xpose.msra.mxu0 0.0
    %1147 = vmatprep.subr.mxu0 0.0
    %1148 = vmatpush2.xpose.msra.mxu0 0.0
    %1149 = vmatprep.subr.mxu0 0.0
    %1150 = vmatpush2.xpose.msra.mxu0 0.0
    %1151 = vmatprep.subr.mxu0 0.0
    %1152 = vmatpush2.xpose.msra.mxu0 0.0
    %1153 = vmatprep.subr.mxu0 0.0
    %1154 = vmatpush2.xpose.msra.mxu0 0.0
    %1155 = vmatprep.subr.mxu0 0.0
    %1156 = vmatpush2.xpose.msra.mxu0 0.0
    %1157 = vmatprep.subr.mxu0 0.0
    %1158 = vmatpush2.xpose.msra.mxu0 0.0
    %1159 = vmatprep.subr.mxu0 0.0
    %1160 = vmatpush2.xpose.msra.mxu0 0.0
    %1161 = vmatprep.subr.mxu0 0.0
    %1162 = vmatpush2.xpose.msra.mxu0 0.0
    %1163 = vmatprep.subr.mxu0 0.0
    %1164 = vmatpush2.xpose.msra.mxu0 0.0
    %1165 = vmatprep.subr.mxu0 0.0
    %1166 = vmatpush2.xpose.msra.mxu0 0.0
    %1167 = vmatprep.subr.mxu0 0.0
    %1168 = vmatpush2.xpose.msra.mxu0 0.0
    %1169 = vmatprep.subr.mxu0 0.0
    %1170 = vmatpush2.xpose.msra.mxu0 0.0
    %1171 = vmatprep.subr.mxu0 0.0
    %1172 = vmatpush2.xpose.msra.mxu0 0.0
    %1173 = vmatprep.subr.mxu0 0.0
    %1174 = vmatpush2.xpose.msra.mxu0 0.0
    %1175 = vmatprep.subr.mxu0 0.0
    %1176 = vmatpush2.xpose.msra.mxu0 0.0
    %v1177 = vand.u32 %v95, 4294901760
    %v1178 = vsub.f32 %v95, %v1177
    %v1179 = vand.u32 %v1178, 4294901760
    %v1180 = vsub.f32 %v1178, %v1179
    %v1181 = vand.u32 %v1180, 4294901760
    %1182 = vmatprep.mubr.f32.mxu0 %v1181
    %v1183 = vand.u32 %v87, 4294901760
    %v1184 = vsub.f32 %v87, %v1183
    %v1185 = vand.u32 %v1184, 4294901760
    %v1186 = vsub.f32 %v1184, %v1185
    %v1187 = vand.u32 %v1186, 4294901760
    %1188 = vmatmul.mubr.f32.gmra.mxu0 %v1187
    %v1189 = vpop.f32.mrf.mxu0
    %v1190 = vadd.f32 %v1106, %v1189
    %v1191 = vpop.f32.mrf.mxu0
    %1192 = vdwg.mxu0
    %1193 = vmatprep.subr.mxu0 0.0
    %1194 = vmatpush1.xpose.msra.mxu0 0.0
    %1195 = vmatprep.subr.mxu0 0.0
    %1196 = vmatpush1.xpose.msra.mxu0 0.0
    %1197 = vmatprep.subr.mxu0 0.0
    %1198 = vmatpush1.xpose.msra.mxu0 0.0
    %1199 = vmatprep.subr.mxu0 0.0
    %1200 = vmatpush1.xpose.msra.mxu0 0.0
    %1201 = vmatprep.subr.mxu0 0.0
    %1202 = vmatpush1.xpose.msra.mxu0 0.0
    %1203 = vmatprep.subr.mxu0 0.0
    %1204 = vmatpush1.xpose.msra.mxu0 0.0
    %1205 = vmatprep.subr.mxu0 0.0
    %1206 = vmatpush1.xpose.msra.mxu0 0.0
    %1207 = vmatprep.subr.mxu0 0.0
    %1208 = vmatpush1.xpose.msra.mxu0 0.0
    %1209 = vmatprep.subr.mxu0 0.0
    %1210 = vmatpush1.xpose.msra.mxu0 0.0
    %1211 = vmatprep.subr.mxu0 0.0
    %1212 = vmatpush1.xpose.msra.mxu0 0.0
    %1213 = vmatprep.subr.mxu0 0.0
    %1214 = vmatpush1.xpose.msra.mxu0 0.0
    %1215 = vmatprep.subr.mxu0 0.0
    %1216 = vmatpush1.xpose.msra.mxu0 0.0
    %1217 = vmatprep.subr.mxu0 0.0
    %1218 = vmatpush1.xpose.msra.mxu0 0.0
    %1219 = vmatprep.subr.mxu0 0.0
    %1220 = vmatpush1.xpose.msra.mxu0 0.0
    %v1221 = vand.u32 %v49, 4294901760
    %v1222 = vsub.f32 %v49, %v1221
    %v1223 = vand.u32 %v1222, 4294901760
    %v1224 = vsub.f32 %v1222, %v1223
    %v1225 = vand.u32 %v1224, 4294901760
    %1226 = vmatprep.subr.mxu0 %v1225
    %v1227 = vand.u32 %v48, 4294901760
    %v1228 = vsub.f32 %v48, %v1227
    %v1229 = vand.u32 %v1228, 4294901760
    %v1230 = vsub.f32 %v1228, %v1229
    %v1231 = vand.u32 %v1230, 4294901760
    %1232 = vmatpush1.xpose.msra.mxu0 %v1231
    %v1233 = vand.u32 %v40, 4294901760
    %v1234 = vsub.f32 %v40, %v1233
    %v1235 = vand.u32 %v1234, 4294901760
    %v1236 = vsub.f32 %v1234, %v1235
    %v1237 = vand.u32 %v1236, 4294901760
    %1238 = vmatprep.subr.mxu0 %v1237
    %v1239 = vand.u32 %v39, 4294901760
    %v1240 = vsub.f32 %v39, %v1239
    %v1241 = vand.u32 %v1240, 4294901760
    %v1242 = vsub.f32 %v1240, %v1241
    %v1243 = vand.u32 %v1242, 4294901760
    %1244 = vmatpush1.xpose.msra.mxu0 %v1243
    %1245 = vmatprep.subr.mxu0 0.0
    %1246 = vmatpush2.xpose.msra.mxu0 0.0
    %1247 = vmatprep.subr.mxu0 0.0
    %1248 = vmatpush2.xpose.msra.mxu0 0.0
    %1249 = vmatprep.subr.mxu0 0.0
    %1250 = vmatpush2.xpose.msra.mxu0 0.0
    %1251 = vmatprep.subr.mxu0 0.0
    %1252 = vmatpush2.xpose.msra.mxu0 0.0
    %1253 = vmatprep.subr.mxu0 0.0
    %1254 = vmatpush2.xpose.msra.mxu0 0.0
    %1255 = vmatprep.subr.mxu0 0.0
    %1256 = vmatpush2.xpose.msra.mxu0 0.0
    %1257 = vmatprep.subr.mxu0 0.0
    %1258 = vmatpush2.xpose.msra.mxu0 0.0
    %1259 = vmatprep.subr.mxu0 0.0
    %1260 = vmatpush2.xpose.msra.mxu0 0.0
    %1261 = vmatprep.subr.mxu0 0.0
    %1262 = vmatpush2.xpose.msra.mxu0 0.0
    %1263 = vmatprep.subr.mxu0 0.0
    %1264 = vmatpush2.xpose.msra.mxu0 0.0
    %1265 = vmatprep.subr.mxu0 0.0
    %1266 = vmatpush2.xpose.msra.mxu0 0.0
    %1267 = vmatprep.subr.mxu0 0.0
    %1268 = vmatpush2.xpose.msra.mxu0 0.0
    %1269 = vmatprep.subr.mxu0 0.0
    %1270 = vmatpush2.xpose.msra.mxu0 0.0
    %1271 = vmatprep.subr.mxu0 0.0
    %1272 = vmatpush2.xpose.msra.mxu0 0.0
    %1273 = vmatprep.subr.mxu0 0.0
    %1274 = vmatpush2.xpose.msra.mxu0 0.0
    %1275 = vmatprep.subr.mxu0 0.0
    %1276 = vmatpush2.xpose.msra.mxu0 0.0
    %v1277 = vand.u32 %v95, 4294901760
    %1278 = vmatprep.mubr.f32.mxu0 %v1277
    %v1279 = vand.u32 %v87, 4294901760
    %1280 = vmatmul.mubr.f32.gmra.mxu0 %v1279
    %v1281 = vpop.f32.mrf.mxu0
    %v1282 = vadd.f32 %v1190, %v1281
    %v1283 = vpop.f32.mrf.mxu0
    %1284 = vdwg.mxu0
    %1285 = vmatprep.subr.mxu0 0.0
    %1286 = vmatpush1.xpose.msra.mxu0 0.0
    %1287 = vmatprep.subr.mxu0 0.0
    %1288 = vmatpush1.xpose.msra.mxu0 0.0
    %1289 = vmatprep.subr.mxu0 0.0
    %1290 = vmatpush1.xpose.msra.mxu0 0.0
    %1291 = vmatprep.subr.mxu0 0.0
    %1292 = vmatpush1.xpose.msra.mxu0 0.0
    %1293 = vmatprep.subr.mxu0 0.0
    %1294 = vmatpush1.xpose.msra.mxu0 0.0
    %1295 = vmatprep.subr.mxu0 0.0
    %1296 = vmatpush1.xpose.msra.mxu0 0.0
    %1297 = vmatprep.subr.mxu0 0.0
    %1298 = vmatpush1.xpose.msra.mxu0 0.0
    %1299 = vmatprep.subr.mxu0 0.0
    %1300 = vmatpush1.xpose.msra.mxu0 0.0
    %1301 = vmatprep.subr.mxu0 0.0
    %1302 = vmatpush1.xpose.msra.mxu0 0.0
    %1303 = vmatprep.subr.mxu0 0.0
    %1304 = vmatpush1.xpose.msra.mxu0 0.0
    %1305 = vmatprep.subr.mxu0 0.0
    %1306 = vmatpush1.xpose.msra.mxu0 0.0
    %1307 = vmatprep.subr.mxu0 0.0
    %1308 = vmatpush1.xpose.msra.mxu0 0.0
    %1309 = vmatprep.subr.mxu0 0.0
    %1310 = vmatpush1.xpose.msra.mxu0 0.0
    %1311 = vmatprep.subr.mxu0 0.0
    %1312 = vmatpush1.xpose.msra.mxu0 0.0
    %v1313 = vand.u32 %v49, 4294901760
    %v1314 = vsub.f32 %v49, %v1313
    %1315 = vmatprep.subr.mxu0 %v1314
    %v1316 = vand.u32 %v48, 4294901760
    %v1317 = vsub.f32 %v48, %v1316
    %1318 = vmatpush1.xpose.msra.mxu0 %v1317
    %v1319 = vand.u32 %v40, 4294901760
    %v1320 = vsub.f32 %v40, %v1319
    %1321 = vmatprep.subr.mxu0 %v1320
    %v1322 = vand.u32 %v39, 4294901760
    %v1323 = vsub.f32 %v39, %v1322
    %1324 = vmatpush1.xpose.msra.mxu0 %v1323
    %1325 = vmatprep.subr.mxu0 0.0
    %1326 = vmatpush2.xpose.msra.mxu0 0.0
    %1327 = vmatprep.subr.mxu0 0.0
    %1328 = vmatpush2.xpose.msra.mxu0 0.0
    %1329 = vmatprep.subr.mxu0 0.0
    %1330 = vmatpush2.xpose.msra.mxu0 0.0
    %1331 = vmatprep.subr.mxu0 0.0
    %1332 = vmatpush2.xpose.msra.mxu0 0.0
    %1333 = vmatprep.subr.mxu0 0.0
    %1334 = vmatpush2.xpose.msra.mxu0 0.0
    %1335 = vmatprep.subr.mxu0 0.0
    %1336 = vmatpush2.xpose.msra.mxu0 0.0
    %1337 = vmatprep.subr.mxu0 0.0
    %1338 = vmatpush2.xpose.msra.mxu0 0.0
    %1339 = vmatprep.subr.mxu0 0.0
    %1340 = vmatpush2.xpose.msra.mxu0 0.0
    %1341 = vmatprep.subr.mxu0 0.0
    %1342 = vmatpush2.xpose.msra.mxu0 0.0
    %1343 = vmatprep.subr.mxu0 0.0
    %1344 = vmatpush2.xpose.msra.mxu0 0.0
    %1345 = vmatprep.subr.mxu0 0.0
    %1346 = vmatpush2.xpose.msra.mxu0 0.0
    %1347 = vmatprep.subr.mxu0 0.0
    %1348 = vmatpush2.xpose.msra.mxu0 0.0
    %1349 = vmatprep.subr.mxu0 0.0
    %1350 = vmatpush2.xpose.msra.mxu0 0.0
    %1351 = vmatprep.subr.mxu0 0.0
    %1352 = vmatpush2.xpose.msra.mxu0 0.0
    %1353 = vmatprep.subr.mxu0 0.0
    %1354 = vmatpush2.xpose.msra.mxu0 0.0
    %1355 = vmatprep.subr.mxu0 0.0
    %1356 = vmatpush2.xpose.msra.mxu0 0.0
    %v1357 = vand.u32 %v95, 4294901760
    %v1358 = vsub.f32 %v95, %v1357
    %1359 = vmatprep.mubr.f32.mxu0 %v1358
    %v1360 = vand.u32 %v87, 4294901760
    %v1361 = vsub.f32 %v87, %v1360
    %1362 = vmatmul.mubr.f32.gmra.mxu0 %v1361
    %v1363 = vpop.f32.mrf.mxu0
    %v1364 = vadd.f32 %v1282, %v1363
    %v1365 = vpop.f32.mrf.mxu0
    %1366 = vdwg.mxu0
    %1367 = vmatprep.subr.mxu0 0.0
    %1368 = vmatpush1.xpose.msra.mxu0 0.0
    %1369 = vmatprep.subr.mxu0 0.0
    %1370 = vmatpush1.xpose.msra.mxu0 0.0
    %1371 = vmatprep.subr.mxu0 0.0
    %1372 = vmatpush1.xpose.msra.mxu0 0.0
    %1373 = vmatprep.subr.mxu0 0.0
    %1374 = vmatpush1.xpose.msra.mxu0 0.0
    %1375 = vmatprep.subr.mxu0 0.0
    %1376 = vmatpush1.xpose.msra.mxu0 0.0
    %1377 = vmatprep.subr.mxu0 0.0
    %1378 = vmatpush1.xpose.msra.mxu0 0.0
    %1379 = vmatprep.subr.mxu0 0.0
    %1380 = vmatpush1.xpose.msra.mxu0 0.0
    %1381 = vmatprep.subr.mxu0 0.0
    %1382 = vmatpush1.xpose.msra.mxu0 0.0
    %1383 = vmatprep.subr.mxu0 0.0
    %1384 = vmatpush1.xpose.msra.mxu0 0.0
    %1385 = vmatprep.subr.mxu0 0.0
    %1386 = vmatpush1.xpose.msra.mxu0 0.0
    %1387 = vmatprep.subr.mxu0 0.0
    %1388 = vmatpush1.xpose.msra.mxu0 0.0
    %1389 = vmatprep.subr.mxu0 0.0
    %1390 = vmatpush1.xpose.msra.mxu0 0.0
    %1391 = vmatprep.subr.mxu0 0.0
    %1392 = vmatpush1.xpose.msra.mxu0 0.0
    %1393 = vmatprep.subr.mxu0 0.0
    %1394 = vmatpush1.xpose.msra.mxu0 0.0
    %v1395 = vand.u32 %v49, 4294901760
    %1396 = vmatprep.subr.mxu0 %v1395
    %v1397 = vand.u32 %v48, 4294901760
    %1398 = vmatpush1.xpose.msra.mxu0 %v1397
    %v1399 = vand.u32 %v40, 4294901760
    %1400 = vmatprep.subr.mxu0 %v1399
    %v1401 = vand.u32 %v39, 4294901760
    %1402 = vmatpush1.xpose.msra.mxu0 %v1401
    %1403 = vmatprep.subr.mxu0 0.0
    %1404 = vmatpush2.xpose.msra.mxu0 0.0
    %1405 = vmatprep.subr.mxu0 0.0
    %1406 = vmatpush2.xpose.msra.mxu0 0.0
    %1407 = vmatprep.subr.mxu0 0.0
    %1408 = vmatpush2.xpose.msra.mxu0 0.0
    %1409 = vmatprep.subr.mxu0 0.0
    %1410 = vmatpush2.xpose.msra.mxu0 0.0
    %1411 = vmatprep.subr.mxu0 0.0
    %1412 = vmatpush2.xpose.msra.mxu0 0.0
    %1413 = vmatprep.subr.mxu0 0.0
    %1414 = vmatpush2.xpose.msra.mxu0 0.0
    %1415 = vmatprep.subr.mxu0 0.0
    %1416 = vmatpush2.xpose.msra.mxu0 0.0
    %1417 = vmatprep.subr.mxu0 0.0
    %1418 = vmatpush2.xpose.msra.mxu0 0.0
    %1419 = vmatprep.subr.mxu0 0.0
    %1420 = vmatpush2.xpose.msra.mxu0 0.0
    %1421 = vmatprep.subr.mxu0 0.0
    %1422 = vmatpush2.xpose.msra.mxu0 0.0
    %1423 = vmatprep.subr.mxu0 0.0
    %1424 = vmatpush2.xpose.msra.mxu0 0.0
    %1425 = vmatprep.subr.mxu0 0.0
    %1426 = vmatpush2.xpose.msra.mxu0 0.0
    %1427 = vmatprep.subr.mxu0 0.0
    %1428 = vmatpush2.xpose.msra.mxu0 0.0
    %1429 = vmatprep.subr.mxu0 0.0
    %1430 = vmatpush2.xpose.msra.mxu0 0.0
    %1431 = vmatprep.subr.mxu0 0.0
    %1432 = vmatpush2.xpose.msra.mxu0 0.0
    %1433 = vmatprep.subr.mxu0 0.0
    %1434 = vmatpush2.xpose.msra.mxu0 0.0
    %v1435 = vand.u32 %v95, 4294901760
    %v1436 = vsub.f32 %v95, %v1435
    %v1437 = vand.u32 %v1436, 4294901760
    %1438 = vmatprep.mubr.f32.mxu0 %v1437
    %v1439 = vand.u32 %v87, 4294901760
    %v1440 = vsub.f32 %v87, %v1439
    %v1441 = vand.u32 %v1440, 4294901760
    %1442 = vmatmul.mubr.f32.gmra.mxu0 %v1441
    %v1443 = vpop.f32.mrf.mxu0
    %v1444 = vadd.f32 %v1364, %v1443
    %v1445 = vpop.f32.mrf.mxu0
    %1446 = vdwg.mxu0
    %1447 = vmatprep.subr.mxu0 0.0
    %1448 = vmatpush1.xpose.msra.mxu0 0.0
    %1449 = vmatprep.subr.mxu0 0.0
    %1450 = vmatpush1.xpose.msra.mxu0 0.0
    %1451 = vmatprep.subr.mxu0 0.0
    %1452 = vmatpush1.xpose.msra.mxu0 0.0
    %1453 = vmatprep.subr.mxu0 0.0
    %1454 = vmatpush1.xpose.msra.mxu0 0.0
    %1455 = vmatprep.subr.mxu0 0.0
    %1456 = vmatpush1.xpose.msra.mxu0 0.0
    %1457 = vmatprep.subr.mxu0 0.0
    %1458 = vmatpush1.xpose.msra.mxu0 0.0
    %1459 = vmatprep.subr.mxu0 0.0
    %1460 = vmatpush1.xpose.msra.mxu0 0.0
    %1461 = vmatprep.subr.mxu0 0.0
    %1462 = vmatpush1.xpose.msra.mxu0 0.0
    %1463 = vmatprep.subr.mxu0 0.0
    %1464 = vmatpush1.xpose.msra.mxu0 0.0
    %1465 = vmatprep.subr.mxu0 0.0
    %1466 = vmatpush1.xpose.msra.mxu0 0.0
    %1467 = vmatprep.subr.mxu0 0.0
    %1468 = vmatpush1.xpose.msra.mxu0 0.0
    %1469 = vmatprep.subr.mxu0 0.0
    %1470 = vmatpush1.xpose.msra.mxu0 0.0
    %1471 = vmatprep.subr.mxu0 0.0
    %1472 = vmatpush1.xpose.msra.mxu0 0.0
    %1473 = vmatprep.subr.mxu0 0.0
    %1474 = vmatpush1.xpose.msra.mxu0 0.0
    %v1475 = vand.u32 %v49, 4294901760
    %v1476 = vsub.f32 %v49, %v1475
    %v1477 = vand.u32 %v1476, 4294901760
    %1478 = vmatprep.subr.mxu0 %v1477
    %v1479 = vand.u32 %v48, 4294901760
    %v1480 = vsub.f32 %v48, %v1479
    %v1481 = vand.u32 %v1480, 4294901760
    %1482 = vmatpush1.xpose.msra.mxu0 %v1481
    %v1483 = vand.u32 %v40, 4294901760
    %v1484 = vsub.f32 %v40, %v1483
    %v1485 = vand.u32 %v1484, 4294901760
    %1486 = vmatprep.subr.mxu0 %v1485
    %v1487 = vand.u32 %v39, 4294901760
    %v1488 = vsub.f32 %v39, %v1487
    %v1489 = vand.u32 %v1488, 4294901760
    %1490 = vmatpush1.xpose.msra.mxu0 %v1489
    %1491 = vmatprep.subr.mxu0 0.0
    %1492 = vmatpush2.xpose.msra.mxu0 0.0
    %1493 = vmatprep.subr.mxu0 0.0
    %1494 = vmatpush2.xpose.msra.mxu0 0.0
    %1495 = vmatprep.subr.mxu0 0.0
    %1496 = vmatpush2.xpose.msra.mxu0 0.0
    %1497 = vmatprep.subr.mxu0 0.0
    %1498 = vmatpush2.xpose.msra.mxu0 0.0
    %1499 = vmatprep.subr.mxu0 0.0
    %1500 = vmatpush2.xpose.msra.mxu0 0.0
    %1501 = vmatprep.subr.mxu0 0.0
    %1502 = vmatpush2.xpose.msra.mxu0 0.0
    %1503 = vmatprep.subr.mxu0 0.0
    %1504 = vmatpush2.xpose.msra.mxu0 0.0
    %1505 = vmatprep.subr.mxu0 0.0
    %1506 = vmatpush2.xpose.msra.mxu0 0.0
    %1507 = vmatprep.subr.mxu0 0.0
    %1508 = vmatpush2.xpose.msra.mxu0 0.0
    %1509 = vmatprep.subr.mxu0 0.0
    %1510 = vmatpush2.xpose.msra.mxu0 0.0
    %1511 = vmatprep.subr.mxu0 0.0
    %1512 = vmatpush2.xpose.msra.mxu0 0.0
    %1513 = vmatprep.subr.mxu0 0.0
    %1514 = vmatpush2.xpose.msra.mxu0 0.0
    %1515 = vmatprep.subr.mxu0 0.0
    %1516 = vmatpush2.xpose.msra.mxu0 0.0
    %1517 = vmatprep.subr.mxu0 0.0
    %1518 = vmatpush2.xpose.msra.mxu0 0.0
    %1519 = vmatprep.subr.mxu0 0.0
    %1520 = vmatpush2.xpose.msra.mxu0 0.0
    %1521 = vmatprep.subr.mxu0 0.0
    %1522 = vmatpush2.xpose.msra.mxu0 0.0
    %v1523 = vand.u32 %v95, 4294901760
    %1524 = vmatprep.mubr.f32.mxu0 %v1523
    %v1525 = vand.u32 %v87, 4294901760
    %1526 = vmatmul.mubr.f32.gmra.mxu0 %v1525
    %v1527 = vpop.f32.mrf.mxu0
    %v1528 = vadd.f32 %v1444, %v1527
    %v1529 = vpop.f32.mrf.mxu0
    %1530 = vdwg.mxu0
    %1531 = vmatprep.subr.mxu0 0.0
    %1532 = vmatpush1.xpose.msra.mxu0 0.0
    %1533 = vmatprep.subr.mxu0 0.0
    %1534 = vmatpush1.xpose.msra.mxu0 0.0
    %1535 = vmatprep.subr.mxu0 0.0
    %1536 = vmatpush1.xpose.msra.mxu0 0.0
    %1537 = vmatprep.subr.mxu0 0.0
    %1538 = vmatpush1.xpose.msra.mxu0 0.0
    %1539 = vmatprep.subr.mxu0 0.0
    %1540 = vmatpush1.xpose.msra.mxu0 0.0
    %1541 = vmatprep.subr.mxu0 0.0
    %1542 = vmatpush1.xpose.msra.mxu0 0.0
    %1543 = vmatprep.subr.mxu0 0.0
    %1544 = vmatpush1.xpose.msra.mxu0 0.0
    %1545 = vmatprep.subr.mxu0 0.0
    %1546 = vmatpush1.xpose.msra.mxu0 0.0
    %1547 = vmatprep.subr.mxu0 0.0
    %1548 = vmatpush1.xpose.msra.mxu0 0.0
    %1549 = vmatprep.subr.mxu0 0.0
    %1550 = vmatpush1.xpose.msra.mxu0 0.0
    %1551 = vmatprep.subr.mxu0 0.0
    %1552 = vmatpush1.xpose.msra.mxu0 0.0
    %1553 = vmatprep.subr.mxu0 0.0
    %1554 = vmatpush1.xpose.msra.mxu0 0.0
    %1555 = vmatprep.subr.mxu0 0.0
    %1556 = vmatpush1.xpose.msra.mxu0 0.0
    %1557 = vmatprep.subr.mxu0 0.0
    %1558 = vmatpush1.xpose.msra.mxu0 0.0
    %v1559 = vand.u32 %v49, 4294901760
    %1560 = vmatprep.subr.mxu0 %v1559
    %v1561 = vand.u32 %v48, 4294901760
    %1562 = vmatpush1.xpose.msra.mxu0 %v1561
    %v1563 = vand.u32 %v40, 4294901760
    %1564 = vmatprep.subr.mxu0 %v1563
    %v1565 = vand.u32 %v39, 4294901760
    %1566 = vmatpush1.xpose.msra.mxu0 %v1565
    %1567 = vmatprep.subr.mxu0 0.0
    %1568 = vmatpush2.xpose.msra.mxu0 0.0
    %1569 = vmatprep.subr.mxu0 0.0
    %1570 = vmatpush2.xpose.msra.mxu0 0.0
    %1571 = vmatprep.subr.mxu0 0.0
    %1572 = vmatpush2.xpose.msra.mxu0 0.0
    %1573 = vmatprep.subr.mxu0 0.0
    %1574 = vmatpush2.xpose.msra.mxu0 0.0
    %1575 = vmatprep.subr.mxu0 0.0
    %1576 = vmatpush2.xpose.msra.mxu0 0.0
    %1577 = vmatprep.subr.mxu0 0.0
    %1578 = vmatpush2.xpose.msra.mxu0 0.0
    %1579 = vmatprep.subr.mxu0 0.0
    %1580 = vmatpush2.xpose.msra.mxu0 0.0
    %1581 = vmatprep.subr.mxu0 0.0
    %1582 = vmatpush2.xpose.msra.mxu0 0.0
    %1583 = vmatprep.subr.mxu0 0.0
    %1584 = vmatpush2.xpose.msra.mxu0 0.0
    %1585 = vmatprep.subr.mxu0 0.0
    %1586 = vmatpush2.xpose.msra.mxu0 0.0
    %1587 = vmatprep.subr.mxu0 0.0
    %1588 = vmatpush2.xpose.msra.mxu0 0.0
    %1589 = vmatprep.subr.mxu0 0.0
    %1590 = vmatpush2.xpose.msra.mxu0 0.0
    %1591 = vmatprep.subr.mxu0 0.0
    %1592 = vmatpush2.xpose.msra.mxu0 0.0
    %1593 = vmatprep.subr.mxu0 0.0
    %1594 = vmatpush2.xpose.msra.mxu0 0.0
    %1595 = vmatprep.subr.mxu0 0.0
    %1596 = vmatpush2.xpose.msra.mxu0 0.0
    %1597 = vmatprep.subr.mxu0 0.0
    %1598 = vmatpush2.xpose.msra.mxu0 0.0
    %v1599 = vand.u32 %v95, 4294901760
    %1600 = vmatprep.mubr.f32.mxu0 %v1599
    %v1601 = vand.u32 %v87, 4294901760
    %1602 = vmatmul.mubr.f32.gmra.mxu0 %v1601
    %v1603 = vpop.f32.mrf.mxu0
    %v1604 = vadd.f32 %v1528, %v1603
    %v1605 = vpop.f32.mrf.mxu0
    %1606 = vdwg.mxu0
    %1607 = vmatprep.subr.mxu0 0.0
    %1608 = vmatpush1.xpose.msra.mxu0 0.0
    %1609 = vmatprep.subr.mxu0 0.0
    %1610 = vmatpush1.xpose.msra.mxu0 0.0
    %1611 = vmatprep.subr.mxu0 0.0
    %1612 = vmatpush1.xpose.msra.mxu0 0.0
    %1613 = vmatprep.subr.mxu0 0.0
    %1614 = vmatpush1.xpose.msra.mxu0 0.0
    %1615 = vmatprep.subr.mxu0 0.0
    %1616 = vmatpush1.xpose.msra.mxu0 0.0
    %1617 = vmatprep.subr.mxu0 0.0
    %1618 = vmatpush1.xpose.msra.mxu0 0.0
    %1619 = vmatprep.subr.mxu0 0.0
    %1620 = vmatpush1.xpose.msra.mxu0 0.0
    %1621 = vmatprep.subr.mxu0 0.0
    %1622 = vmatpush1.xpose.msra.mxu0 0.0
    %1623 = vmatprep.subr.mxu0 0.0
    %1624 = vmatpush1.xpose.msra.mxu0 0.0
    %1625 = vmatprep.subr.mxu0 0.0
    %1626 = vmatpush1.xpose.msra.mxu0 0.0
    %1627 = vmatprep.subr.mxu0 0.0
    %1628 = vmatpush1.xpose.msra.mxu0 0.0
    %1629 = vmatprep.subr.mxu0 0.0
    %1630 = vmatpush1.xpose.msra.mxu0 0.0
    %1631 = vmatprep.subr.mxu0 0.0
    %1632 = vmatpush1.xpose.msra.mxu0 0.0
    %1633 = vmatprep.subr.mxu0 0.0
    %1634 = vmatpush1.xpose.msra.mxu0 0.0
    %v1635 = vand.u32 %v51, 4294901760
    %1636 = vmatprep.subr.mxu0 %v1635
    %v1637 = vand.u32 %v50, 4294901760
    %1638 = vmatpush1.xpose.msra.mxu0 %v1637
    %v1639 = vand.u32 %v42, 4294901760
    %1640 = vmatprep.subr.mxu0 %v1639
    %v1641 = vand.u32 %v41, 4294901760
    %1642 = vmatpush1.xpose.msra.mxu0 %v1641
    %1643 = vmatprep.subr.mxu0 0.0
    %1644 = vmatpush2.xpose.msra.mxu0 0.0
    %1645 = vmatprep.subr.mxu0 0.0
    %1646 = vmatpush2.xpose.msra.mxu0 0.0
    %1647 = vmatprep.subr.mxu0 0.0
    %1648 = vmatpush2.xpose.msra.mxu0 0.0
    %1649 = vmatprep.subr.mxu0 0.0
    %1650 = vmatpush2.xpose.msra.mxu0 0.0
    %1651 = vmatprep.subr.mxu0 0.0
    %1652 = vmatpush2.xpose.msra.mxu0 0.0
    %1653 = vmatprep.subr.mxu0 0.0
    %1654 = vmatpush2.xpose.msra.mxu0 0.0
    %1655 = vmatprep.subr.mxu0 0.0
    %1656 = vmatpush2.xpose.msra.mxu0 0.0
    %1657 = vmatprep.subr.mxu0 0.0
    %1658 = vmatpush2.xpose.msra.mxu0 0.0
    %1659 = vmatprep.subr.mxu0 0.0
    %1660 = vmatpush2.xpose.msra.mxu0 0.0
    %1661 = vmatprep.subr.mxu0 0.0
    %1662 = vmatpush2.xpose.msra.mxu0 0.0
    %1663 = vmatprep.subr.mxu0 0.0
    %1664 = vmatpush2.xpose.msra.mxu0 0.0
    %1665 = vmatprep.subr.mxu0 0.0
    %1666 = vmatpush2.xpose.msra.mxu0 0.0
    %1667 = vmatprep.subr.mxu0 0.0
    %1668 = vmatpush2.xpose.msra.mxu0 0.0
    %1669 = vmatprep.subr.mxu0 0.0
    %1670 = vmatpush2.xpose.msra.mxu0 0.0
    %1671 = vmatprep.subr.mxu0 0.0
    %1672 = vmatpush2.xpose.msra.mxu0 0.0
    %1673 = vmatprep.subr.mxu0 0.0
    %1674 = vmatpush2.xpose.msra.mxu0 0.0
    %v1675 = vand.u32 %v96, 4294901760
    %v1676 = vsub.f32 %v96, %v1675
    %v1677 = vand.u32 %v1676, 4294901760
    %v1678 = vsub.f32 %v1676, %v1677
    %v1679 = vand.u32 %v1678, 4294901760
    %1680 = vmatprep.mubr.f32.mxu0 %v1679
    %v1681 = vand.u32 %v94, 4294901760
    %v1682 = vsub.f32 %v94, %v1681
    %v1683 = vand.u32 %v1682, 4294901760
    %v1684 = vsub.f32 %v1682, %v1683
    %v1685 = vand.u32 %v1684, 4294901760
    %1686 = vmatmul.mubr.f32.gmra.mxu0 %v1685
    %v1687 = vpop.f32.mrf.mxu0
    %v1688 = vadd.f32 %v1604, %v1687
    %v1689 = vpop.f32.mrf.mxu0
    %1690 = vdwg.mxu0
    %1691 = vmatprep.subr.mxu0 0.0
    %1692 = vmatpush1.xpose.msra.mxu0 0.0
    %1693 = vmatprep.subr.mxu0 0.0
    %1694 = vmatpush1.xpose.msra.mxu0 0.0
    %1695 = vmatprep.subr.mxu0 0.0
    %1696 = vmatpush1.xpose.msra.mxu0 0.0
    %1697 = vmatprep.subr.mxu0 0.0
    %1698 = vmatpush1.xpose.msra.mxu0 0.0
    %1699 = vmatprep.subr.mxu0 0.0
    %1700 = vmatpush1.xpose.msra.mxu0 0.0
    %1701 = vmatprep.subr.mxu0 0.0
    %1702 = vmatpush1.xpose.msra.mxu0 0.0
    %1703 = vmatprep.subr.mxu0 0.0
    %1704 = vmatpush1.xpose.msra.mxu0 0.0
    %1705 = vmatprep.subr.mxu0 0.0
    %1706 = vmatpush1.xpose.msra.mxu0 0.0
    %1707 = vmatprep.subr.mxu0 0.0
    %1708 = vmatpush1.xpose.msra.mxu0 0.0
    %1709 = vmatprep.subr.mxu0 0.0
    %1710 = vmatpush1.xpose.msra.mxu0 0.0
    %1711 = vmatprep.subr.mxu0 0.0
    %1712 = vmatpush1.xpose.msra.mxu0 0.0
    %1713 = vmatprep.subr.mxu0 0.0
    %1714 = vmatpush1.xpose.msra.mxu0 0.0
    %1715 = vmatprep.subr.mxu0 0.0
    %1716 = vmatpush1.xpose.msra.mxu0 0.0
    %1717 = vmatprep.subr.mxu0 0.0
    %1718 = vmatpush1.xpose.msra.mxu0 0.0
    %v1719 = vand.u32 %v51, 4294901760
    %v1720 = vsub.f32 %v51, %v1719
    %v1721 = vand.u32 %v1720, 4294901760
    %v1722 = vsub.f32 %v1720, %v1721
    %v1723 = vand.u32 %v1722, 4294901760
    %1724 = vmatprep.subr.mxu0 %v1723
    %v1725 = vand.u32 %v50, 4294901760
    %v1726 = vsub.f32 %v50, %v1725
    %v1727 = vand.u32 %v1726, 4294901760
    %v1728 = vsub.f32 %v1726, %v1727
    %v1729 = vand.u32 %v1728, 4294901760
    %1730 = vmatpush1.xpose.msra.mxu0 %v1729
    %v1731 = vand.u32 %v42, 4294901760
    %v1732 = vsub.f32 %v42, %v1731
    %v1733 = vand.u32 %v1732, 4294901760
    %v1734 = vsub.f32 %v1732, %v1733
    %v1735 = vand.u32 %v1734, 4294901760
    %1736 = vmatprep.subr.mxu0 %v1735
    %v1737 = vand.u32 %v41, 4294901760
    %v1738 = vsub.f32 %v41, %v1737
    %v1739 = vand.u32 %v1738, 4294901760
    %v1740 = vsub.f32 %v1738, %v1739
    %v1741 = vand.u32 %v1740, 4294901760
    %1742 = vmatpush1.xpose.msra.mxu0 %v1741
    %1743 = vmatprep.subr.mxu0 0.0
    %1744 = vmatpush2.xpose.msra.mxu0 0.0
    %1745 = vmatprep.subr.mxu0 0.0
    %1746 = vmatpush2.xpose.msra.mxu0 0.0
    %1747 = vmatprep.subr.mxu0 0.0
    %1748 = vmatpush2.xpose.msra.mxu0 0.0
    %1749 = vmatprep.subr.mxu0 0.0
    %1750 = vmatpush2.xpose.msra.mxu0 0.0
    %1751 = vmatprep.subr.mxu0 0.0
    %1752 = vmatpush2.xpose.msra.mxu0 0.0
    %1753 = vmatprep.subr.mxu0 0.0
    %1754 = vmatpush2.xpose.msra.mxu0 0.0
    %1755 = vmatprep.subr.mxu0 0.0
    %1756 = vmatpush2.xpose.msra.mxu0 0.0
    %1757 = vmatprep.subr.mxu0 0.0
    %1758 = vmatpush2.xpose.msra.mxu0 0.0
    %1759 = vmatprep.subr.mxu0 0.0
    %1760 = vmatpush2.xpose.msra.mxu0 0.0
    %1761 = vmatprep.subr.mxu0 0.0
    %1762 = vmatpush2.xpose.msra.mxu0 0.0
    %1763 = vmatprep.subr.mxu0 0.0
    %1764 = vmatpush2.xpose.msra.mxu0 0.0
    %1765 = vmatprep.subr.mxu0 0.0
    %1766 = vmatpush2.xpose.msra.mxu0 0.0
    %1767 = vmatprep.subr.mxu0 0.0
    %1768 = vmatpush2.xpose.msra.mxu0 0.0
    %1769 = vmatprep.subr.mxu0 0.0
    %1770 = vmatpush2.xpose.msra.mxu0 0.0
    %1771 = vmatprep.subr.mxu0 0.0
    %1772 = vmatpush2.xpose.msra.mxu0 0.0
    %1773 = vmatprep.subr.mxu0 0.0
    %1774 = vmatpush2.xpose.msra.mxu0 0.0
    %v1775 = vand.u32 %v96, 4294901760
    %1776 = vmatprep.mubr.f32.mxu0 %v1775
    %v1777 = vand.u32 %v94, 4294901760
    %1778 = vmatmul.mubr.f32.gmra.mxu0 %v1777
    %v1779 = vpop.f32.mrf.mxu0
    %v1780 = vadd.f32 %v1688, %v1779
    %v1781 = vpop.f32.mrf.mxu0
    %1782 = vdwg.mxu0
    %1783 = vmatprep.subr.mxu0 0.0
    %1784 = vmatpush1.xpose.msra.mxu0 0.0
    %1785 = vmatprep.subr.mxu0 0.0
    %1786 = vmatpush1.xpose.msra.mxu0 0.0
    %1787 = vmatprep.subr.mxu0 0.0
    %1788 = vmatpush1.xpose.msra.mxu0 0.0
    %1789 = vmatprep.subr.mxu0 0.0
    %1790 = vmatpush1.xpose.msra.mxu0 0.0
    %1791 = vmatprep.subr.mxu0 0.0
    %1792 = vmatpush1.xpose.msra.mxu0 0.0
    %1793 = vmatprep.subr.mxu0 0.0
    %1794 = vmatpush1.xpose.msra.mxu0 0.0
    %1795 = vmatprep.subr.mxu0 0.0
    %1796 = vmatpush1.xpose.msra.mxu0 0.0
    %1797 = vmatprep.subr.mxu0 0.0
    %1798 = vmatpush1.xpose.msra.mxu0 0.0
    %1799 = vmatprep.subr.mxu0 0.0
    %1800 = vmatpush1.xpose.msra.mxu0 0.0
    %1801 = vmatprep.subr.mxu0 0.0
    %1802 = vmatpush1.xpose.msra.mxu0 0.0
    %1803 = vmatprep.subr.mxu0 0.0
    %1804 = vmatpush1.xpose.msra.mxu0 0.0
    %1805 = vmatprep.subr.mxu0 0.0
    %1806 = vmatpush1.xpose.msra.mxu0 0.0
    %1807 = vmatprep.subr.mxu0 0.0
    %1808 = vmatpush1.xpose.msra.mxu0 0.0
    %1809 = vmatprep.subr.mxu0 0.0
    %1810 = vmatpush1.xpose.msra.mxu0 0.0
    %v1811 = vand.u32 %v51, 4294901760
    %v1812 = vsub.f32 %v51, %v1811
    %1813 = vmatprep.subr.mxu0 %v1812
    %v1814 = vand.u32 %v50, 4294901760
    %v1815 = vsub.f32 %v50, %v1814
    %1816 = vmatpush1.xpose.msra.mxu0 %v1815
    %v1817 = vand.u32 %v42, 4294901760
    %v1818 = vsub.f32 %v42, %v1817
    %1819 = vmatprep.subr.mxu0 %v1818
    %v1820 = vand.u32 %v41, 4294901760
    %v1821 = vsub.f32 %v41, %v1820
    %1822 = vmatpush1.xpose.msra.mxu0 %v1821
    %1823 = vmatprep.subr.mxu0 0.0
    %1824 = vmatpush2.xpose.msra.mxu0 0.0
    %1825 = vmatprep.subr.mxu0 0.0
    %1826 = vmatpush2.xpose.msra.mxu0 0.0
    %1827 = vmatprep.subr.mxu0 0.0
    %1828 = vmatpush2.xpose.msra.mxu0 0.0
    %1829 = vmatprep.subr.mxu0 0.0
    %1830 = vmatpush2.xpose.msra.mxu0 0.0
    %1831 = vmatprep.subr.mxu0 0.0
    %1832 = vmatpush2.xpose.msra.mxu0 0.0
    %1833 = vmatprep.subr.mxu0 0.0
    %1834 = vmatpush2.xpose.msra.mxu0 0.0
    %1835 = vmatprep.subr.mxu0 0.0
    %1836 = vmatpush2.xpose.msra.mxu0 0.0
    %1837 = vmatprep.subr.mxu0 0.0
    %1838 = vmatpush2.xpose.msra.mxu0 0.0
    %1839 = vmatprep.subr.mxu0 0.0
    %1840 = vmatpush2.xpose.msra.mxu0 0.0
    %1841 = vmatprep.subr.mxu0 0.0
    %1842 = vmatpush2.xpose.msra.mxu0 0.0
    %1843 = vmatprep.subr.mxu0 0.0
    %1844 = vmatpush2.xpose.msra.mxu0 0.0
    %1845 = vmatprep.subr.mxu0 0.0
    %1846 = vmatpush2.xpose.msra.mxu0 0.0
    %1847 = vmatprep.subr.mxu0 0.0
    %1848 = vmatpush2.xpose.msra.mxu0 0.0
    %1849 = vmatprep.subr.mxu0 0.0
    %1850 = vmatpush2.xpose.msra.mxu0 0.0
    %1851 = vmatprep.subr.mxu0 0.0
    %1852 = vmatpush2.xpose.msra.mxu0 0.0
    %1853 = vmatprep.subr.mxu0 0.0
    %1854 = vmatpush2.xpose.msra.mxu0 0.0
    %v1855 = vand.u32 %v96, 4294901760
    %v1856 = vsub.f32 %v96, %v1855
    %1857 = vmatprep.mubr.f32.mxu0 %v1856
    %v1858 = vand.u32 %v94, 4294901760
    %v1859 = vsub.f32 %v94, %v1858
    %1860 = vmatmul.mubr.f32.gmra.mxu0 %v1859
    %v1861 = vpop.f32.mrf.mxu0
    %v1862 = vadd.f32 %v1780, %v1861
    %v1863 = vpop.f32.mrf.mxu0
    %1864 = vdwg.mxu0
    %1865 = vmatprep.subr.mxu0 0.0
    %1866 = vmatpush1.xpose.msra.mxu0 0.0
    %1867 = vmatprep.subr.mxu0 0.0
    %1868 = vmatpush1.xpose.msra.mxu0 0.0
    %1869 = vmatprep.subr.mxu0 0.0
    %1870 = vmatpush1.xpose.msra.mxu0 0.0
    %1871 = vmatprep.subr.mxu0 0.0
    %1872 = vmatpush1.xpose.msra.mxu0 0.0
    %1873 = vmatprep.subr.mxu0 0.0
    %1874 = vmatpush1.xpose.msra.mxu0 0.0
    %1875 = vmatprep.subr.mxu0 0.0
    %1876 = vmatpush1.xpose.msra.mxu0 0.0
    %1877 = vmatprep.subr.mxu0 0.0
    %1878 = vmatpush1.xpose.msra.mxu0 0.0
    %1879 = vmatprep.subr.mxu0 0.0
    %1880 = vmatpush1.xpose.msra.mxu0 0.0
    %1881 = vmatprep.subr.mxu0 0.0
    %1882 = vmatpush1.xpose.msra.mxu0 0.0
    %1883 = vmatprep.subr.mxu0 0.0
    %1884 = vmatpush1.xpose.msra.mxu0 0.0
    %1885 = vmatprep.subr.mxu0 0.0
    %1886 = vmatpush1.xpose.msra.mxu0 0.0
    %1887 = vmatprep.subr.mxu0 0.0
    %1888 = vmatpush1.xpose.msra.mxu0 0.0
    %1889 = vmatprep.subr.mxu0 0.0
    %1890 = vmatpush1.xpose.msra.mxu0 0.0
    %1891 = vmatprep.subr.mxu0 0.0
    %1892 = vmatpush1.xpose.msra.mxu0 0.0
    %v1893 = vand.u32 %v51, 4294901760
    %1894 = vmatprep.subr.mxu0 %v1893
    %v1895 = vand.u32 %v50, 4294901760
    %1896 = vmatpush1.xpose.msra.mxu0 %v1895
    %v1897 = vand.u32 %v42, 4294901760
    %1898 = vmatprep.subr.mxu0 %v1897
    %v1899 = vand.u32 %v41, 4294901760
    %1900 = vmatpush1.xpose.msra.mxu0 %v1899
    %1901 = vmatprep.subr.mxu0 0.0
    %1902 = vmatpush2.xpose.msra.mxu0 0.0
    %1903 = vmatprep.subr.mxu0 0.0
    %1904 = vmatpush2.xpose.msra.mxu0 0.0
    %1905 = vmatprep.subr.mxu0 0.0
    %1906 = vmatpush2.xpose.msra.mxu0 0.0
    %1907 = vmatprep.subr.mxu0 0.0
    %1908 = vmatpush2.xpose.msra.mxu0 0.0
    %1909 = vmatprep.subr.mxu0 0.0
    %1910 = vmatpush2.xpose.msra.mxu0 0.0
    %1911 = vmatprep.subr.mxu0 0.0
    %1912 = vmatpush2.xpose.msra.mxu0 0.0
    %1913 = vmatprep.subr.mxu0 0.0
    %1914 = vmatpush2.xpose.msra.mxu0 0.0
    %1915 = vmatprep.subr.mxu0 0.0
    %1916 = vmatpush2.xpose.msra.mxu0 0.0
    %1917 = vmatprep.subr.mxu0 0.0
    %1918 = vmatpush2.xpose.msra.mxu0 0.0
    %1919 = vmatprep.subr.mxu0 0.0
    %1920 = vmatpush2.xpose.msra.mxu0 0.0
    %1921 = vmatprep.subr.mxu0 0.0
    %1922 = vmatpush2.xpose.msra.mxu0 0.0
    %1923 = vmatprep.subr.mxu0 0.0
    %1924 = vmatpush2.xpose.msra.mxu0 0.0
    %1925 = vmatprep.subr.mxu0 0.0
    %1926 = vmatpush2.xpose.msra.mxu0 0.0
    %1927 = vmatprep.subr.mxu0 0.0
    %1928 = vmatpush2.xpose.msra.mxu0 0.0
    %1929 = vmatprep.subr.mxu0 0.0
    %1930 = vmatpush2.xpose.msra.mxu0 0.0
    %1931 = vmatprep.subr.mxu0 0.0
    %1932 = vmatpush2.xpose.msra.mxu0 0.0
    %v1933 = vand.u32 %v96, 4294901760
    %v1934 = vsub.f32 %v96, %v1933
    %v1935 = vand.u32 %v1934, 4294901760
    %1936 = vmatprep.mubr.f32.mxu0 %v1935
    %v1937 = vand.u32 %v94, 4294901760
    %v1938 = vsub.f32 %v94, %v1937
    %v1939 = vand.u32 %v1938, 4294901760
    %1940 = vmatmul.mubr.f32.gmra.mxu0 %v1939
    %v1941 = vpop.f32.mrf.mxu0
    %v1942 = vadd.f32 %v1862, %v1941
    %v1943 = vpop.f32.mrf.mxu0
    %1944 = vdwg.mxu0
    %1945 = vmatprep.subr.mxu0 0.0
    %1946 = vmatpush1.xpose.msra.mxu0 0.0
    %1947 = vmatprep.subr.mxu0 0.0
    %1948 = vmatpush1.xpose.msra.mxu0 0.0
    %1949 = vmatprep.subr.mxu0 0.0
    %1950 = vmatpush1.xpose.msra.mxu0 0.0
    %1951 = vmatprep.subr.mxu0 0.0
    %1952 = vmatpush1.xpose.msra.mxu0 0.0
    %1953 = vmatprep.subr.mxu0 0.0
    %1954 = vmatpush1.xpose.msra.mxu0 0.0
    %1955 = vmatprep.subr.mxu0 0.0
    %1956 = vmatpush1.xpose.msra.mxu0 0.0
    %1957 = vmatprep.subr.mxu0 0.0
    %1958 = vmatpush1.xpose.msra.mxu0 0.0
    %1959 = vmatprep.subr.mxu0 0.0
    %1960 = vmatpush1.xpose.msra.mxu0 0.0
    %1961 = vmatprep.subr.mxu0 0.0
    %1962 = vmatpush1.xpose.msra.mxu0 0.0
    %1963 = vmatprep.subr.mxu0 0.0
    %1964 = vmatpush1.xpose.msra.mxu0 0.0
    %1965 = vmatprep.subr.mxu0 0.0
    %1966 = vmatpush1.xpose.msra.mxu0 0.0
    %1967 = vmatprep.subr.mxu0 0.0
    %1968 = vmatpush1.xpose.msra.mxu0 0.0
    %1969 = vmatprep.subr.mxu0 0.0
    %1970 = vmatpush1.xpose.msra.mxu0 0.0
    %1971 = vmatprep.subr.mxu0 0.0
    %1972 = vmatpush1.xpose.msra.mxu0 0.0
    %v1973 = vand.u32 %v51, 4294901760
    %v1974 = vsub.f32 %v51, %v1973
    %v1975 = vand.u32 %v1974, 4294901760
    %1976 = vmatprep.subr.mxu0 %v1975
    %v1977 = vand.u32 %v50, 4294901760
    %v1978 = vsub.f32 %v50, %v1977
    %v1979 = vand.u32 %v1978, 4294901760
    %1980 = vmatpush1.xpose.msra.mxu0 %v1979
    %v1981 = vand.u32 %v42, 4294901760
    %v1982 = vsub.f32 %v42, %v1981
    %v1983 = vand.u32 %v1982, 4294901760
    %1984 = vmatprep.subr.mxu0 %v1983
    %v1985 = vand.u32 %v41, 4294901760
    %v1986 = vsub.f32 %v41, %v1985
    %v1987 = vand.u32 %v1986, 4294901760
    %1988 = vmatpush1.xpose.msra.mxu0 %v1987
    %1989 = vmatprep.subr.mxu0 0.0
    %1990 = vmatpush2.xpose.msra.mxu0 0.0
    %1991 = vmatprep.subr.mxu0 0.0
    %1992 = vmatpush2.xpose.msra.mxu0 0.0
    %1993 = vmatprep.subr.mxu0 0.0
    %1994 = vmatpush2.xpose.msra.mxu0 0.0
    %1995 = vmatprep.subr.mxu0 0.0
    %1996 = vmatpush2.xpose.msra.mxu0 0.0
    %1997 = vmatprep.subr.mxu0 0.0
    %1998 = vmatpush2.xpose.msra.mxu0 0.0
    %1999 = vmatprep.subr.mxu0 0.0
    %2000 = vmatpush2.xpose.msra.mxu0 0.0
    %2001 = vmatprep.subr.mxu0 0.0
    %2002 = vmatpush2.xpose.msra.mxu0 0.0
    %2003 = vmatprep.subr.mxu0 0.0
    %2004 = vmatpush2.xpose.msra.mxu0 0.0
    %2005 = vmatprep.subr.mxu0 0.0
    %2006 = vmatpush2.xpose.msra.mxu0 0.0
    %2007 = vmatprep.subr.mxu0 0.0
    %2008 = vmatpush2.xpose.msra.mxu0 0.0
    %2009 = vmatprep.subr.mxu0 0.0
    %2010 = vmatpush2.xpose.msra.mxu0 0.0
    %2011 = vmatprep.subr.mxu0 0.0
    %2012 = vmatpush2.xpose.msra.mxu0 0.0
    %2013 = vmatprep.subr.mxu0 0.0
    %2014 = vmatpush2.xpose.msra.mxu0 0.0
    %2015 = vmatprep.subr.mxu0 0.0
    %2016 = vmatpush2.xpose.msra.mxu0 0.0
    %2017 = vmatprep.subr.mxu0 0.0
    %2018 = vmatpush2.xpose.msra.mxu0 0.0
    %2019 = vmatprep.subr.mxu0 0.0
    %2020 = vmatpush2.xpose.msra.mxu0 0.0
    %v2021 = vand.u32 %v96, 4294901760
    %2022 = vmatprep.mubr.f32.mxu0 %v2021
    %v2023 = vand.u32 %v94, 4294901760
    %2024 = vmatmul.mubr.f32.gmra.mxu0 %v2023
    %v2025 = vpop.f32.mrf.mxu0
    %v2026 = vadd.f32 %v1942, %v2025
    %v2027 = vpop.f32.mrf.mxu0
    %2028 = vdwg.mxu0
    %2029 = vmatprep.subr.mxu0 0.0
    %2030 = vmatpush1.xpose.msra.mxu0 0.0
    %2031 = vmatprep.subr.mxu0 0.0
    %2032 = vmatpush1.xpose.msra.mxu0 0.0
    %2033 = vmatprep.subr.mxu0 0.0
    %2034 = vmatpush1.xpose.msra.mxu0 0.0
    %2035 = vmatprep.subr.mxu0 0.0
    %2036 = vmatpush1.xpose.msra.mxu0 0.0
    %2037 = vmatprep.subr.mxu0 0.0
    %2038 = vmatpush1.xpose.msra.mxu0 0.0
    %2039 = vmatprep.subr.mxu0 0.0
    %2040 = vmatpush1.xpose.msra.mxu0 0.0
    %2041 = vmatprep.subr.mxu0 0.0
    %2042 = vmatpush1.xpose.msra.mxu0 0.0
    %2043 = vmatprep.subr.mxu0 0.0
    %2044 = vmatpush1.xpose.msra.mxu0 0.0
    %2045 = vmatprep.subr.mxu0 0.0
    %2046 = vmatpush1.xpose.msra.mxu0 0.0
    %2047 = vmatprep.subr.mxu0 0.0
    %2048 = vmatpush1.xpose.msra.mxu0 0.0
    %2049 = vmatprep.subr.mxu0 0.0
    %2050 = vmatpush1.xpose.msra.mxu0 0.0
    %2051 = vmatprep.subr.mxu0 0.0
    %2052 = vmatpush1.xpose.msra.mxu0 0.0
    %2053 = vmatprep.subr.mxu0 0.0
    %2054 = vmatpush1.xpose.msra.mxu0 0.0
    %2055 = vmatprep.subr.mxu0 0.0
    %2056 = vmatpush1.xpose.msra.mxu0 0.0
    %v2057 = vand.u32 %v51, 4294901760
    %2058 = vmatprep.subr.mxu0 %v2057
    %v2059 = vand.u32 %v50, 4294901760
    %2060 = vmatpush1.xpose.msra.mxu0 %v2059
    %v2061 = vand.u32 %v42, 4294901760
    %2062 = vmatprep.subr.mxu0 %v2061
    %v2063 = vand.u32 %v41, 4294901760
    %2064 = vmatpush1.xpose.msra.mxu0 %v2063
    %2065 = vmatprep.subr.mxu0 0.0
    %2066 = vmatpush2.xpose.msra.mxu0 0.0
    %2067 = vmatprep.subr.mxu0 0.0
    %2068 = vmatpush2.xpose.msra.mxu0 0.0
    %2069 = vmatprep.subr.mxu0 0.0
    %2070 = vmatpush2.xpose.msra.mxu0 0.0
    %2071 = vmatprep.subr.mxu0 0.0
    %2072 = vmatpush2.xpose.msra.mxu0 0.0
    %2073 = vmatprep.subr.mxu0 0.0
    %2074 = vmatpush2.xpose.msra.mxu0 0.0
    %2075 = vmatprep.subr.mxu0 0.0
    %2076 = vmatpush2.xpose.msra.mxu0 0.0
    %2077 = vmatprep.subr.mxu0 0.0
    %2078 = vmatpush2.xpose.msra.mxu0 0.0
    %2079 = vmatprep.subr.mxu0 0.0
    %2080 = vmatpush2.xpose.msra.mxu0 0.0
    %2081 = vmatprep.subr.mxu0 0.0
    %2082 = vmatpush2.xpose.msra.mxu0 0.0
    %2083 = vmatprep.subr.mxu0 0.0
    %2084 = vmatpush2.xpose.msra.mxu0 0.0
    %2085 = vmatprep.subr.mxu0 0.0
    %2086 = vmatpush2.xpose.msra.mxu0 0.0
    %2087 = vmatprep.subr.mxu0 0.0
    %2088 = vmatpush2.xpose.msra.mxu0 0.0
    %2089 = vmatprep.subr.mxu0 0.0
    %2090 = vmatpush2.xpose.msra.mxu0 0.0
    %2091 = vmatprep.subr.mxu0 0.0
    %2092 = vmatpush2.xpose.msra.mxu0 0.0
    %2093 = vmatprep.subr.mxu0 0.0
    %2094 = vmatpush2.xpose.msra.mxu0 0.0
    %2095 = vmatprep.subr.mxu0 0.0
    %2096 = vmatpush2.xpose.msra.mxu0 0.0
    %v2097 = vand.u32 %v96, 4294901760
    %2098 = vmatprep.mubr.f32.mxu0 %v2097
    %v2099 = vand.u32 %v94, 4294901760
    %2100 = vmatmul.mubr.f32.gmra.mxu0 %v2099
    %v2101 = vpop.f32.mrf.mxu0
    %v2102 = vadd.f32 %v2026, %v2101
    %v2103 = vpop.f32.mrf.mxu0
    %2104 = vdwg.mxu0
    %2105 = vmatprep.subr.mxu0 0.0
    %2106 = vmatpush1.xpose.msra.mxu0 0.0
    %2107 = vmatprep.subr.mxu0 0.0
    %2108 = vmatpush1.xpose.msra.mxu0 0.0
    %2109 = vmatprep.subr.mxu0 0.0
    %2110 = vmatpush1.xpose.msra.mxu0 0.0
    %2111 = vmatprep.subr.mxu0 0.0
    %2112 = vmatpush1.xpose.msra.mxu0 0.0
    %2113 = vmatprep.subr.mxu0 0.0
    %2114 = vmatpush1.xpose.msra.mxu0 0.0
    %2115 = vmatprep.subr.mxu0 0.0
    %2116 = vmatpush1.xpose.msra.mxu0 0.0
    %2117 = vmatprep.subr.mxu0 0.0
    %2118 = vmatpush1.xpose.msra.mxu0 0.0
    %2119 = vmatprep.subr.mxu0 0.0
    %2120 = vmatpush1.xpose.msra.mxu0 0.0
    %2121 = vmatprep.subr.mxu0 0.0
    %2122 = vmatpush1.xpose.msra.mxu0 0.0
    %2123 = vmatprep.subr.mxu0 0.0
    %2124 = vmatpush1.xpose.msra.mxu0 0.0
    %2125 = vmatprep.subr.mxu0 0.0
    %2126 = vmatpush1.xpose.msra.mxu0 0.0
    %2127 = vmatprep.subr.mxu0 0.0
    %2128 = vmatpush1.xpose.msra.mxu0 0.0
    %2129 = vmatprep.subr.mxu0 0.0
    %2130 = vmatpush1.xpose.msra.mxu0 0.0
    %2131 = vmatprep.subr.mxu0 0.0
    %2132 = vmatpush1.xpose.msra.mxu0 0.0
    %2133 = vmatprep.subr.mxu0 0.0
    %v2134 = vand.u32 %v52, 4294901760
    %2135 = vmatpush1.xpose.msra.mxu0 %v2134
    %2136 = vmatprep.subr.mxu0 0.0
    %v2137 = vand.u32 %v43, 4294901760
    %2138 = vmatpush1.xpose.msra.mxu0 %v2137
    %2139 = vmatprep.subr.mxu0 0.0
    %2140 = vmatpush2.xpose.msra.mxu0 0.0
    %2141 = vmatprep.subr.mxu0 0.0
    %2142 = vmatpush2.xpose.msra.mxu0 0.0
    %2143 = vmatprep.subr.mxu0 0.0
    %2144 = vmatpush2.xpose.msra.mxu0 0.0
    %2145 = vmatprep.subr.mxu0 0.0
    %2146 = vmatpush2.xpose.msra.mxu0 0.0
    %2147 = vmatprep.subr.mxu0 0.0
    %2148 = vmatpush2.xpose.msra.mxu0 0.0
    %2149 = vmatprep.subr.mxu0 0.0
    %2150 = vmatpush2.xpose.msra.mxu0 0.0
    %2151 = vmatprep.subr.mxu0 0.0
    %2152 = vmatpush2.xpose.msra.mxu0 0.0
    %2153 = vmatprep.subr.mxu0 0.0
    %2154 = vmatpush2.xpose.msra.mxu0 0.0
    %2155 = vmatprep.subr.mxu0 0.0
    %2156 = vmatpush2.xpose.msra.mxu0 0.0
    %2157 = vmatprep.subr.mxu0 0.0
    %2158 = vmatpush2.xpose.msra.mxu0 0.0
    %2159 = vmatprep.subr.mxu0 0.0
    %2160 = vmatpush2.xpose.msra.mxu0 0.0
    %2161 = vmatprep.subr.mxu0 0.0
    %2162 = vmatpush2.xpose.msra.mxu0 0.0
    %2163 = vmatprep.subr.mxu0 0.0
    %2164 = vmatpush2.xpose.msra.mxu0 0.0
    %2165 = vmatprep.subr.mxu0 0.0
    %2166 = vmatpush2.xpose.msra.mxu0 0.0
    %2167 = vmatprep.subr.mxu0 0.0
    %2168 = vmatpush2.xpose.msra.mxu0 0.0
    %2169 = vmatprep.subr.mxu0 0.0
    %2170 = vmatpush2.xpose.msra.mxu0 0.0
    %2171 = vmatprep.mubr.f32.mxu0 0.0
    %v2172 = vand.u32 %v103, 4294901760
    %v2173 = vsub.f32 %v103, %v2172
    %v2174 = vand.u32 %v2173, 4294901760
    %v2175 = vsub.f32 %v2173, %v2174
    %v2176 = vand.u32 %v2175, 4294901760
    %2177 = vmatmul.mubr.f32.gmra.mxu0 %v2176
    %v2178 = vpop.f32.mrf.mxu0
    %v2179 = vadd.f32 %v2102, %v2178
    %v2180 = vpop.f32.mrf.mxu0
    %2181 = vdwg.mxu0
    %2182 = vmatprep.subr.mxu0 0.0
    %2183 = vmatpush1.xpose.msra.mxu0 0.0
    %2184 = vmatprep.subr.mxu0 0.0
    %2185 = vmatpush1.xpose.msra.mxu0 0.0
    %2186 = vmatprep.subr.mxu0 0.0
    %2187 = vmatpush1.xpose.msra.mxu0 0.0
    %2188 = vmatprep.subr.mxu0 0.0
    %2189 = vmatpush1.xpose.msra.mxu0 0.0
    %2190 = vmatprep.subr.mxu0 0.0
    %2191 = vmatpush1.xpose.msra.mxu0 0.0
    %2192 = vmatprep.subr.mxu0 0.0
    %2193 = vmatpush1.xpose.msra.mxu0 0.0
    %2194 = vmatprep.subr.mxu0 0.0
    %2195 = vmatpush1.xpose.msra.mxu0 0.0
    %2196 = vmatprep.subr.mxu0 0.0
    %2197 = vmatpush1.xpose.msra.mxu0 0.0
    %2198 = vmatprep.subr.mxu0 0.0
    %2199 = vmatpush1.xpose.msra.mxu0 0.0
    %2200 = vmatprep.subr.mxu0 0.0
    %2201 = vmatpush1.xpose.msra.mxu0 0.0
    %2202 = vmatprep.subr.mxu0 0.0
    %2203 = vmatpush1.xpose.msra.mxu0 0.0
    %2204 = vmatprep.subr.mxu0 0.0
    %2205 = vmatpush1.xpose.msra.mxu0 0.0
    %2206 = vmatprep.subr.mxu0 0.0
    %2207 = vmatpush1.xpose.msra.mxu0 0.0
    %2208 = vmatprep.subr.mxu0 0.0
    %2209 = vmatpush1.xpose.msra.mxu0 0.0
    %2210 = vmatprep.subr.mxu0 0.0
    %v2211 = vand.u32 %v52, 4294901760
    %v2212 = vsub.f32 %v52, %v2211
    %v2213 = vand.u32 %v2212, 4294901760
    %v2214 = vsub.f32 %v2212, %v2213
    %v2215 = vand.u32 %v2214, 4294901760
    %2216 = vmatpush1.xpose.msra.mxu0 %v2215
    %2217 = vmatprep.subr.mxu0 0.0
    %v2218 = vand.u32 %v43, 4294901760
    %v2219 = vsub.f32 %v43, %v2218
    %v2220 = vand.u32 %v2219, 4294901760
    %v2221 = vsub.f32 %v2219, %v2220
    %v2222 = vand.u32 %v2221, 4294901760
    %2223 = vmatpush1.xpose.msra.mxu0 %v2222
    %2224 = vmatprep.subr.mxu0 0.0
    %2225 = vmatpush2.xpose.msra.mxu0 0.0
    %2226 = vmatprep.subr.mxu0 0.0
    %2227 = vmatpush2.xpose.msra.mxu0 0.0
    %2228 = vmatprep.subr.mxu0 0.0
    %2229 = vmatpush2.xpose.msra.mxu0 0.0
    %2230 = vmatprep.subr.mxu0 0.0
    %2231 = vmatpush2.xpose.msra.mxu0 0.0
    %2232 = vmatprep.subr.mxu0 0.0
    %2233 = vmatpush2.xpose.msra.mxu0 0.0
    %2234 = vmatprep.subr.mxu0 0.0
    %2235 = vmatpush2.xpose.msra.mxu0 0.0
    %2236 = vmatprep.subr.mxu0 0.0
    %2237 = vmatpush2.xpose.msra.mxu0 0.0
    %2238 = vmatprep.subr.mxu0 0.0
    %2239 = vmatpush2.xpose.msra.mxu0 0.0
    %2240 = vmatprep.subr.mxu0 0.0
    %2241 = vmatpush2.xpose.msra.mxu0 0.0
    %2242 = vmatprep.subr.mxu0 0.0
    %2243 = vmatpush2.xpose.msra.mxu0 0.0
    %2244 = vmatprep.subr.mxu0 0.0
    %2245 = vmatpush2.xpose.msra.mxu0 0.0
    %2246 = vmatprep.subr.mxu0 0.0
    %2247 = vmatpush2.xpose.msra.mxu0 0.0
    %2248 = vmatprep.subr.mxu0 0.0
    %2249 = vmatpush2.xpose.msra.mxu0 0.0
    %2250 = vmatprep.subr.mxu0 0.0
    %2251 = vmatpush2.xpose.msra.mxu0 0.0
    %2252 = vmatprep.subr.mxu0 0.0
    %2253 = vmatpush2.xpose.msra.mxu0 0.0
    %2254 = vmatprep.subr.mxu0 0.0
    %2255 = vmatpush2.xpose.msra.mxu0 0.0
    %2256 = vmatprep.mubr.f32.mxu0 0.0
    %v2257 = vand.u32 %v103, 4294901760
    %2258 = vmatmul.mubr.f32.gmra.mxu0 %v2257
    %v2259 = vpop.f32.mrf.mxu0
    %v2260 = vadd.f32 %v2179, %v2259
    %v2261 = vpop.f32.mrf.mxu0
    %2262 = vdwg.mxu0
    %2263 = vmatprep.subr.mxu0 0.0
    %2264 = vmatpush1.xpose.msra.mxu0 0.0
    %2265 = vmatprep.subr.mxu0 0.0
    %2266 = vmatpush1.xpose.msra.mxu0 0.0
    %2267 = vmatprep.subr.mxu0 0.0
    %2268 = vmatpush1.xpose.msra.mxu0 0.0
    %2269 = vmatprep.subr.mxu0 0.0
    %2270 = vmatpush1.xpose.msra.mxu0 0.0
    %2271 = vmatprep.subr.mxu0 0.0
    %2272 = vmatpush1.xpose.msra.mxu0 0.0
    %2273 = vmatprep.subr.mxu0 0.0
    %2274 = vmatpush1.xpose.msra.mxu0 0.0
    %2275 = vmatprep.subr.mxu0 0.0
    %2276 = vmatpush1.xpose.msra.mxu0 0.0
    %2277 = vmatprep.subr.mxu0 0.0
    %2278 = vmatpush1.xpose.msra.mxu0 0.0
    %2279 = vmatprep.subr.mxu0 0.0
    %2280 = vmatpush1.xpose.msra.mxu0 0.0
    %2281 = vmatprep.subr.mxu0 0.0
    %2282 = vmatpush1.xpose.msra.mxu0 0.0
    %2283 = vmatprep.subr.mxu0 0.0
    %2284 = vmatpush1.xpose.msra.mxu0 0.0
    %2285 = vmatprep.subr.mxu0 0.0
    %2286 = vmatpush1.xpose.msra.mxu0 0.0
    %2287 = vmatprep.subr.mxu0 0.0
    %2288 = vmatpush1.xpose.msra.mxu0 0.0
    %2289 = vmatprep.subr.mxu0 0.0
    %2290 = vmatpush1.xpose.msra.mxu0 0.0
    %2291 = vmatprep.subr.mxu0 0.0
    %v2292 = vand.u32 %v52, 4294901760
    %v2293 = vsub.f32 %v52, %v2292
    %2294 = vmatpush1.xpose.msra.mxu0 %v2293
    %2295 = vmatprep.subr.mxu0 0.0
    %v2296 = vand.u32 %v43, 4294901760
    %v2297 = vsub.f32 %v43, %v2296
    %2298 = vmatpush1.xpose.msra.mxu0 %v2297
    %2299 = vmatprep.subr.mxu0 0.0
    %2300 = vmatpush2.xpose.msra.mxu0 0.0
    %2301 = vmatprep.subr.mxu0 0.0
    %2302 = vmatpush2.xpose.msra.mxu0 0.0
    %2303 = vmatprep.subr.mxu0 0.0
    %2304 = vmatpush2.xpose.msra.mxu0 0.0
    %2305 = vmatprep.subr.mxu0 0.0
    %2306 = vmatpush2.xpose.msra.mxu0 0.0
    %2307 = vmatprep.subr.mxu0 0.0
    %2308 = vmatpush2.xpose.msra.mxu0 0.0
    %2309 = vmatprep.subr.mxu0 0.0
    %2310 = vmatpush2.xpose.msra.mxu0 0.0
    %2311 = vmatprep.subr.mxu0 0.0
    %2312 = vmatpush2.xpose.msra.mxu0 0.0
    %2313 = vmatprep.subr.mxu0 0.0
    %2314 = vmatpush2.xpose.msra.mxu0 0.0
    %2315 = vmatprep.subr.mxu0 0.0
    %2316 = vmatpush2.xpose.msra.mxu0 0.0
    %2317 = vmatprep.subr.mxu0 0.0
    %2318 = vmatpush2.xpose.msra.mxu0 0.0
    %2319 = vmatprep.subr.mxu0 0.0
    %2320 = vmatpush2.xpose.msra.mxu0 0.0
    %2321 = vmatprep.subr.mxu0 0.0
    %2322 = vmatpush2.xpose.msra.mxu0 0.0
    %2323 = vmatprep.subr.mxu0 0.0
    %2324 = vmatpush2.xpose.msra.mxu0 0.0
    %2325 = vmatprep.subr.mxu0 0.0
    %2326 = vmatpush2.xpose.msra.mxu0 0.0
    %2327 = vmatprep.subr.mxu0 0.0
    %2328 = vmatpush2.xpose.msra.mxu0 0.0
    %2329 = vmatprep.subr.mxu0 0.0
    %2330 = vmatpush2.xpose.msra.mxu0 0.0
    %2331 = vmatprep.mubr.f32.mxu0 0.0
    %v2332 = vand.u32 %v103, 4294901760
    %v2333 = vsub.f32 %v103, %v2332
    %2334 = vmatmul.mubr.f32.gmra.mxu0 %v2333
    %v2335 = vpop.f32.mrf.mxu0
    %v2336 = vadd.f32 %v2260, %v2335
    %v2337 = vpop.f32.mrf.mxu0
    %2338 = vdwg.mxu0
    %2339 = vmatprep.subr.mxu0 0.0
    %2340 = vmatpush1.xpose.msra.mxu0 0.0
    %2341 = vmatprep.subr.mxu0 0.0
    %2342 = vmatpush1.xpose.msra.mxu0 0.0
    %2343 = vmatprep.subr.mxu0 0.0
    %2344 = vmatpush1.xpose.msra.mxu0 0.0
    %2345 = vmatprep.subr.mxu0 0.0
    %2346 = vmatpush1.xpose.msra.mxu0 0.0
    %2347 = vmatprep.subr.mxu0 0.0
    %2348 = vmatpush1.xpose.msra.mxu0 0.0
    %2349 = vmatprep.subr.mxu0 0.0
    %2350 = vmatpush1.xpose.msra.mxu0 0.0
    %2351 = vmatprep.subr.mxu0 0.0
    %2352 = vmatpush1.xpose.msra.mxu0 0.0
    %2353 = vmatprep.subr.mxu0 0.0
    %2354 = vmatpush1.xpose.msra.mxu0 0.0
    %2355 = vmatprep.subr.mxu0 0.0
    %2356 = vmatpush1.xpose.msra.mxu0 0.0
    %2357 = vmatprep.subr.mxu0 0.0
    %2358 = vmatpush1.xpose.msra.mxu0 0.0
    %2359 = vmatprep.subr.mxu0 0.0
    %2360 = vmatpush1.xpose.msra.mxu0 0.0
    %2361 = vmatprep.subr.mxu0 0.0
    %2362 = vmatpush1.xpose.msra.mxu0 0.0
    %2363 = vmatprep.subr.mxu0 0.0
    %2364 = vmatpush1.xpose.msra.mxu0 0.0
    %2365 = vmatprep.subr.mxu0 0.0
    %2366 = vmatpush1.xpose.msra.mxu0 0.0
    %2367 = vmatprep.subr.mxu0 0.0
    %v2368 = vand.u32 %v52, 4294901760
    %2369 = vmatpush1.xpose.msra.mxu0 %v2368
    %2370 = vmatprep.subr.mxu0 0.0
    %v2371 = vand.u32 %v43, 4294901760
    %2372 = vmatpush1.xpose.msra.mxu0 %v2371
    %2373 = vmatprep.subr.mxu0 0.0
    %2374 = vmatpush2.xpose.msra.mxu0 0.0
    %2375 = vmatprep.subr.mxu0 0.0
    %2376 = vmatpush2.xpose.msra.mxu0 0.0
    %2377 = vmatprep.subr.mxu0 0.0
    %2378 = vmatpush2.xpose.msra.mxu0 0.0
    %2379 = vmatprep.subr.mxu0 0.0
    %2380 = vmatpush2.xpose.msra.mxu0 0.0
    %2381 = vmatprep.subr.mxu0 0.0
    %2382 = vmatpush2.xpose.msra.mxu0 0.0
    %2383 = vmatprep.subr.mxu0 0.0
    %2384 = vmatpush2.xpose.msra.mxu0 0.0
    %2385 = vmatprep.subr.mxu0 0.0
    %2386 = vmatpush2.xpose.msra.mxu0 0.0
    %2387 = vmatprep.subr.mxu0 0.0
    %2388 = vmatpush2.xpose.msra.mxu0 0.0
    %2389 = vmatprep.subr.mxu0 0.0
    %2390 = vmatpush2.xpose.msra.mxu0 0.0
    %2391 = vmatprep.subr.mxu0 0.0
    %2392 = vmatpush2.xpose.msra.mxu0 0.0
    %2393 = vmatprep.subr.mxu0 0.0
    %2394 = vmatpush2.xpose.msra.mxu0 0.0
    %2395 = vmatprep.subr.mxu0 0.0
    %2396 = vmatpush2.xpose.msra.mxu0 0.0
    %2397 = vmatprep.subr.mxu0 0.0
    %2398 = vmatpush2.xpose.msra.mxu0 0.0
    %2399 = vmatprep.subr.mxu0 0.0
    %2400 = vmatpush2.xpose.msra.mxu0 0.0
    %2401 = vmatprep.subr.mxu0 0.0
    %2402 = vmatpush2.xpose.msra.mxu0 0.0
    %2403 = vmatprep.subr.mxu0 0.0
    %2404 = vmatpush2.xpose.msra.mxu0 0.0
    %2405 = vmatprep.mubr.f32.mxu0 0.0
    %v2406 = vand.u32 %v103, 4294901760
    %v2407 = vsub.f32 %v103, %v2406
    %v2408 = vand.u32 %v2407, 4294901760
    %2409 = vmatmul.mubr.f32.gmra.mxu0 %v2408
    %v2410 = vpop.f32.mrf.mxu0
    %v2411 = vadd.f32 %v2336, %v2410
    %v2412 = vpop.f32.mrf.mxu0
    %2413 = vdwg.mxu0
    %2414 = vmatprep.subr.mxu0 0.0
    %2415 = vmatpush1.xpose.msra.mxu0 0.0
    %2416 = vmatprep.subr.mxu0 0.0
    %2417 = vmatpush1.xpose.msra.mxu0 0.0
    %2418 = vmatprep.subr.mxu0 0.0
    %2419 = vmatpush1.xpose.msra.mxu0 0.0
    %2420 = vmatprep.subr.mxu0 0.0
    %2421 = vmatpush1.xpose.msra.mxu0 0.0
    %2422 = vmatprep.subr.mxu0 0.0
    %2423 = vmatpush1.xpose.msra.mxu0 0.0
    %2424 = vmatprep.subr.mxu0 0.0
    %2425 = vmatpush1.xpose.msra.mxu0 0.0
    %2426 = vmatprep.subr.mxu0 0.0
    %2427 = vmatpush1.xpose.msra.mxu0 0.0
    %2428 = vmatprep.subr.mxu0 0.0
    %2429 = vmatpush1.xpose.msra.mxu0 0.0
    %2430 = vmatprep.subr.mxu0 0.0
    %2431 = vmatpush1.xpose.msra.mxu0 0.0
    %2432 = vmatprep.subr.mxu0 0.0
    %2433 = vmatpush1.xpose.msra.mxu0 0.0
    %2434 = vmatprep.subr.mxu0 0.0
    %2435 = vmatpush1.xpose.msra.mxu0 0.0
    %2436 = vmatprep.subr.mxu0 0.0
    %2437 = vmatpush1.xpose.msra.mxu0 0.0
    %2438 = vmatprep.subr.mxu0 0.0
    %2439 = vmatpush1.xpose.msra.mxu0 0.0
    %2440 = vmatprep.subr.mxu0 0.0
    %2441 = vmatpush1.xpose.msra.mxu0 0.0
    %2442 = vmatprep.subr.mxu0 0.0
    %v2443 = vand.u32 %v52, 4294901760
    %v2444 = vsub.f32 %v52, %v2443
    %v2445 = vand.u32 %v2444, 4294901760
    %2446 = vmatpush1.xpose.msra.mxu0 %v2445
    %2447 = vmatprep.subr.mxu0 0.0
    %v2448 = vand.u32 %v43, 4294901760
    %v2449 = vsub.f32 %v43, %v2448
    %v2450 = vand.u32 %v2449, 4294901760
    %2451 = vmatpush1.xpose.msra.mxu0 %v2450
    %2452 = vmatprep.subr.mxu0 0.0
    %2453 = vmatpush2.xpose.msra.mxu0 0.0
    %2454 = vmatprep.subr.mxu0 0.0
    %2455 = vmatpush2.xpose.msra.mxu0 0.0
    %2456 = vmatprep.subr.mxu0 0.0
    %2457 = vmatpush2.xpose.msra.mxu0 0.0
    %2458 = vmatprep.subr.mxu0 0.0
    %2459 = vmatpush2.xpose.msra.mxu0 0.0
    %2460 = vmatprep.subr.mxu0 0.0
    %2461 = vmatpush2.xpose.msra.mxu0 0.0
    %2462 = vmatprep.subr.mxu0 0.0
    %2463 = vmatpush2.xpose.msra.mxu0 0.0
    %2464 = vmatprep.subr.mxu0 0.0
    %2465 = vmatpush2.xpose.msra.mxu0 0.0
    %2466 = vmatprep.subr.mxu0 0.0
    %2467 = vmatpush2.xpose.msra.mxu0 0.0
    %2468 = vmatprep.subr.mxu0 0.0
    %2469 = vmatpush2.xpose.msra.mxu0 0.0
    %2470 = vmatprep.subr.mxu0 0.0
    %2471 = vmatpush2.xpose.msra.mxu0 0.0
    %2472 = vmatprep.subr.mxu0 0.0
    %2473 = vmatpush2.xpose.msra.mxu0 0.0
    %2474 = vmatprep.subr.mxu0 0.0
    %2475 = vmatpush2.xpose.msra.mxu0 0.0
    %2476 = vmatprep.subr.mxu0 0.0
    %2477 = vmatpush2.xpose.msra.mxu0 0.0
    %2478 = vmatprep.subr.mxu0 0.0
    %2479 = vmatpush2.xpose.msra.mxu0 0.0
    %2480 = vmatprep.subr.mxu0 0.0
    %2481 = vmatpush2.xpose.msra.mxu0 0.0
    %2482 = vmatprep.subr.mxu0 0.0
    %2483 = vmatpush2.xpose.msra.mxu0 0.0
    %2484 = vmatprep.mubr.f32.mxu0 0.0
    %v2485 = vand.u32 %v103, 4294901760
    %2486 = vmatmul.mubr.f32.gmra.mxu0 %v2485
    %v2487 = vpop.f32.mrf.mxu0
    %v2488 = vadd.f32 %v2411, %v2487
    %v2489 = vpop.f32.mrf.mxu0
    %2490 = vdwg.mxu0
    %2491 = vmatprep.subr.mxu0 0.0
    %2492 = vmatpush1.xpose.msra.mxu0 0.0
    %2493 = vmatprep.subr.mxu0 0.0
    %2494 = vmatpush1.xpose.msra.mxu0 0.0
    %2495 = vmatprep.subr.mxu0 0.0
    %2496 = vmatpush1.xpose.msra.mxu0 0.0
    %2497 = vmatprep.subr.mxu0 0.0
    %2498 = vmatpush1.xpose.msra.mxu0 0.0
    %2499 = vmatprep.subr.mxu0 0.0
    %2500 = vmatpush1.xpose.msra.mxu0 0.0
    %2501 = vmatprep.subr.mxu0 0.0
    %2502 = vmatpush1.xpose.msra.mxu0 0.0
    %2503 = vmatprep.subr.mxu0 0.0
    %2504 = vmatpush1.xpose.msra.mxu0 0.0
    %2505 = vmatprep.subr.mxu0 0.0
    %2506 = vmatpush1.xpose.msra.mxu0 0.0
    %2507 = vmatprep.subr.mxu0 0.0
    %2508 = vmatpush1.xpose.msra.mxu0 0.0
    %2509 = vmatprep.subr.mxu0 0.0
    %2510 = vmatpush1.xpose.msra.mxu0 0.0
    %2511 = vmatprep.subr.mxu0 0.0
    %2512 = vmatpush1.xpose.msra.mxu0 0.0
    %2513 = vmatprep.subr.mxu0 0.0
    %2514 = vmatpush1.xpose.msra.mxu0 0.0
    %2515 = vmatprep.subr.mxu0 0.0
    %2516 = vmatpush1.xpose.msra.mxu0 0.0
    %2517 = vmatprep.subr.mxu0 0.0
    %2518 = vmatpush1.xpose.msra.mxu0 0.0
    %2519 = vmatprep.subr.mxu0 0.0
    %v2520 = vand.u32 %v52, 4294901760
    %2521 = vmatpush1.xpose.msra.mxu0 %v2520
    %2522 = vmatprep.subr.mxu0 0.0
    %v2523 = vand.u32 %v43, 4294901760
    %2524 = vmatpush1.xpose.msra.mxu0 %v2523
    %2525 = vmatprep.subr.mxu0 0.0
    %2526 = vmatpush2.xpose.msra.mxu0 0.0
    %2527 = vmatprep.subr.mxu0 0.0
    %2528 = vmatpush2.xpose.msra.mxu0 0.0
    %2529 = vmatprep.subr.mxu0 0.0
    %2530 = vmatpush2.xpose.msra.mxu0 0.0
    %2531 = vmatprep.subr.mxu0 0.0
    %2532 = vmatpush2.xpose.msra.mxu0 0.0
    %2533 = vmatprep.subr.mxu0 0.0
    %2534 = vmatpush2.xpose.msra.mxu0 0.0
    %2535 = vmatprep.subr.mxu0 0.0
    %2536 = vmatpush2.xpose.msra.mxu0 0.0
    %2537 = vmatprep.subr.mxu0 0.0
    %2538 = vmatpush2.xpose.msra.mxu0 0.0
    %2539 = vmatprep.subr.mxu0 0.0
    %2540 = vmatpush2.xpose.msra.mxu0 0.0
    %2541 = vmatprep.subr.mxu0 0.0
    %2542 = vmatpush2.xpose.msra.mxu0 0.0
    %2543 = vmatprep.subr.mxu0 0.0
    %2544 = vmatpush2.xpose.msra.mxu0 0.0
    %2545 = vmatprep.subr.mxu0 0.0
    %2546 = vmatpush2.xpose.msra.mxu0 0.0
    %2547 = vmatprep.subr.mxu0 0.0
    %2548 = vmatpush2.xpose.msra.mxu0 0.0
    %2549 = vmatprep.subr.mxu0 0.0
    %2550 = vmatpush2.xpose.msra.mxu0 0.0
    %2551 = vmatprep.subr.mxu0 0.0
    %2552 = vmatpush2.xpose.msra.mxu0 0.0
    %2553 = vmatprep.subr.mxu0 0.0
    %2554 = vmatpush2.xpose.msra.mxu0 0.0
    %2555 = vmatprep.subr.mxu0 0.0
    %2556 = vmatpush2.xpose.msra.mxu0 0.0
    %2557 = vmatprep.mubr.f32.mxu0 0.0
    %v2558 = vand.u32 %v103, 4294901760
    %2559 = vmatmul.mubr.f32.gmra.mxu0 %v2558
    %v2560 = vpop.f32.mrf.mxu0
    %v2561 = vadd.f32 %v2488, %v2560
    %v2562 = vpop.f32.mrf.mxu0
    %2563 = vdwg.mxu0
    %v2564 = vmax.f32 %v2561, 0.0
    %v2565 = vld [vmem:[%s3] sm:$0xff]
    %v2566 = vld [vmem:[%s3 + $0x8] sm:$0x7]
    %vm2567 = vcmask 89088
    %v2569 = vsel %vm2567, %v2564, 0
    %vm2571 = vcmask 1042432
    %v2573 = vsel %vm2571, %v2566, 0
    %2575 = vmatprep.subr.mxu0 0.0
    %2576 = vmatpush1.msra.mxu0 0.0
    %2577 = vmatprep.subr.mxu0 0.0
    %2578 = vmatpush1.msra.mxu0 0.0
    %2579 = vmatprep.subr.mxu0 0.0
    %2580 = vmatpush1.msra.mxu0 0.0
    %2581 = vmatprep.subr.mxu0 0.0
    %2582 = vmatpush1.msra.mxu0 0.0
    %2583 = vmatprep.subr.mxu0 0.0
    %2584 = vmatpush1.msra.mxu0 0.0
    %2585 = vmatprep.subr.mxu0 0.0
    %2586 = vmatpush1.msra.mxu0 0.0
    %2587 = vmatprep.subr.mxu0 0.0
    %2588 = vmatpush1.msra.mxu0 0.0
    %2589 = vmatprep.subr.mxu0 0.0
    %2590 = vmatpush1.msra.mxu0 0.0
    %2591 = vmatprep.subr.mxu0 0.0
    %2592 = vmatpush1.msra.mxu0 0.0
    %2593 = vmatprep.subr.mxu0 0.0
    %2594 = vmatpush1.msra.mxu0 0.0
    %2595 = vmatprep.subr.mxu0 0.0
    %2596 = vmatpush1.msra.mxu0 0.0
    %2597 = vmatprep.subr.mxu0 0.0
    %2598 = vmatpush1.msra.mxu0 0.0
    %2599 = vmatprep.subr.mxu0 0.0
    %2600 = vmatpush1.msra.mxu0 0.0
    %2601 = vmatprep.subr.mxu0 0.0
    %2602 = vmatpush1.msra.mxu0 0.0
    %2603 = vmatprep.subr.mxu0 0.0
    %v2604 = vand.u32 %v2573, 4294901760
    %2605 = vmatpush1.msra.mxu0 %v2604
    %2606 = vmatprep.subr.mxu0 0.0
    %v2607 = vand.u32 %v2565, 4294901760
    %2608 = vmatpush1.msra.mxu0 %v2607
    %2609 = vmatprep.subr.mxu0 0.0
    %2610 = vmatpush2.msra.mxu0 0.0
    %2611 = vmatprep.subr.mxu0 0.0
    %2612 = vmatpush2.msra.mxu0 0.0
    %2613 = vmatprep.subr.mxu0 0.0
    %2614 = vmatpush2.msra.mxu0 0.0
    %2615 = vmatprep.subr.mxu0 0.0
    %2616 = vmatpush2.msra.mxu0 0.0
    %2617 = vmatprep.subr.mxu0 0.0
    %2618 = vmatpush2.msra.mxu0 0.0
    %2619 = vmatprep.subr.mxu0 0.0
    %2620 = vmatpush2.msra.mxu0 0.0
    %2621 = vmatprep.subr.mxu0 0.0
    %2622 = vmatpush2.msra.mxu0 0.0
    %2623 = vmatprep.subr.mxu0 0.0
    %2624 = vmatpush2.msra.mxu0 0.0
    %2625 = vmatprep.subr.mxu0 0.0
    %2626 = vmatpush2.msra.mxu0 0.0
    %2627 = vmatprep.subr.mxu0 0.0
    %2628 = vmatpush2.msra.mxu0 0.0
    %2629 = vmatprep.subr.mxu0 0.0
    %2630 = vmatpush2.msra.mxu0 0.0
    %2631 = vmatprep.subr.mxu0 0.0
    %2632 = vmatpush2.msra.mxu0 0.0
    %2633 = vmatprep.subr.mxu0 0.0
    %2634 = vmatpush2.msra.mxu0 0.0
    %2635 = vmatprep.subr.mxu0 0.0
    %2636 = vmatpush2.msra.mxu0 0.0
    %2637 = vmatprep.subr.mxu0 0.0
    %2638 = vmatpush2.msra.mxu0 0.0
    %2639 = vmatprep.subr.mxu0 0.0
    %2640 = vmatpush2.msra.mxu0 0.0
    %2641 = vmatprep.mubr.f32.mxu0 0.0
    %v2642 = vand.u32 %v2569, 4294901760
    %v2643 = vsub.f32 %v2569, %v2642
    %v2644 = vand.u32 %v2643, 4294901760
    %v2645 = vsub.f32 %v2643, %v2644
    %v2646 = vand.u32 %v2645, 4294901760
    %2647 = vmatmul.mubr.f32.gmra.mxu0 %v2646
    %v2648 = vpop.f32.mrf.mxu0
    %v2649 = vadd.f32 0.0, %v2648
    %v2650 = vpop.f32.mrf.mxu0
    %2651 = vdwg.mxu0
    %2652 = vmatprep.subr.mxu0 0.0
    %2653 = vmatpush1.msra.mxu0 0.0
    %2654 = vmatprep.subr.mxu0 0.0
    %2655 = vmatpush1.msra.mxu0 0.0
    %2656 = vmatprep.subr.mxu0 0.0
    %2657 = vmatpush1.msra.mxu0 0.0
    %2658 = vmatprep.subr.mxu0 0.0
    %2659 = vmatpush1.msra.mxu0 0.0
    %2660 = vmatprep.subr.mxu0 0.0
    %2661 = vmatpush1.msra.mxu0 0.0
    %2662 = vmatprep.subr.mxu0 0.0
    %2663 = vmatpush1.msra.mxu0 0.0
    %2664 = vmatprep.subr.mxu0 0.0
    %2665 = vmatpush1.msra.mxu0 0.0
    %2666 = vmatprep.subr.mxu0 0.0
    %2667 = vmatpush1.msra.mxu0 0.0
    %2668 = vmatprep.subr.mxu0 0.0
    %2669 = vmatpush1.msra.mxu0 0.0
    %2670 = vmatprep.subr.mxu0 0.0
    %2671 = vmatpush1.msra.mxu0 0.0
    %2672 = vmatprep.subr.mxu0 0.0
    %2673 = vmatpush1.msra.mxu0 0.0
    %2674 = vmatprep.subr.mxu0 0.0
    %2675 = vmatpush1.msra.mxu0 0.0
    %2676 = vmatprep.subr.mxu0 0.0
    %2677 = vmatpush1.msra.mxu0 0.0
    %2678 = vmatprep.subr.mxu0 0.0
    %2679 = vmatpush1.msra.mxu0 0.0
    %2680 = vmatprep.subr.mxu0 0.0
    %v2681 = vand.u32 %v2573, 4294901760
    %v2682 = vsub.f32 %v2573, %v2681
    %v2683 = vand.u32 %v2682, 4294901760
    %v2684 = vsub.f32 %v2682, %v2683
    %v2685 = vand.u32 %v2684, 4294901760
    %2686 = vmatpush1.msra.mxu0 %v2685
    %2687 = vmatprep.subr.mxu0 0.0
    %v2688 = vand.u32 %v2565, 4294901760
    %v2689 = vsub.f32 %v2565, %v2688
    %v2690 = vand.u32 %v2689, 4294901760
    %v2691 = vsub.f32 %v2689, %v2690
    %v2692 = vand.u32 %v2691, 4294901760
    %2693 = vmatpush1.msra.mxu0 %v2692
    %2694 = vmatprep.subr.mxu0 0.0
    %2695 = vmatpush2.msra.mxu0 0.0
    %2696 = vmatprep.subr.mxu0 0.0
    %2697 = vmatpush2.msra.mxu0 0.0
    %2698 = vmatprep.subr.mxu0 0.0
    %2699 = vmatpush2.msra.mxu0 0.0
    %2700 = vmatprep.subr.mxu0 0.0
    %2701 = vmatpush2.msra.mxu0 0.0
    %2702 = vmatprep.subr.mxu0 0.0
    %2703 = vmatpush2.msra.mxu0 0.0
    %2704 = vmatprep.subr.mxu0 0.0
    %2705 = vmatpush2.msra.mxu0 0.0
    %2706 = vmatprep.subr.mxu0 0.0
    %2707 = vmatpush2.msra.mxu0 0.0
    %2708 = vmatprep.subr.mxu0 0.0
    %2709 = vmatpush2.msra.mxu0 0.0
    %2710 = vmatprep.subr.mxu0 0.0
    %2711 = vmatpush2.msra.mxu0 0.0
    %2712 = vmatprep.subr.mxu0 0.0
    %2713 = vmatpush2.msra.mxu0 0.0
    %2714 = vmatprep.subr.mxu0 0.0
    %2715 = vmatpush2.msra.mxu0 0.0
    %2716 = vmatprep.subr.mxu0 0.0
    %2717 = vmatpush2.msra.mxu0 0.0
    %2718 = vmatprep.subr.mxu0 0.0
    %2719 = vmatpush2.msra.mxu0 0.0
    %2720 = vmatprep.subr.mxu0 0.0
    %2721 = vmatpush2.msra.mxu0 0.0
    %2722 = vmatprep.subr.mxu0 0.0
    %2723 = vmatpush2.msra.mxu0 0.0
    %2724 = vmatprep.subr.mxu0 0.0
    %2725 = vmatpush2.msra.mxu0 0.0
    %2726 = vmatprep.mubr.f32.mxu0 0.0
    %v2727 = vand.u32 %v2569, 4294901760
    %2728 = vmatmul.mubr.f32.gmra.mxu0 %v2727
    %v2729 = vpop.f32.mrf.mxu0
    %v2730 = vadd.f32 %v2649, %v2729
    %v2731 = vpop.f32.mrf.mxu0
    %2732 = vdwg.mxu0
    %2733 = vmatprep.subr.mxu0 0.0
    %2734 = vmatpush1.msra.mxu0 0.0
    %2735 = vmatprep.subr.mxu0 0.0
    %2736 = vmatpush1.msra.mxu0 0.0
    %2737 = vmatprep.subr.mxu0 0.0
    %2738 = vmatpush1.msra.mxu0 0.0
    %2739 = vmatprep.subr.mxu0 0.0
    %2740 = vmatpush1.msra.mxu0 0.0
    %2741 = vmatprep.subr.mxu0 0.0
    %2742 = vmatpush1.msra.mxu0 0.0
    %2743 = vmatprep.subr.mxu0 0.0
    %2744 = vmatpush1.msra.mxu0 0.0
    %2745 = vmatprep.subr.mxu0 0.0
    %2746 = vmatpush1.msra.mxu0 0.0
    %2747 = vmatprep.subr.mxu0 0.0
    %2748 = vmatpush1.msra.mxu0 0.0
    %2749 = vmatprep.subr.mxu0 0.0
    %2750 = vmatpush1.msra.mxu0 0.0
    %2751 = vmatprep.subr.mxu0 0.0
    %2752 = vmatpush1.msra.mxu0 0.0
    %2753 = vmatprep.subr.mxu0 0.0
    %2754 = vmatpush1.msra.mxu0 0.0
    %2755 = vmatprep.subr.mxu0 0.0
    %2756 = vmatpush1.msra.mxu0 0.0
    %2757 = vmatprep.subr.mxu0 0.0
    %2758 = vmatpush1.msra.mxu0 0.0
    %2759 = vmatprep.subr.mxu0 0.0
    %2760 = vmatpush1.msra.mxu0 0.0
    %2761 = vmatprep.subr.mxu0 0.0
    %v2762 = vand.u32 %v2573, 4294901760
    %v2763 = vsub.f32 %v2573, %v2762
    %2764 = vmatpush1.msra.mxu0 %v2763
    %2765 = vmatprep.subr.mxu0 0.0
    %v2766 = vand.u32 %v2565, 4294901760
    %v2767 = vsub.f32 %v2565, %v2766
    %2768 = vmatpush1.msra.mxu0 %v2767
    %2769 = vmatprep.subr.mxu0 0.0
    %2770 = vmatpush2.msra.mxu0 0.0
    %2771 = vmatprep.subr.mxu0 0.0
    %2772 = vmatpush2.msra.mxu0 0.0
    %2773 = vmatprep.subr.mxu0 0.0
    %2774 = vmatpush2.msra.mxu0 0.0
    %2775 = vmatprep.subr.mxu0 0.0
    %2776 = vmatpush2.msra.mxu0 0.0
    %2777 = vmatprep.subr.mxu0 0.0
    %2778 = vmatpush2.msra.mxu0 0.0
    %2779 = vmatprep.subr.mxu0 0.0
    %2780 = vmatpush2.msra.mxu0 0.0
    %2781 = vmatprep.subr.mxu0 0.0
    %2782 = vmatpush2.msra.mxu0 0.0
    %2783 = vmatprep.subr.mxu0 0.0
    %2784 = vmatpush2.msra.mxu0 0.0
    %2785 = vmatprep.subr.mxu0 0.0
    %2786 = vmatpush2.msra.mxu0 0.0
    %2787 = vmatprep.subr.mxu0 0.0
    %2788 = vmatpush2.msra.mxu0 0.0
    %2789 = vmatprep.subr.mxu0 0.0
    %2790 = vmatpush2.msra.mxu0 0.0
    %2791 = vmatprep.subr.mxu0 0.0
    %2792 = vmatpush2.msra.mxu0 0.0
    %2793 = vmatprep.subr.mxu0 0.0
    %2794 = vmatpush2.msra.mxu0 0.0
    %2795 = vmatprep.subr.mxu0 0.0
    %2796 = vmatpush2.msra.mxu0 0.0
    %2797 = vmatprep.subr.mxu0 0.0
    %2798 = vmatpush2.msra.mxu0 0.0
    %2799 = vmatprep.subr.mxu0 0.0
    %2800 = vmatpush2.msra.mxu0 0.0
    %2801 = vmatprep.mubr.f32.mxu0 0.0
    %v2802 = vand.u32 %v2569, 4294901760
    %v2803 = vsub.f32 %v2569, %v2802
    %2804 = vmatmul.mubr.f32.gmra.mxu0 %v2803
    %v2805 = vpop.f32.mrf.mxu0
    %v2806 = vadd.f32 %v2730, %v2805
    %v2807 = vpop.f32.mrf.mxu0
    %2808 = vdwg.mxu0
    %2809 = vmatprep.subr.mxu0 0.0
    %2810 = vmatpush1.msra.mxu0 0.0
    %2811 = vmatprep.subr.mxu0 0.0
    %2812 = vmatpush1.msra.mxu0 0.0
    %2813 = vmatprep.subr.mxu0 0.0
    %2814 = vmatpush1.msra.mxu0 0.0
    %2815 = vmatprep.subr.mxu0 0.0
    %2816 = vmatpush1.msra.mxu0 0.0
    %2817 = vmatprep.subr.mxu0 0.0
    %2818 = vmatpush1.msra.mxu0 0.0
    %2819 = vmatprep.subr.mxu0 0.0
    %2820 = vmatpush1.msra.mxu0 0.0
    %2821 = vmatprep.subr.mxu0 0.0
    %2822 = vmatpush1.msra.mxu0 0.0
    %2823 = vmatprep.subr.mxu0 0.0
    %2824 = vmatpush1.msra.mxu0 0.0
    %2825 = vmatprep.subr.mxu0 0.0
    %2826 = vmatpush1.msra.mxu0 0.0
    %2827 = vmatprep.subr.mxu0 0.0
    %2828 = vmatpush1.msra.mxu0 0.0
    %2829 = vmatprep.subr.mxu0 0.0
    %2830 = vmatpush1.msra.mxu0 0.0
    %2831 = vmatprep.subr.mxu0 0.0
    %2832 = vmatpush1.msra.mxu0 0.0
    %2833 = vmatprep.subr.mxu0 0.0
    %2834 = vmatpush1.msra.mxu0 0.0
    %2835 = vmatprep.subr.mxu0 0.0
    %2836 = vmatpush1.msra.mxu0 0.0
    %2837 = vmatprep.subr.mxu0 0.0
    %v2838 = vand.u32 %v2573, 4294901760
    %2839 = vmatpush1.msra.mxu0 %v2838
    %2840 = vmatprep.subr.mxu0 0.0
    %v2841 = vand.u32 %v2565, 4294901760
    %2842 = vmatpush1.msra.mxu0 %v2841
    %2843 = vmatprep.subr.mxu0 0.0
    %2844 = vmatpush2.msra.mxu0 0.0
    %2845 = vmatprep.subr.mxu0 0.0
    %2846 = vmatpush2.msra.mxu0 0.0
    %2847 = vmatprep.subr.mxu0 0.0
    %2848 = vmatpush2.msra.mxu0 0.0
    %2849 = vmatprep.subr.mxu0 0.0
    %2850 = vmatpush2.msra.mxu0 0.0
    %2851 = vmatprep.subr.mxu0 0.0
    %2852 = vmatpush2.msra.mxu0 0.0
    %2853 = vmatprep.subr.mxu0 0.0
    %2854 = vmatpush2.msra.mxu0 0.0
    %2855 = vmatprep.subr.mxu0 0.0
    %2856 = vmatpush2.msra.mxu0 0.0
    %2857 = vmatprep.subr.mxu0 0.0
    %2858 = vmatpush2.msra.mxu0 0.0
    %2859 = vmatprep.subr.mxu0 0.0
    %2860 = vmatpush2.msra.mxu0 0.0
    %2861 = vmatprep.subr.mxu0 0.0
    %2862 = vmatpush2.msra.mxu0 0.0
    %2863 = vmatprep.subr.mxu0 0.0
    %2864 = vmatpush2.msra.mxu0 0.0
    %2865 = vmatprep.subr.mxu0 0.0
    %2866 = vmatpush2.msra.mxu0 0.0
    %2867 = vmatprep.subr.mxu0 0.0
    %2868 = vmatpush2.msra.mxu0 0.0
    %2869 = vmatprep.subr.mxu0 0.0
    %2870 = vmatpush2.msra.mxu0 0.0
    %2871 = vmatprep.subr.mxu0 0.0
    %2872 = vmatpush2.msra.mxu0 0.0
    %2873 = vmatprep.subr.mxu0 0.0
    %2874 = vmatpush2.msra.mxu0 0.0
    %2875 = vmatprep.mubr.f32.mxu0 0.0
    %v2876 = vand.u32 %v2569, 4294901760
    %v2877 = vsub.f32 %v2569, %v2876
    %v2878 = vand.u32 %v2877, 4294901760
    %2879 = vmatmul.mubr.f32.gmra.mxu0 %v2878
    %v2880 = vpop.f32.mrf.mxu0
    %v2881 = vadd.f32 %v2806, %v2880
    %v2882 = vpop.f32.mrf.mxu0
    %2883 = vdwg.mxu0
    %2884 = vmatprep.subr.mxu0 0.0
    %2885 = vmatpush1.msra.mxu0 0.0
    %2886 = vmatprep.subr.mxu0 0.0
    %2887 = vmatpush1.msra.mxu0 0.0
    %2888 = vmatprep.subr.mxu0 0.0
    %2889 = vmatpush1.msra.mxu0 0.0
    %2890 = vmatprep.subr.mxu0 0.0
    %2891 = vmatpush1.msra.mxu0 0.0
    %2892 = vmatprep.subr.mxu0 0.0
    %2893 = vmatpush1.msra.mxu0 0.0
    %2894 = vmatprep.subr.mxu0 0.0
    %2895 = vmatpush1.msra.mxu0 0.0
    %2896 = vmatprep.subr.mxu0 0.0
    %2897 = vmatpush1.msra.mxu0 0.0
    %2898 = vmatprep.subr.mxu0 0.0
    %2899 = vmatpush1.msra.mxu0 0.0
    %2900 = vmatprep.subr.mxu0 0.0
    %2901 = vmatpush1.msra.mxu0 0.0
    %2902 = vmatprep.subr.mxu0 0.0
    %2903 = vmatpush1.msra.mxu0 0.0
    %2904 = vmatprep.subr.mxu0 0.0
    %2905 = vmatpush1.msra.mxu0 0.0
    %2906 = vmatprep.subr.mxu0 0.0
    %2907 = vmatpush1.msra.mxu0 0.0
    %2908 = vmatprep.subr.mxu0 0.0
    %2909 = vmatpush1.msra.mxu0 0.0
    %2910 = vmatprep.subr.mxu0 0.0
    %2911 = vmatpush1.msra.mxu0 0.0
    %2912 = vmatprep.subr.mxu0 0.0
    %v2913 = vand.u32 %v2573, 4294901760
    %v2914 = vsub.f32 %v2573, %v2913
    %v2915 = vand.u32 %v2914, 4294901760
    %2916 = vmatpush1.msra.mxu0 %v2915
    %2917 = vmatprep.subr.mxu0 0.0
    %v2918 = vand.u32 %v2565, 4294901760
    %v2919 = vsub.f32 %v2565, %v2918
    %v2920 = vand.u32 %v2919, 4294901760
    %2921 = vmatpush1.msra.mxu0 %v2920
    %2922 = vmatprep.subr.mxu0 0.0
    %2923 = vmatpush2.msra.mxu0 0.0
    %2924 = vmatprep.subr.mxu0 0.0
    %2925 = vmatpush2.msra.mxu0 0.0
    %2926 = vmatprep.subr.mxu0 0.0
    %2927 = vmatpush2.msra.mxu0 0.0
    %2928 = vmatprep.subr.mxu0 0.0
    %2929 = vmatpush2.msra.mxu0 0.0
    %2930 = vmatprep.subr.mxu0 0.0
    %2931 = vmatpush2.msra.mxu0 0.0
    %2932 = vmatprep.subr.mxu0 0.0
    %2933 = vmatpush2.msra.mxu0 0.0
    %2934 = vmatprep.subr.mxu0 0.0
    %2935 = vmatpush2.msra.mxu0 0.0
    %2936 = vmatprep.subr.mxu0 0.0
    %2937 = vmatpush2.msra.mxu0 0.0
    %2938 = vmatprep.subr.mxu0 0.0
    %2939 = vmatpush2.msra.mxu0 0.0
    %2940 = vmatprep.subr.mxu0 0.0
    %2941 = vmatpush2.msra.mxu0 0.0
    %2942 = vmatprep.subr.mxu0 0.0
    %2943 = vmatpush2.msra.mxu0 0.0
    %2944 = vmatprep.subr.mxu0 0.0
    %2945 = vmatpush2.msra.mxu0 0.0
    %2946 = vmatprep.subr.mxu0 0.0
    %2947 = vmatpush2.msra.mxu0 0.0
    %2948 = vmatprep.subr.mxu0 0.0
    %2949 = vmatpush2.msra.mxu0 0.0
    %2950 = vmatprep.subr.mxu0 0.0
    %2951 = vmatpush2.msra.mxu0 0.0
    %2952 = vmatprep.subr.mxu0 0.0
    %2953 = vmatpush2.msra.mxu0 0.0
    %2954 = vmatprep.mubr.f32.mxu0 0.0
    %v2955 = vand.u32 %v2569, 4294901760
    %2956 = vmatmul.mubr.f32.gmra.mxu0 %v2955
    %v2957 = vpop.f32.mrf.mxu0
    %v2958 = vadd.f32 %v2881, %v2957
    %v2959 = vpop.f32.mrf.mxu0
    %2960 = vdwg.mxu0
    %2961 = vmatprep.subr.mxu0 0.0
    %2962 = vmatpush1.msra.mxu0 0.0
    %2963 = vmatprep.subr.mxu0 0.0
    %2964 = vmatpush1.msra.mxu0 0.0
    %2965 = vmatprep.subr.mxu0 0.0
    %2966 = vmatpush1.msra.mxu0 0.0
    %2967 = vmatprep.subr.mxu0 0.0
    %2968 = vmatpush1.msra.mxu0 0.0
    %2969 = vmatprep.subr.mxu0 0.0
    %2970 = vmatpush1.msra.mxu0 0.0
    %2971 = vmatprep.subr.mxu0 0.0
    %2972 = vmatpush1.msra.mxu0 0.0
    %2973 = vmatprep.subr.mxu0 0.0
    %2974 = vmatpush1.msra.mxu0 0.0
    %2975 = vmatprep.subr.mxu0 0.0
    %2976 = vmatpush1.msra.mxu0 0.0
    %2977 = vmatprep.subr.mxu0 0.0
    %2978 = vmatpush1.msra.mxu0 0.0
    %2979 = vmatprep.subr.mxu0 0.0
    %2980 = vmatpush1.msra.mxu0 0.0
    %2981 = vmatprep.subr.mxu0 0.0
    %2982 = vmatpush1.msra.mxu0 0.0
    %2983 = vmatprep.subr.mxu0 0.0
    %2984 = vmatpush1.msra.mxu0 0.0
    %2985 = vmatprep.subr.mxu0 0.0
    %2986 = vmatpush1.msra.mxu0 0.0
    %2987 = vmatprep.subr.mxu0 0.0
    %2988 = vmatpush1.msra.mxu0 0.0
    %2989 = vmatprep.subr.mxu0 0.0
    %v2990 = vand.u32 %v2573, 4294901760
    %2991 = vmatpush1.msra.mxu0 %v2990
    %2992 = vmatprep.subr.mxu0 0.0
    %v2993 = vand.u32 %v2565, 4294901760
    %2994 = vmatpush1.msra.mxu0 %v2993
    %2995 = vmatprep.subr.mxu0 0.0
    %2996 = vmatpush2.msra.mxu0 0.0
    %2997 = vmatprep.subr.mxu0 0.0
    %2998 = vmatpush2.msra.mxu0 0.0
    %2999 = vmatprep.subr.mxu0 0.0
    %3000 = vmatpush2.msra.mxu0 0.0
    %3001 = vmatprep.subr.mxu0 0.0
    %3002 = vmatpush2.msra.mxu0 0.0
    %3003 = vmatprep.subr.mxu0 0.0
    %3004 = vmatpush2.msra.mxu0 0.0
    %3005 = vmatprep.subr.mxu0 0.0
    %3006 = vmatpush2.msra.mxu0 0.0
    %3007 = vmatprep.subr.mxu0 0.0
    %3008 = vmatpush2.msra.mxu0 0.0
    %3009 = vmatprep.subr.mxu0 0.0
    %3010 = vmatpush2.msra.mxu0 0.0
    %3011 = vmatprep.subr.mxu0 0.0
    %3012 = vmatpush2.msra.mxu0 0.0
    %3013 = vmatprep.subr.mxu0 0.0
    %3014 = vmatpush2.msra.mxu0 0.0
    %3015 = vmatprep.subr.mxu0 0.0
    %3016 = vmatpush2.msra.mxu0 0.0
    %3017 = vmatprep.subr.mxu0 0.0
    %3018 = vmatpush2.msra.mxu0 0.0
    %3019 = vmatprep.subr.mxu0 0.0
    %3020 = vmatpush2.msra.mxu0 0.0
    %3021 = vmatprep.subr.mxu0 0.0
    %3022 = vmatpush2.msra.mxu0 0.0
    %3023 = vmatprep.subr.mxu0 0.0
    %3024 = vmatpush2.msra.mxu0 0.0
    %3025 = vmatprep.subr.mxu0 0.0
    %3026 = vmatpush2.msra.mxu0 0.0
    %3027 = vmatprep.mubr.f32.mxu0 0.0
    %v3028 = vand.u32 %v2569, 4294901760
    %3029 = vmatmul.mubr.f32.gmra.mxu0 %v3028
    %v3030 = vpop.f32.mrf.mxu0
    %v3031 = vadd.f32 %v2958, %v3030
    %v3032 = vpop.f32.mrf.mxu0
    %3033 = vdwg.mxu0
    %v3034 = vxor.u32 %v3031, 2147483648
    %v3035 = vmul.f32 %v3034, 1.442695
    %v3036 = vpow.pop %v3035
    %v3037 = vadd.f32 %v3036, 1.0
    %v3038 = vrcp.pop %v3037
    %v3039 = vmul.f32 1.0, %v3038
    %v3040 = vlaneseq
    %v3041 = vand.u32 %v3040, 127
    %v3042 = vadd.s32 %v3041, 128
    %v3043 = vadd.s32 %v3041, 256
    %v3044 = vadd.s32 %v3041, 384
    %v3045 = vadd.s32 %v3041, 512
    %v3046 = vadd.s32 %v3041, 640
    %v3047 = vadd.s32 %v3041, 768
    %v3048 = vadd.s32 %v3041, 896
    %v3049 = vadd.s32 %v3041, 1024
    %vm3050 = vcmp.ge.s32.totalorder %v3041, 576
    %vm3051 = vcmp.ge.s32.totalorder %v3042, 576
    %vm3052 = vcmp.ge.s32.totalorder %v3043, 576
    %vm3053 = vcmp.ge.s32.totalorder %v3044, 576
    %vm3054 = vcmp.ge.s32.totalorder %v3045, 576
    %vm3055 = vcmp.ge.s32.totalorder %v3046, 576
    %vm3056 = vcmp.ge.s32.totalorder %v3047, 576
    %vm3057 = vcmp.ge.s32.totalorder %v3048, 576
    %vm3058 = vcmp.ge.s32.totalorder %v3049, 576
    %3060 = vset.pattern.permute.xlu0 1
    %3061 = vperm.xlu0 %3060, %v3039
    %v3062 = vpop.permute.xlu0 %3061
    %3064 = vset.pattern.permute.xlu0 0
    %3065 = vperm.xlu0 %3064, %v3039
    %v3066 = vpop.permute.xlu0 %3065
    %v3068 = vsel %vm3050, %v3062, %v3066
    %v3069 = vsel %vm3051, %v3062, %v3066
    %v3070 = vsel %vm3052, %v3062, %v3066
    %v3071 = vsel %vm3053, %v3062, %v3066
    %v3072 = vsel %vm3054, %v3062, %v3066
    %v3073 = vsel %vm3055, %v3062, %v3066
    %v3074 = vsel %vm3056, %v3062, %v3066
    %v3075 = vsel %vm3057, %v3062, %v3066
    %v3076 = vsel %vm3058, %v3062, %v3066
    %v3086 = vcombine.low %v3068, %v3069
    %v3087 = vcombine.low %v3070, %v3071
    %v3089 = vunpack.c.l.s4 1983009808
    %v3090 = vunpack.c.0.s8 %v3089
    %v3091 = vlaneseq
    %v3092 = vshrl.u32 %v3091, 7
    %v3093 = vsub.s32 %v3090, %v3092
    %v3094 = vrot.slane %v3086, %v3093
    %v3096 = vunpack.c.l.s4 1983009808
    %v3097 = vunpack.c.0.s8 %v3096
    %v3098 = vlaneseq
    %v3099 = vshrl.u32 %v3098, 7
    %v3100 = vsub.s32 %v3097, %v3099
    %v3101 = vrot.slane %v3087, %v3100
    %v3102 = vcombine.low %v3094, %v3101
    %v3103 = vcombine.low %v3072, %v3073
    %v3104 = vcombine.low %v3074, %v3075
    %v3106 = vunpack.c.l.s4 1983009808
    %v3107 = vunpack.c.0.s8 %v3106
    %v3108 = vlaneseq
    %v3109 = vshrl.u32 %v3108, 7
    %v3110 = vsub.s32 %v3107, %v3109
    %v3111 = vrot.slane %v3103, %v3110
    %v3113 = vunpack.c.l.s4 1983009808
    %v3114 = vunpack.c.0.s8 %v3113
    %v3115 = vlaneseq
    %v3116 = vshrl.u32 %v3115, 7
    %v3117 = vsub.s32 %v3114, %v3116
    %v3118 = vrot.slane %v3104, %v3117
    %v3119 = vcombine.low %v3111, %v3118
    %v3121 = vunpack.c.l.s4 1983009808
    %v3122 = vunpack.c.0.s8 %v3121
    %v3123 = vlaneseq
    %v3124 = vshrl.u32 %v3123, 7
    %v3125 = vsub.s32 %v3122, %v3124
    %v3126 = vrot.slane %v3076, %v3125
    %v3130 = vmul.f32 %v32, %v3102
    %v3131 = vmul.f32 %v33, %v3119
    %v3132 = vmul.f32 %v34, %v3126
    %3133 = vst [vmem:[#allocation5] sm:$0xff] %v3130
    %3134 = vst [vmem:[#allocation5 + $0x8] sm:$0xff] %v3131
    %3135 = vst [vmem:[#allocation5 + $0x10] sm:$0x3] %v3132
    // Predicated region
    $region22: #{tpu_custom_call.1} parent=1 // pred_check
      _
    $region23: #{tpu_custom_call.1} parent=1 // pred_check_branch
      %3137 = sbr.rel (0) target = $region25
    $region24: #{tpu_custom_call.1} parent=1 // pred_region
      %s3139 = ssub.s32 288, 288
      %3140 = vsyncadd [#allocation4], %s3139
      %s3142 = sshll.u32 [#allocation5], 4
      %s3143 = int_to_ptr.vmem [resolvable:$true] %s3142
      %3145 = dma.vmem_to_hbm [thread:$0]  %s3143, 288, %s4, [#allocation4]
    $region25: #{tpu_custom_call.1} parent=1 // pred_fallthru
      _
    // Predicated region
    $region26: #{tpu_custom_call.1} parent=1 // pred_check
      _
    $region27: #{tpu_custom_call.1} parent=1 // pred_check_branch
      %3147 = sbr.rel (0) target = $region29
    $region28: #{tpu_custom_call.1} parent=1 // pred_region
      %3148 = dma.done [#allocation4], 288
    $region29: #{tpu_custom_call.1} parent=1 // pred_fallthru
      _
    %3149 = vsyncpa [#allocation3], 1
    %3150 = vsyncpa [#allocation4], 1

</llo_original>
